<compile_context>
chip_gen: v6e
topology: v6e:2x2x1
jax: 0.10.0
libtpu: 0.0.40
codegen_flags: <defaults>
</compile_context>

<pallas_src>
import math
import functools

import numpy as np
import jax
import jax.numpy as jnp
from jax.experimental import pallas as pl
from jax.experimental.pallas import tpu as pltpu


def _round_up(x, m):
    return ((x + m - 1) // m) * m


# ----------------------------------------------------------------------------
# Kernel: one batch tile (tb graph instances) per grid step.
# ----------------------------------------------------------------------------
def _decode_step_kernel(emb_ref, addmask_ref, wnode_ref, wfixed_ref, wout_ref,
                        stepctx_ref, seg_dh_ref, seg_hd_ref,
                        logp_ref, glimpse_ref,
                        *, n_heads, n_real, tanh_clipping, temp, fuse_proj):
    tb, n_pad, d = emb_ref.shape
    ks = d // n_heads
    f32 = jnp.float32

    emb3 = emb_ref[...]                                   # (tb, n_pad, d) compute dtype
    cdt = emb3.dtype
    emb2 = emb3.reshape(tb * n_pad, d)
    addmask = addmask_ref[...]                            # (tb, n_pad) f32: 0 / -inf

    # ---- node projections (MXU, f32 accumulate) ----
    if fuse_proj:
        # single (tb*n_pad, D) x (D, 3D) matmul; slices are 128-lane aligned.
        proj = jnp.dot(emb2, wnode_ref[...], preferred_element_type=f32)
        gK3 = proj[:, :d].reshape(tb, n_pad, d)
        gV3 = proj[:, d:2 * d].reshape(tb, n_pad, d)
        lK3 = proj[:, 2 * d:].reshape(tb, n_pad, d)
    else:
        wnode = wnode_ref[...]
        gK3 = jnp.dot(emb2, wnode[:, :d], preferred_element_type=f32).reshape(tb, n_pad, d)
        gV3 = jnp.dot(emb2, wnode[:, d:2 * d], preferred_element_type=f32).reshape(tb, n_pad, d)
        lK3 = jnp.dot(emb2, wnode[:, 2 * d:], preferred_element_type=f32).reshape(tb, n_pad, d)

    # ---- fixed context (mean over *real* nodes; padded rows are zero) + step ctx ----
    graph_embed = jnp.sum(emb3.astype(f32), axis=1) * f32(1.0 / n_real)     # (tb, d)
    fixed_ctx = jnp.dot(graph_embed.astype(cdt), wfixed_ref[...],
                        preferred_element_type=f32)                          # (tb, d)
    query = fixed_ctx + stepctx_ref[...].astype(f32)                         # (tb, d)
    q_scaled = query * f32(1.0 / math.sqrt(ks))

    # ---- glimpse attention, all heads at once (head-segment selectors precomputed) ----
    seg_dh = seg_dh_ref[...]                               # (d, H)  seg[k, h] = [k//ks == h]
    seg_hd = seg_hd_ref[...]                               # (H, d)
    qseg = (q_scaled[:, :, None] * seg_dh[None, :, :]).astype(cdt)           # (tb, d, H)
    compat = jnp.einsum('bnd,bdh->bnh', gK3.astype(cdt), qseg,
                        preferred_element_type=f32)                          # (tb, n_pad, H)
    compat = compat + addmask[:, :, None]                                    # mask_inner

    m = jnp.max(compat, axis=1, keepdims=True)                               # (tb, 1, H)
    p = jnp.exp(compat - m)
    p = p / jnp.sum(p, axis=1, keepdims=True)                                # softmax over nodes

    pv = jnp.einsum('bnh,bnd->bhd', p.astype(cdt), gV3.astype(cdt),
                    preferred_element_type=f32)                              # (tb, H, d)
    heads = jnp.sum(pv * seg_hd[None, :, :], axis=1)                         # (tb, d)

    glimpse_pad = jnp.dot(heads.astype(cdt), wout_ref[...],
                          preferred_element_type=f32)                        # (tb, d_pad)
    glimpse = glimpse_pad[:, :d]                                             # (tb, d)

    # ---- logits over nodes ----
    raw = jnp.sum(lK3 * glimpse[:, None, :], axis=-1)                        # (tb, n_pad) f32
    if tanh_clipping > 0.0:
        x = jnp.tanh(raw * f32(1.0 / math.sqrt(d))) * f32(tanh_clipping / temp)
    else:
        x = raw * f32(1.0 / (math.sqrt(d) * temp))
    x = x + addmask                                                          # mask_logits

    # ---- log_softmax over nodes (padded/masked are -inf => contribute 0) ----
    xm = jnp.max(x, axis=-1, keepdims=True)
    lse = jnp.log(jnp.sum(jnp.exp(x - xm), axis=-1, keepdims=True)) + xm
    logp = x - lse

    # lane-pad log_p to the 128-multiple output width (lane-dense store).
    lane_pad = logp_ref.shape[1] - n_pad
    if lane_pad > 0:
        logp = jnp.concatenate([logp, jnp.zeros((tb, lane_pad), f32)], axis=-1)
    logp_ref[...] = logp.astype(logp_ref.dtype)
    glimpse_ref[...] = glimpse_pad.astype(glimpse_ref.dtype)


# ----------------------------------------------------------------------------
# VMEM sizing heuristics.
# ----------------------------------------------------------------------------
def _vmem_estimate(tb, n_pad8, n_pad128, D, d_pad, H, cbytes):
    emb = 2 * tb * n_pad8 * D * cbytes                     # double-buffered input block
    mask = 2 * tb * n_pad8 * 4
    wts = 2 * (D * 3 * D + D * D + D * d_pad) * cbytes + 2 * (2 * D * H + D) * 4
    outs = 2 * tb * (n_pad128 + d_pad) * 4
    inter = 4 * tb * n_pad8 * D * 4 + 4 * tb * n_pad8 * H * 4 + 8 * tb * max(D, d_pad) * 4
    return emb + mask + wts + outs + inter


def _pick_batch_tile(B, n_pad8, n_pad128, D, d_pad, H, cbytes, budget=28 << 20):
    cands = [t for t in (256, 128, 64, 32, 16, 8) if t <= B and B % t == 0]
    if not cands:
        return B                                           # tiny batch: one full-batch tile
    fitting = [t for t in cands
               if _vmem_estimate(t, n_pad8, n_pad128, D, d_pad, H, cbytes) <= budget]
    if not fitting:
        return min(cands)
    multi = [t for t in fitting if B // t >= 2]            # >=2 grid steps -> both v7x TCs
    return max(multi) if multi else max(fitting)


# ----------------------------------------------------------------------------
# Wrapper: padding, hoisted constants, pallas_call.
# ----------------------------------------------------------------------------
def attention_decode(emb, mask_bool, w_node, w_fixed, w_step, w_out, w_placeholder,
                     *, n_heads=8, tanh_clipping=10.0, temp=1.0,
                     batch_tile=None, compute_dtype=jnp.bfloat16,
                     vmem_limit_bytes=None):
    """One decode step. Returns (log_p [B, N] f32, glimpse [B, D] f32)."""
    B, N, D = emb.shape
    assert D % n_heads == 0
    ks = D // n_heads

    n_pad8 = _round_up(N, 8)          # node axis compute padding (sublanes only)
    n_pad128 = _round_up(N, 128)      # lane-dense log_p output width
    d_pad = _round_up(D, 128)         # lane-dense glimpse output width
    cbytes = jnp.dtype(compute_dtype).itemsize

    if batch_tile is None:
        batch_tile = _pick_batch_tile(B, n_pad8, n_pad128, D, d_pad, n_heads, cbytes)
    tb = batch_tile
    assert B % tb == 0, "batch must be divisible by batch_tile"
    assert tb % 8 == 0 or tb == B, "batch_tile must be a multiple of 8 (or == batch)"

    # Pad nodes to a multiple of 8; padded rows are zero embeddings and masked out.
    emb_p = jnp.pad(emb, ((0, 0), (0, n_pad8 - N), (0, 0))).astype(compute_dtype)
    mask_p = jnp.pad(mask_bool, ((0, 0), (0, n_pad8 - N)), constant_values=True)
    addmask = jnp.where(mask_p, jnp.float32(-jnp.inf), jnp.float32(0.0))      # additive mask

    # Batch-invariant step-0 context: W_placeholder @ W_step, hoisted out of the kernel.
    step_ctx = (w_placeholder.reshape(1, -1) @ w_step).astype(jnp.float32)    # (1, D)

    w_node_c = w_node.astype(compute_dtype)                                   # (D, 3D) fused
    w_fixed_c = w_fixed.astype(compute_dtype)                                 # (D, D)
    w_out_c = jnp.pad(w_out, ((0, 0), (0, d_pad - D))).astype(compute_dtype)  # (D, d_pad)

    # Head-segment selector, both orientations, hoisted out of the kernel.
    seg_dh_np = (np.arange(D)[:, None] // ks == np.arange(n_heads)[None, :]).astype(np.float32)
    seg_dh = jnp.asarray(seg_dh_np)            # (D, H)
    seg_hd = jnp.asarray(seg_dh_np.T)          # (H, D)

    fuse_proj = (D % 128 == 0)                 # fused (D,3D) matmul only when slices align

    if vmem_limit_bytes is None:
        est = _vmem_estimate(tb, n_pad8, n_pad128, D, d_pad, n_heads, cbytes)
        vmem_limit_bytes = int(min(64 << 20, max(32 << 20, 2 * est)))

    kernel = functools.partial(
        _decode_step_kernel, n_heads=n_heads, n_real=N,
        tanh_clipping=float(tanh_clipping), temp=float(temp), fuse_proj=fuse_proj)

    const2 = lambda b: (0, 0)
    logp_pad, glimpse_pad = pl.pallas_call(
        kernel,
        out_shape=(
            jax.ShapeDtypeStruct((B, n_pad128), jnp.float32),   # log_p (lane-dense)
            jax.ShapeDtypeStruct((B, d_pad), jnp.float32),      # glimpse (lane-dense)
        ),
        grid_spec=pltpu.PrefetchScalarGridSpec(
            num_scalar_prefetch=0,
            grid=(B // tb,),
            in_specs=[
                pl.BlockSpec((tb, n_pad8, D), lambda b: (b, 0, 0)),   # embeddings
                pl.BlockSpec((tb, n_pad8), lambda b: (b, 0)),         # additive mask (0/-inf)
                pl.BlockSpec((D, 3 * D), const2),                     # W_node (fused K|V|logitK)
                pl.BlockSpec((D, D), const2),                         # W_fixed
                pl.BlockSpec((D, d_pad), const2),                     # W_out (lane-padded cols)
                pl.BlockSpec((1, D), const2),                         # step context (hoisted)
                pl.BlockSpec((D, n_heads), const2),                   # head-segment (D, H)
                pl.BlockSpec((n_heads, D), const2),                   # head-segment (H, D)
            ],
            out_specs=[
                pl.BlockSpec((tb, n_pad128), lambda b: (b, 0)),
                pl.BlockSpec((tb, d_pad), lambda b: (b, 0)),
            ],
        ),
        compiler_params=pltpu.CompilerParams(
            dimension_semantics=("parallel",),
            vmem_limit_bytes=vmem_limit_bytes,
        ),
    )(emb_p, addmask, w_node_c, w_fixed_c, w_out_c, step_ctx, seg_dh, seg_hd)

    return logp_pad[:, :N], glimpse_pad[:, :D]


# ----------------------------------------------------------------------------
# Pure-JAX reference of the same forward semantics (for verification).
# ----------------------------------------------------------------------------
def reference(emb, mask_bool, w_node, w_fixed, w_step, w_out, w_placeholder,
              *, n_heads=8, tanh_clipping=10.0, temp=1.0):
    B, N, D = emb.shape
    ks = D // n_heads
    graph_embed = emb.mean(axis=1)                                    # [B, D]
    fixed_ctx = graph_embed @ w_fixed                                 # [B, D]
    proj = emb @ w_node                                               # [B, N, 3D]
    gK, gV, lK = jnp.split(proj, 3, axis=-1)
    query = fixed_ctx + (w_placeholder.reshape(1, -1) @ w_step)       # [B, D]
    qh = query.reshape(B, n_heads, ks)
    Kh = gK.reshape(B, N, n_heads, ks)
    Vh = gV.reshape(B, N, n_heads, ks)
    compat = jnp.einsum('bhk,bnhk->bhn', qh, Kh) / math.sqrt(ks)
    compat = jnp.where(mask_bool[:, None, :], -jnp.inf, compat)
    p = jax.nn.softmax(compat, axis=-1)
    heads = jnp.einsum('bhn,bnhk->bhk', p, Vh).reshape(B, D)
    glimpse = heads @ w_out
    logits = jnp.einsum('bd,bnd->bn', glimpse, lK) / math.sqrt(D)
    if tanh_clipping > 0:
        logits = jnp.tanh(logits) * tanh_clipping
    logits = jnp.where(mask_bool, -jnp.inf, logits)
    logp = jax.nn.log_softmax(logits / temp, axis=-1)
    return logp, glimpse


if __name__ == "__main__":
    B, N, D, H = 16, 8, 32, 8    # batch, graph nodes, embedding_dim, n_heads

    key = jax.random.PRNGKey(0)
    k_emb, k_wn, k_wf, k_ws, k_wo, k_wp = jax.random.split(key, 6)

    emb = jax.random.normal(k_emb, (B, N, D), dtype=jnp.float32)

    def lin_init(k, fan_in, shape):
        bound = 1.0 / math.sqrt(fan_in)
        return jax.random.uniform(k, shape, jnp.float32, -bound, bound)

    w_node = lin_init(k_wn, D, (D, 3 * D))          # project_node_embeddings (pre-transposed)
    w_fixed = lin_init(k_wf, D, (D, D))             # project_fixed_context
    w_step = lin_init(k_ws, 2 * D, (2 * D, D))      # project_step_context
    w_out = lin_init(k_wo, D, (D, D))               # project_out
    w_placeholder = jax.random.uniform(k_wp, (2 * D,), jnp.float32, -1.0, 1.0)

    # Deterministic mask: last node masked for every batch element.
    mask_bool = jnp.zeros((B, N), dtype=bool).at[:, -1].set(True)

    ref_logp, ref_glimpse = reference(emb, mask_bool, w_node, w_fixed, w_step, w_out,
                                      w_placeholder, n_heads=H)

    # f32 compute path: tight numerical check against the f32 reference.
    log_p, glimpse = attention_decode(emb, mask_bool, w_node, w_fixed, w_step, w_out,
                                      w_placeholder, n_heads=H,
                                      compute_dtype=jnp.float32)
    jax.block_until_ready((log_p, glimpse))
    assert np.allclose(np.asarray(log_p), np.asarray(ref_logp),
                       atol=1e-4, rtol=1e-4), "log_p mismatch (f32)"
    assert np.allclose(np.asarray(glimpse), np.asarray(ref_glimpse),
                       atol=1e-4, rtol=1e-4), "glimpse mismatch (f32)"

    # Default bf16 MXU path (f32 accumulate / f32 softmax): looser tolerance vs f32 ref.
    log_p_bf, glimpse_bf = attention_decode(emb, mask_bool, w_node, w_fixed, w_step, w_out,
                                            w_placeholder, n_heads=H)
    jax.block_until_ready((log_p_bf, glimpse_bf))
    assert np.allclose(np.asarray(log_p_bf), np.asarray(ref_logp),
                       atol=0.12, rtol=0.12), "log_p mismatch (bf16)"
    assert np.allclose(np.asarray(glimpse_bf), np.asarray(ref_glimpse),
                       atol=0.12, rtol=0.12), "glimpse mismatch (bf16)"

    print("KERNEL_OK")
</pallas_src>

<mosaic_0001>
module attributes {stable_mosaic.version = 11 : i64} {
  func.func @_decode_step_kernel(%arg0: i32, %arg1: memref<8x8x32xf32, #tpu.memory_space<vmem>>, %arg2: memref<8x8xf32, #tpu.memory_space<vmem>>, %arg3: memref<32x96xf32, #tpu.memory_space<vmem>>, %arg4: memref<32x32xf32, #tpu.memory_space<vmem>>, %arg5: memref<32x128xf32, #tpu.memory_space<vmem>>, %arg6: memref<1x32xf32, #tpu.memory_space<vmem>>, %arg7: memref<32x8xf32, #tpu.memory_space<vmem>>, %arg8: memref<8x32xf32, #tpu.memory_space<vmem>>, %arg9: memref<8x128xf32, #tpu.memory_space<vmem>>, %arg10: memref<8x128xf32, #tpu.memory_space<vmem>>) attributes {dimension_semantics = [#tpu.dimension_semantics<parallel>], iteration_bounds = array<i64: 2>, scalar_prefetch = 0 : i64, scratch_operands = 0 : i64, tpu.core_type = #tpu.core_type<tc>, window_params = [{transform_indices = @transform_0, window_bounds = array<i64: 8, 8, 32>}, {transform_indices = @transform_1, window_bounds = array<i64: 8, 8>}, {pipeline_mode = #tpu.pipeline_mode<synchronous>, transform_indices = @transform_2, window_bounds = array<i64: 32, 96>}, {pipeline_mode = #tpu.pipeline_mode<synchronous>, transform_indices = @transform_3, window_bounds = array<i64: 32, 32>}, {pipeline_mode = #tpu.pipeline_mode<synchronous>, transform_indices = @transform_4, window_bounds = array<i64: 32, 128>}, {pipeline_mode = #tpu.pipeline_mode<synchronous>, transform_indices = @transform_5, window_bounds = array<i64: 1, 32>}, {pipeline_mode = #tpu.pipeline_mode<synchronous>, transform_indices = @transform_6, window_bounds = array<i64: 32, 8>}, {pipeline_mode = #tpu.pipeline_mode<synchronous>, transform_indices = @transform_7, window_bounds = array<i64: 8, 32>}, {transform_indices = @transform_8, window_bounds = array<i64: 8, 128>}, {transform_indices = @transform_9, window_bounds = array<i64: 8, 128>}]} {
    %c0 = arith.constant 0 : index
    %c0_0 = arith.constant 0 : index
    %c0_1 = arith.constant 0 : index
    %0 = vector.load %arg1[%c0, %c0_0, %c0_1] : memref<8x8x32xf32, #tpu.memory_space<vmem>>, vector<8x8x32xf32>
    %1 = vector.shape_cast %0 : vector<8x8x32xf32> to vector<64x32xf32>
    %c0_2 = arith.constant 0 : index
    %c0_3 = arith.constant 0 : index
    %2 = vector.load %arg2[%c0_2, %c0_3] : memref<8x8xf32, #tpu.memory_space<vmem>>, vector<8x8xf32>
    %c0_4 = arith.constant 0 : index
    %c0_5 = arith.constant 0 : index
    %3 = vector.load %arg3[%c0_4, %c0_5] : memref<32x96xf32, #tpu.memory_space<vmem>>, vector<32x96xf32>
    %4 = vector.extract_strided_slice %3 {offsets = [0, 0], sizes = [32, 32], strides = [1, 1]} : vector<32x96xf32> to vector<32x32xf32>
    %cst = arith.constant dense<0.000000e+00> : vector<64x32xf32>
    %5 = tpu.matmul %1, %4, %cst {dimension_numbers = #tpu.dot_dimension_numbers<[1], [0], [0], [1], [0, 0, 1, 1], [], []>} : vector<64x32xf32>, vector<32x32xf32>, vector<64x32xf32> -> vector<64x32xf32>
    %6 = vector.shape_cast %5 : vector<64x32xf32> to vector<8x8x32xf32>
    %7 = vector.extract_strided_slice %3 {offsets = [0, 32], sizes = [32, 32], strides = [1, 1]} : vector<32x96xf32> to vector<32x32xf32>
    %cst_6 = arith.constant dense<0.000000e+00> : vector<64x32xf32>
    %8 = tpu.matmul %1, %7, %cst_6 {dimension_numbers = #tpu.dot_dimension_numbers<[1], [0], [0], [1], [0, 0, 1, 1], [], []>} : vector<64x32xf32>, vector<32x32xf32>, vector<64x32xf32> -> vector<64x32xf32>
    %9 = vector.shape_cast %8 : vector<64x32xf32> to vector<8x8x32xf32>
    %10 = vector.extract_strided_slice %3 {offsets = [0, 64], sizes = [32, 32], strides = [1, 1]} : vector<32x96xf32> to vector<32x32xf32>
    %cst_7 = arith.constant dense<0.000000e+00> : vector<64x32xf32>
    %11 = tpu.matmul %1, %10, %cst_7 {dimension_numbers = #tpu.dot_dimension_numbers<[1], [0], [0], [1], [0, 0, 1, 1], [], []>} : vector<64x32xf32>, vector<32x32xf32>, vector<64x32xf32> -> vector<64x32xf32>
    %12 = vector.shape_cast %11 : vector<64x32xf32> to vector<8x8x32xf32>
    %cst_8 = arith.constant dense<0.000000e+00> : vector<8x32xf32>
    %13 = vector.multi_reduction <add>, %0, %cst_8 [1] : vector<8x8x32xf32> to vector<8x32xf32>
    %cst_9 = arith.constant 1.250000e-01 : f32
    %14 = vector.broadcast %cst_9 : f32 to vector<8x32xf32>
    %15 = arith.mulf %13, %14 : vector<8x32xf32>
    %c0_10 = arith.constant 0 : index
    %c0_11 = arith.constant 0 : index
    %16 = vector.load %arg4[%c0_10, %c0_11] : memref<32x32xf32, #tpu.memory_space<vmem>>, vector<32x32xf32>
    %cst_12 = arith.constant dense<0.000000e+00> : vector<8x32xf32>
    %17 = tpu.matmul %15, %16, %cst_12 {dimension_numbers = #tpu.dot_dimension_numbers<[1], [0], [0], [1], [0, 0, 1, 1], [], []>} : vector<8x32xf32>, vector<32x32xf32>, vector<8x32xf32> -> vector<8x32xf32>
    %c0_13 = arith.constant 0 : index
    %c0_14 = arith.constant 0 : index
    %18 = vector.load %arg6[%c0_13, %c0_14] : memref<1x32xf32, #tpu.memory_space<vmem>>, vector<1x32xf32>
    %19 = vector.broadcast %18 : vector<1x32xf32> to vector<8x32xf32>
    %20 = arith.addf %17, %19 : vector<8x32xf32>
    %cst_15 = arith.constant 5.000000e-01 : f32
    %21 = vector.broadcast %cst_15 : f32 to vector<8x32xf32>
    %22 = arith.mulf %20, %21 : vector<8x32xf32>
    %c0_16 = arith.constant 0 : index
    %c0_17 = arith.constant 0 : index
    %23 = vector.load %arg7[%c0_16, %c0_17] : memref<32x8xf32, #tpu.memory_space<vmem>>, vector<32x8xf32>
    %c0_18 = arith.constant 0 : index
    %c0_19 = arith.constant 0 : index
    %24 = vector.load %arg8[%c0_18, %c0_19] : memref<8x32xf32, #tpu.memory_space<vmem>>, vector<8x32xf32>
    %25 = vector.shape_cast %22 : vector<8x32xf32> to vector<8x32x1xf32>
    %26 = vector.shape_cast %23 : vector<32x8xf32> to vector<1x32x8xf32>
    %27 = vector.broadcast %25 : vector<8x32x1xf32> to vector<8x32x8xf32>
    %28 = vector.broadcast %26 : vector<1x32x8xf32> to vector<8x32x8xf32>
    %29 = arith.mulf %27, %28 : vector<8x32x8xf32>
    "tpu.trace_start"() <{level = 10 : i32, message = "bnd,bdh->bnh"}> : () -> ()
    %cst_20 = arith.constant dense<0.000000e+00> : vector<8x8x8xf32>
    %30 = tpu.matmul %6, %29, %cst_20 {dimension_numbers = #tpu.dot_dimension_numbers<[2], [1], [1], [2], [0, 0, 0, 1, 1, 2], [0], [0]>} : vector<8x8x32xf32>, vector<8x32x8xf32>, vector<8x8x8xf32> -> vector<8x8x8xf32>
    "tpu.trace_stop"() : () -> ()
    %31 = vector.shape_cast %2 : vector<8x8xf32> to vector<8x8x1xf32>
    %32 = vector.broadcast %31 : vector<8x8x1xf32> to vector<8x8x8xf32>
    %33 = arith.addf %30, %32 : vector<8x8x8xf32>
    %cst_21 = arith.constant dense<0xFF800000> : vector<8x8xf32>
    %34 = vector.multi_reduction <maximumf>, %33, %cst_21 [1] : vector<8x8x8xf32> to vector<8x8xf32>
    %35 = vector.shape_cast %34 : vector<8x8xf32> to vector<8x1x8xf32>
    %36 = vector.broadcast %35 : vector<8x1x8xf32> to vector<8x8x8xf32>
    %37 = arith.subf %33, %36 : vector<8x8x8xf32>
    %38 = math.exp %37 : vector<8x8x8xf32>
    %cst_22 = arith.constant dense<0.000000e+00> : vector<8x8xf32>
    %39 = vector.multi_reduction <add>, %38, %cst_22 [1] : vector<8x8x8xf32> to vector<8x8xf32>
    %40 = vector.shape_cast %39 : vector<8x8xf32> to vector<8x1x8xf32>
    %41 = vector.broadcast %40 : vector<8x1x8xf32> to vector<8x8x8xf32>
    %42 = arith.divf %38, %41 : vector<8x8x8xf32>
    "tpu.trace_start"() <{level = 10 : i32, message = "bnh,bnd->bhd"}> : () -> ()
    %cst_23 = arith.constant dense<0.000000e+00> : vector<8x8x32xf32>
    %43 = tpu.matmul %42, %9, %cst_23 {dimension_numbers = #tpu.dot_dimension_numbers<[1], [1], [2], [2], [0, 0, 0, 2, 1, 2], [0], [0]>} : vector<8x8x8xf32>, vector<8x8x32xf32>, vector<8x8x32xf32> -> vector<8x8x32xf32>
    "tpu.trace_stop"() : () -> ()
    %44 = vector.shape_cast %24 : vector<8x32xf32> to vector<1x8x32xf32>
    %45 = vector.broadcast %44 : vector<1x8x32xf32> to vector<8x8x32xf32>
    %46 = arith.mulf %43, %45 : vector<8x8x32xf32>
    %cst_24 = arith.constant dense<0.000000e+00> : vector<8x32xf32>
    %47 = vector.multi_reduction <add>, %46, %cst_24 [1] : vector<8x8x32xf32> to vector<8x32xf32>
    %c0_25 = arith.constant 0 : index
    %c0_26 = arith.constant 0 : index
    %48 = vector.load %arg5[%c0_25, %c0_26] : memref<32x128xf32, #tpu.memory_space<vmem>>, vector<32x128xf32>
    %cst_27 = arith.constant dense<0.000000e+00> : vector<8x128xf32>
    %49 = tpu.matmul %47, %48, %cst_27 {dimension_numbers = #tpu.dot_dimension_numbers<[1], [0], [0], [1], [0, 0, 1, 1], [], []>} : vector<8x32xf32>, vector<32x128xf32>, vector<8x128xf32> -> vector<8x128xf32>
    %50 = vector.extract_strided_slice %49 {offsets = [0, 0], sizes = [8, 32], strides = [1, 1]} : vector<8x128xf32> to vector<8x32xf32>
    %51 = vector.shape_cast %50 : vector<8x32xf32> to vector<8x1x32xf32>
    %52 = vector.broadcast %51 : vector<8x1x32xf32> to vector<8x8x32xf32>
    %53 = arith.mulf %12, %52 : vector<8x8x32xf32>
    %cst_28 = arith.constant dense<0.000000e+00> : vector<8x8xf32>
    %54 = vector.multi_reduction <add>, %53, %cst_28 [2] : vector<8x8x32xf32> to vector<8x8xf32>
    %cst_29 = arith.constant 0.176776692 : f32
    %55 = vector.broadcast %cst_29 : f32 to vector<8x8xf32>
    %56 = arith.mulf %54, %55 : vector<8x8xf32>
    %57 = math.tanh %56 : vector<8x8xf32>
    %cst_30 = arith.constant 1.000000e+01 : f32
    %58 = vector.broadcast %cst_30 : f32 to vector<8x8xf32>
    %59 = arith.mulf %57, %58 : vector<8x8xf32>
    %60 = arith.addf %59, %2 : vector<8x8xf32>
    %cst_31 = arith.constant dense<0xFF800000> : vector<8xf32>
    %61 = vector.multi_reduction <maximumf>, %60, %cst_31 [1] : vector<8x8xf32> to vector<8xf32>
    %62 = vector.shape_cast %61 : vector<8xf32> to vector<8x1xf32>
    %63 = vector.broadcast %62 : vector<8x1xf32> to vector<8x8xf32>
    %64 = arith.subf %60, %63 : vector<8x8xf32>
    %65 = math.exp %64 : vector<8x8xf32>
    %cst_32 = arith.constant dense<0.000000e+00> : vector<8xf32>
    %66 = vector.multi_reduction <add>, %65, %cst_32 [1] : vector<8x8xf32> to vector<8xf32>
    %67 = vector.shape_cast %66 : vector<8xf32> to vector<8x1xf32>
    %68 = math.log %67 : vector<8x1xf32>
    %69 = arith.addf %68, %62 : vector<8x1xf32>
    %70 = vector.broadcast %69 : vector<8x1xf32> to vector<8x8xf32>
    %71 = arith.subf %60, %70 : vector<8x8xf32>
    %cst_33 = arith.constant 0.000000e+00 : f32
    %72 = vector.broadcast %cst_33 : f32 to vector<8x120xf32>
    %73 = tpu.concatenate %71, %72 in 1 : vector<8x8xf32>, vector<8x120xf32> -> vector<8x128xf32>
    %c0_34 = arith.constant 0 : index
    %c0_35 = arith.constant 0 : index
    %74 = vector.load %arg9[%c0_34, %c0_35] : memref<8x128xf32, #tpu.memory_space<vmem>>, vector<8x128xf32>
    tpu.vector_store %arg9[%c0_34, %c0_35], %73 {strides = array<i32>} : memref<8x128xf32, #tpu.memory_space<vmem>>, vector<8x128xf32>,
    %c0_36 = arith.constant 0 : index
    %c0_37 = arith.constant 0 : index
    %75 = vector.load %arg10[%c0_36, %c0_37] : memref<8x128xf32, #tpu.memory_space<vmem>>, vector<8x128xf32>
    tpu.vector_store %arg10[%c0_36, %c0_37], %49 {strides = array<i32>} : memref<8x128xf32, #tpu.memory_space<vmem>>, vector<8x128xf32>,
    return
  }
  func.func @transform_0(%arg0: i32) -> (i32, i32, i32) {
    %c0_i32 = arith.constant 0 : i32
    %c0_i32_0 = arith.constant 0 : i32
    %c0_i32_1 = arith.constant 0 : i32
    return %arg0, %c0_i32, %c0_i32_0 : i32, i32, i32
  }
  func.func @transform_1(%arg0: i32) -> (i32, i32) {
    %c0_i32 = arith.constant 0 : i32
    %c0_i32_0 = arith.constant 0 : i32
    return %arg0, %c0_i32 : i32, i32
  }
  func.func @transform_2(%arg0: i32) -> (i32, i32) {
    %c0_i32 = arith.constant 0 : i32
    %c0_i32_0 = arith.constant 0 : i32
    %c0_i32_1 = arith.constant 0 : i32
    return %c0_i32, %c0_i32_0 : i32, i32
  }
  func.func @transform_3(%arg0: i32) -> (i32, i32) {
    %c0_i32 = arith.constant 0 : i32
    %c0_i32_0 = arith.constant 0 : i32
    %c0_i32_1 = arith.constant 0 : i32
    return %c0_i32, %c0_i32_0 : i32, i32
  }
  func.func @transform_4(%arg0: i32) -> (i32, i32) {
    %c0_i32 = arith.constant 0 : i32
    %c0_i32_0 = arith.constant 0 : i32
    %c0_i32_1 = arith.constant 0 : i32
    return %c0_i32, %c0_i32_0 : i32, i32
  }
  func.func @transform_5(%arg0: i32) -> (i32, i32) {
    %c0_i32 = arith.constant 0 : i32
    %c0_i32_0 = arith.constant 0 : i32
    %c0_i32_1 = arith.constant 0 : i32
    return %c0_i32, %c0_i32_0 : i32, i32
  }
  func.func @transform_6(%arg0: i32) -> (i32, i32) {
    %c0_i32 = arith.constant 0 : i32
    %c0_i32_0 = arith.constant 0 : i32
    %c0_i32_1 = arith.constant 0 : i32
    return %c0_i32, %c0_i32_0 : i32, i32
  }
  func.func @transform_7(%arg0: i32) -> (i32, i32) {
    %c0_i32 = arith.constant 0 : i32
    %c0_i32_0 = arith.constant 0 : i32
    %c0_i32_1 = arith.constant 0 : i32
    return %c0_i32, %c0_i32_0 : i32, i32
  }
  func.func @transform_8(%arg0: i32) -> (i32, i32) {
    %c0_i32 = arith.constant 0 : i32
    %c0_i32_0 = arith.constant 0 : i32
    return %arg0, %c0_i32 : i32, i32
  }
  func.func @transform_9(%arg0: i32) -> (i32, i32) {
    %c0_i32 = arith.constant 0 : i32
    %c0_i32_0 = arith.constant 0 : i32
    return %arg0, %c0_i32 : i32, i32
  }
}

</mosaic_0001>

<llo_original>
// kernel: tpu_custom_call.1
$region0: #{tpu_custom_call.1}
  #allocation0 [shape = 'u32[]', space=smem, size = 0x4, offset = 0x4, fixed_abs, tag = 'smem constant byte address 0x4 - core index']
  #allocation1 [shape = 'u32[144,128]{1,0:T(1,128)}', space=vmem, size = 0x12000, scoped, tag = 'internal scratch']
  %s0 = inlined_call_operand.hbm [shape: f32[16,8,32], index: 0, kind: input, shape index: {}]
  %s1 = inlined_call_operand.vmem [shape: f32[16,8], index: 1, kind: input, shape index: {}]
  %s2 = inlined_call_operand.vmem [shape: f32[32,96], index: 2, kind: input, shape index: {}]
  %s3 = inlined_call_operand.vmem [shape: f32[32,32], index: 3, kind: input, shape index: {}]
  %s4 = inlined_call_operand.hbm [shape: f32[32,128], index: 4, kind: input, shape index: {}]
  %s5 = inlined_call_operand.vmem [shape: f32[1,32], index: 5, kind: input, shape index: {}]
  %s6 = inlined_call_operand.vmem [shape: f32[32,8], index: 6, kind: input, shape index: {}]
  %s7 = inlined_call_operand.hbm [shape: f32[8,32], index: 7, kind: input, shape index: {}]
  %s8 = inlined_call_operand.hbm [shape: f32[16,128], index: 8, kind: output, shape index: {0}]
  %s9 = inlined_call_operand.hbm [shape: f32[16,128], index: 9, kind: output, shape index: {1}]
  %10 = xla_tuple %s8, %s9
  %s11 = sld [smem:[#allocation0]]
  $region85: #{tpu_custom_call.1} parent=0
    _
  %s13 = ssub.s32 1, %s11
  %s14 = scalar_select 0, %s13, %s11
  $region1: #{tpu_custom_call.1} parent=0
    #allocation2 [shape = 'u8[65536]{0}', space=vmem, size = 0x10000, scoped, tag = 'input window, operand 0']
    #allocation3 [shape = 's32[2]{0}', space=sflag, size = 0x8, scoped, tag = 'scoped memory for tpu_custom_call.1']
    #allocation4 [shape = 's32[2]{0}', space=sflag, size = 0x8, scoped, tag = 'scoped memory for tpu_custom_call.1']
    #allocation5 [shape = 'u8[16384]{0}', space=vmem, size = 0x4000, scoped, tag = 'input window, operand 4, single buffered']
    #allocation6 [shape = 's32[1]{0}', space=sflag, size = 0x4, scoped, tag = 'scoped memory for tpu_custom_call.1']
    #allocation7 [shape = 'u8[4096]{0}', space=vmem, size = 0x1000, scoped, tag = 'input window, operand 7, single buffered']
    #allocation8 [shape = 'u8[8192]{0}', space=vmem, size = 0x2000, scoped, tag = 'output window, operand 0']
    #allocation9 [shape = 'u8[8192]{0}', space=vmem, size = 0x2000, scoped, tag = 'output window, operand 1']
    #allocation10 [shape = 's32[2]{0}', space=sflag, size = 0x8, scoped, tag = 'scoped memory for tpu_custom_call.1']
    %15 = vsyncpa [#allocation3], 0
    %s16 = scalar_lea.sflag [#allocation3], 1
    %17 = vsyncpa %s16, 0
    %18 = vsyncpa [#allocation6], 0
    %19 = vsyncpa [#allocation4], 0
    %s20 = scalar_lea.sflag [#allocation4], 1
    %21 = vsyncpa %s20, 0
    %22 = vsyncpa [#allocation10], 0
    %s23 = scalar_lea.sflag [#allocation10], 1
    %24 = vsyncpa %s23, 0
    loop: start=0, step=1, limit=4
    $region2: #{tpu_custom_call.1} parent=1 // loop_pre_header
      _
    $region3: #{tpu_custom_call.1} parent=1 // loop_header
      %s26 = sphi 0, %s30
      %p27 = scmp.ge.s32.totalorder %s26, 4
      %s36 = sphi 0, %s38
      %s39 = sphi 0, %s36
      %s40 = sphi 0, %s39
      %s56 = sphi 0, %s40
      %s62 = sphi 0, %s64
      %s65 = sphi 0, %s62
      %s66 = sphi 0, %s65
      %s82 = sphi 0, %s66
      %s86 = sphi 0, %s86
      %s88 = sphi 0, %s86
      %s89 = sphi 0, %s88
      %s103 = sphi 0, %s89
      %s107 = sphi 0, %s107
      %s109 = sphi 0, %s107
      %s110 = sphi 0, %s109
      %s124 = sphi 0, %s110
      %s128 = sphi 0, %s128
      %s130 = sphi 0, %s128
      %s131 = sphi 0, %s130
      %s145 = sphi 0, %s131
      %s149 = sphi 0, %s149
      %s151 = sphi 0, %s149
      %s152 = sphi 0, %s151
      %s166 = sphi 0, %s152
      %s170 = sphi 0, %s170
      %s172 = sphi 0, %s170
      %s173 = sphi 0, %s172
      %s187 = sphi 0, %s173
      %s191 = sphi 0, %s191
      %s193 = sphi 0, %s191
      %s194 = sphi 0, %s193
      %s208 = sphi 0, %s194
      %s214 = sphi 0, %s216
      %s217 = sphi 0, %s214
      %s218 = sphi 0, %s217
      %s234 = sphi 0, %s218
      %s240 = sphi 0, %s242
      %s243 = sphi 0, %s240
      %s244 = sphi 0, %s243
      %s260 = sphi 0, %s244
    $region4: #{tpu_custom_call.1} parent=1 // loop_header_branch
      %29 = sbr.rel (%p27) target = $region8
    $region5: #{tpu_custom_call.1} parent=1 // loop_body
      %s31 = ssub.s32 %s26, 1
      %s32 = ssub.s32 %s26, 2
      %s33 = sadd.s32 %s26, 1
      %s34 = ssub.s32 %s26, %s33
      %p35 = scmp.eq.s32.totalorder %s34, 0
      %s37 = sadd.s32 %s36, 1
      %s38 = scalar_select %p35, %s36, %s37
      %p41 = pneg %p35
      %p42 = scmp.eq.s32.totalorder %s26, 1
      %p43 = por %p41, %p42
      %p44 = scmp.ne.s32.totalorder %s36, %s39
      %p45 = scmp.eq.s32.totalorder %s26, 0
      %p46 = por %p44, %p45
      %p47 = scmp.ne.s32.totalorder %s36, %s39
      %p48 = scmp.eq.s32.totalorder %s31, 1
      %p49 = por %p47, %p48
      %p50 = scmp.ne.s32.totalorder %s39, %s40
      %p51 = scmp.eq.s32.totalorder %s31, 0
      %p52 = por %p50, %p51
      %p53 = scmp.ne.s32.totalorder %s39, %s40
      %p54 = scmp.eq.s32.totalorder %s32, 1
      %p55 = por %p53, %p54
      %p57 = scmp.ne.s32.totalorder %s40, %s56
      %p58 = scmp.eq.s32.totalorder %s32, 0
      %p59 = por %p57, %p58
      %s60 = ssub.s32 %s26, %s33
      %p61 = scmp.eq.s32.totalorder %s60, 0
      %s63 = sadd.s32 %s62, 1
      %s64 = scalar_select %p61, %s62, %s63
      %p67 = pneg %p61
      %p68 = scmp.eq.s32.totalorder %s26, 1
      %p69 = por %p67, %p68
      %p70 = scmp.ne.s32.totalorder %s62, %s65
      %p71 = scmp.eq.s32.totalorder %s26, 0
      %p72 = por %p70, %p71
      %p73 = scmp.ne.s32.totalorder %s62, %s65
      %p74 = scmp.eq.s32.totalorder %s31, 1
      %p75 = por %p73, %p74
      %p76 = scmp.ne.s32.totalorder %s65, %s66
      %p77 = scmp.eq.s32.totalorder %s31, 0
      %p78 = por %p76, %p77
      %p79 = scmp.ne.s32.totalorder %s65, %s66
      %p80 = scmp.eq.s32.totalorder %s32, 1
      %p81 = por %p79, %p80
      %p83 = scmp.ne.s32.totalorder %s66, %s82
      %p84 = scmp.eq.s32.totalorder %s32, 0
      %p85 = por %p83, %p84
      %s87 = sadd.s32 %s86, 1
      %p90 = scmp.eq.s32.totalorder %s26, 1
      %p91 = scmp.ne.s32.totalorder %s86, %s88
      %p92 = scmp.eq.s32.totalorder %s26, 0
      %p93 = por %p91, %p92
      %p94 = scmp.ne.s32.totalorder %s86, %s88
      %p95 = scmp.eq.s32.totalorder %s31, 1
      %p96 = por %p94, %p95
      %p97 = scmp.ne.s32.totalorder %s88, %s89
      %p98 = scmp.eq.s32.totalorder %s31, 0
      %p99 = por %p97, %p98
      %p100 = scmp.ne.s32.totalorder %s88, %s89
      %p101 = scmp.eq.s32.totalorder %s32, 1
      %p102 = por %p100, %p101
      %p104 = scmp.ne.s32.totalorder %s89, %s103
      %p105 = scmp.eq.s32.totalorder %s32, 0
      %p106 = por %p104, %p105
      %s108 = sadd.s32 %s107, 1
      %p111 = scmp.eq.s32.totalorder %s26, 1
      %p112 = scmp.ne.s32.totalorder %s107, %s109
      %p113 = scmp.eq.s32.totalorder %s26, 0
      %p114 = por %p112, %p113
      %p115 = scmp.ne.s32.totalorder %s107, %s109
      %p116 = scmp.eq.s32.totalorder %s31, 1
      %p117 = por %p115, %p116
      %p118 = scmp.ne.s32.totalorder %s109, %s110
      %p119 = scmp.eq.s32.totalorder %s31, 0
      %p120 = por %p118, %p119
      %p121 = scmp.ne.s32.totalorder %s109, %s110
      %p122 = scmp.eq.s32.totalorder %s32, 1
      %p123 = por %p121, %p122
      %p125 = scmp.ne.s32.totalorder %s110, %s124
      %p126 = scmp.eq.s32.totalorder %s32, 0
      %p127 = por %p125, %p126
      %s129 = sadd.s32 %s128, 1
      %p132 = scmp.eq.s32.totalorder %s26, 1
      %p133 = scmp.ne.s32.totalorder %s128, %s130
      %p134 = scmp.eq.s32.totalorder %s26, 0
      %p135 = por %p133, %p134
      %p136 = scmp.ne.s32.totalorder %s128, %s130
      %p137 = scmp.eq.s32.totalorder %s31, 1
      %p138 = por %p136, %p137
      %p139 = scmp.ne.s32.totalorder %s130, %s131
      %p140 = scmp.eq.s32.totalorder %s31, 0
      %p141 = por %p139, %p140
      %p142 = scmp.ne.s32.totalorder %s130, %s131
      %p143 = scmp.eq.s32.totalorder %s32, 1
      %p144 = por %p142, %p143
      %p146 = scmp.ne.s32.totalorder %s131, %s145
      %p147 = scmp.eq.s32.totalorder %s32, 0
      %p148 = por %p146, %p147
      %s150 = sadd.s32 %s149, 1
      %p153 = scmp.eq.s32.totalorder %s26, 1
      %p154 = scmp.ne.s32.totalorder %s149, %s151
      %p155 = scmp.eq.s32.totalorder %s26, 0
      %p156 = por %p154, %p155
      %p157 = scmp.ne.s32.totalorder %s149, %s151
      %p158 = scmp.eq.s32.totalorder %s31, 1
      %p159 = por %p157, %p158
      %p160 = scmp.ne.s32.totalorder %s151, %s152
      %p161 = scmp.eq.s32.totalorder %s31, 0
      %p162 = por %p160, %p161
      %p163 = scmp.ne.s32.totalorder %s151, %s152
      %p164 = scmp.eq.s32.totalorder %s32, 1
      %p165 = por %p163, %p164
      %p167 = scmp.ne.s32.totalorder %s152, %s166
      %p168 = scmp.eq.s32.totalorder %s32, 0
      %p169 = por %p167, %p168
      %s171 = sadd.s32 %s170, 1
      %p174 = scmp.eq.s32.totalorder %s26, 1
      %p175 = scmp.ne.s32.totalorder %s170, %s172
      %p176 = scmp.eq.s32.totalorder %s26, 0
      %p177 = por %p175, %p176
      %p178 = scmp.ne.s32.totalorder %s170, %s172
      %p179 = scmp.eq.s32.totalorder %s31, 1
      %p180 = por %p178, %p179
      %p181 = scmp.ne.s32.totalorder %s172, %s173
      %p182 = scmp.eq.s32.totalorder %s31, 0
      %p183 = por %p181, %p182
      %p184 = scmp.ne.s32.totalorder %s172, %s173
      %p185 = scmp.eq.s32.totalorder %s32, 1
      %p186 = por %p184, %p185
      %p188 = scmp.ne.s32.totalorder %s173, %s187
      %p189 = scmp.eq.s32.totalorder %s32, 0
      %p190 = por %p188, %p189
      %s192 = sadd.s32 %s191, 1
      %p195 = scmp.eq.s32.totalorder %s26, 1
      %p196 = scmp.ne.s32.totalorder %s191, %s193
      %p197 = scmp.eq.s32.totalorder %s26, 0
      %p198 = por %p196, %p197
      %p199 = scmp.ne.s32.totalorder %s191, %s193
      %p200 = scmp.eq.s32.totalorder %s31, 1
      %p201 = por %p199, %p200
      %p202 = scmp.ne.s32.totalorder %s193, %s194
      %p203 = scmp.eq.s32.totalorder %s31, 0
      %p204 = por %p202, %p203
      %p205 = scmp.ne.s32.totalorder %s193, %s194
      %p206 = scmp.eq.s32.totalorder %s32, 1
      %p207 = por %p205, %p206
      %p209 = scmp.ne.s32.totalorder %s194, %s208
      %p210 = scmp.eq.s32.totalorder %s32, 0
      %p211 = por %p209, %p210
      %s212 = ssub.s32 %s26, %s33
      %p213 = scmp.eq.s32.totalorder %s212, 0
      %s215 = sadd.s32 %s214, 1
      %s216 = scalar_select %p213, %s214, %s215
      %p219 = pneg %p213
      %p220 = scmp.eq.s32.totalorder %s26, 1
      %p221 = por %p219, %p220
      %p222 = scmp.ne.s32.totalorder %s214, %s217
      %p223 = scmp.eq.s32.totalorder %s26, 0
      %p224 = por %p222, %p223
      %p225 = scmp.ne.s32.totalorder %s214, %s217
      %p226 = scmp.eq.s32.totalorder %s31, 1
      %p227 = por %p225, %p226
      %p228 = scmp.ne.s32.totalorder %s217, %s218
      %p229 = scmp.eq.s32.totalorder %s31, 0
      %p230 = por %p228, %p229
      %p231 = scmp.ne.s32.totalorder %s217, %s218
      %p232 = scmp.eq.s32.totalorder %s32, 1
      %p233 = por %p231, %p232
      %p235 = scmp.ne.s32.totalorder %s218, %s234
      %p236 = scmp.eq.s32.totalorder %s32, 0
      %p237 = por %p235, %p236
      %s238 = ssub.s32 %s26, %s33
      %p239 = scmp.eq.s32.totalorder %s238, 0
      %s241 = sadd.s32 %s240, 1
      %s242 = scalar_select %p239, %s240, %s241
      %p245 = pneg %p239
      %p246 = scmp.eq.s32.totalorder %s26, 1
      %p247 = por %p245, %p246
      %p248 = scmp.ne.s32.totalorder %s240, %s243
      %p249 = scmp.eq.s32.totalorder %s26, 0
      %p250 = por %p248, %p249
      %p251 = scmp.ne.s32.totalorder %s240, %s243
      %p252 = scmp.eq.s32.totalorder %s31, 1
      %p253 = por %p251, %p252
      %p254 = scmp.ne.s32.totalorder %s243, %s244
      %p255 = scmp.eq.s32.totalorder %s31, 0
      %p256 = por %p254, %p255
      %p257 = scmp.ne.s32.totalorder %s243, %s244
      %p258 = scmp.eq.s32.totalorder %s32, 1
      %p259 = por %p257, %p258
      %p261 = scmp.ne.s32.totalorder %s244, %s260
      %p262 = scmp.eq.s32.totalorder %s32, 0
      %p263 = por %p261, %p262
      %p264 = scmp.le.s32.totalorder 1, %s26
      %p265 = scmp.lt.s32.totalorder %s26, 3
      %p266 = pnand %p264, %p265
      %p267 = pneg %p266
      // Predicated region
      $region9: #{tpu_custom_call.1} parent=5 // pred_check
        _
      $region10: #{tpu_custom_call.1} parent=5 // pred_check_branch
        %269 = sbr.rel (%p266) target = $region12
      $region11: #{tpu_custom_call.1} parent=5 // pred_region
        %s270 = ssub.s32 %s26, 1
        // Predicated region
        $region13: #{tpu_custom_call.1} parent=11 // pred_check
          %p271 = pneg %p99
        $region14: #{tpu_custom_call.1} parent=11 // pred_check_branch
          %273 = sbr.rel (%p271) target = $region16
        $region15: #{tpu_custom_call.1} parent=11 // pred_region
          _
        $region16: #{tpu_custom_call.1} parent=11 // pred_fallthru
          _
        // Predicated region
        $region17: #{tpu_custom_call.1} parent=11 // pred_check
          %p274 = pneg %p120
        $region18: #{tpu_custom_call.1} parent=11 // pred_check_branch
          %276 = sbr.rel (%p274) target = $region20
        $region19: #{tpu_custom_call.1} parent=11 // pred_region
          _
        $region20: #{tpu_custom_call.1} parent=11 // pred_fallthru
          _
        // Predicated region
        $region21: #{tpu_custom_call.1} parent=11 // pred_check
          %p277 = pneg %p141
        $region22: #{tpu_custom_call.1} parent=11 // pred_check_branch
          %279 = sbr.rel (%p277) target = $region24
        $region23: #{tpu_custom_call.1} parent=11 // pred_region
          %s281 = ssub.s32 512, 512
          %282 = vsyncadd [#allocation6], %s281
          %s283 = sshll.u32 [#allocation5], 4
          %s284 = int_to_ptr.vmem [resolvable:$true] %s283
          %289 = dma.hbm_to_vmem [thread:$0]  %s4, 512, %s284, [#allocation6], 128, 128, 8
        $region24: #{tpu_custom_call.1} parent=11 // pred_fallthru
          _
        // Predicated region
        $region25: #{tpu_custom_call.1} parent=11 // pred_check
          %p290 = pneg %p162
        $region26: #{tpu_custom_call.1} parent=11 // pred_check_branch
          %292 = sbr.rel (%p290) target = $region28
        $region27: #{tpu_custom_call.1} parent=11 // pred_region
          _
        $region28: #{tpu_custom_call.1} parent=11 // pred_fallthru
          _
        // Predicated region
        $region29: #{tpu_custom_call.1} parent=11 // pred_check
          %p293 = pneg %p183
        $region30: #{tpu_custom_call.1} parent=11 // pred_check_branch
          %295 = sbr.rel (%p293) target = $region32
        $region31: #{tpu_custom_call.1} parent=11 // pred_region
          _
        $region32: #{tpu_custom_call.1} parent=11 // pred_fallthru
          _
        // Predicated region
        $region33: #{tpu_custom_call.1} parent=11 // pred_check
          %p296 = pneg %p204
        $region34: #{tpu_custom_call.1} parent=11 // pred_check_branch
          %298 = sbr.rel (%p296) target = $region36
        $region35: #{tpu_custom_call.1} parent=11 // pred_region
          %s300 = ssub.s32 128, 128
          %301 = vsyncadd [#allocation6], %s300
          %s303 = sshll.u32 [#allocation7], 4
          %s304 = int_to_ptr.vmem [resolvable:$true] %s303
          %306 = dma.hbm_to_vmem [thread:$0]  %s7, 128, %s304, [#allocation6]
        $region36: #{tpu_custom_call.1} parent=11 // pred_fallthru
          _
      $region12: #{tpu_custom_call.1} parent=5 // pred_fallthru
        _
      %p307 = scmp.lt.s32.totalorder %s26, 2
      // Predicated region
      $region37: #{tpu_custom_call.1} parent=5 // pred_check
        %p308 = pneg %p307
      $region38: #{tpu_custom_call.1} parent=5 // pred_check_branch
        %310 = sbr.rel (%p308) target = $region40
      $region39: #{tpu_custom_call.1} parent=5 // pred_region
        // Predicated region
        $region41: #{tpu_custom_call.1} parent=39 // pred_check
          %p311 = pneg %p46
        $region42: #{tpu_custom_call.1} parent=39 // pred_check_branch
          %313 = sbr.rel (%p311) target = $region44
        $region43: #{tpu_custom_call.1} parent=39 // pred_region
          %s314 = sand.u32 %s36, 1
          %s315 = scalar_lea.sflag [#allocation3], %s314
          %s316 = sand.u32 %s36, 1
          %s317 = smul.addr %s316, 64
          %s318 = scalar_lea.vmem [#allocation2], %s317
          %s319 = smul.u32 8, %s26
          %s321 = ssub.s32 1024, 1024
          %322 = vsyncadd %s315, %s321
          %s323 = smul.addr %s319, 128
          %s324 = scalar_lea.hbm %s0, %s323
          %s325 = sshll.u32 %s318, 4
          %s326 = int_to_ptr.vmem [resolvable:$true] %s325
          %331 = dma.hbm_to_vmem [thread:$0]  %s324, 1024, %s326, %s315, 128, 128, 8
        $region44: #{tpu_custom_call.1} parent=39 // pred_fallthru
          _
        // Predicated region
        $region45: #{tpu_custom_call.1} parent=39 // pred_check
          %p332 = pneg %p72
        $region46: #{tpu_custom_call.1} parent=39 // pred_check_branch
          %334 = sbr.rel (%p332) target = $region48
        $region47: #{tpu_custom_call.1} parent=39 // pred_region
          %p335 = scmp.lt.s32.totalorder %s26, 1
          %s336 = scalar_select %p335, %s26, 1
          %s337 = smul.addr %s336, 8
          %s338 = scalar_lea.vmem %s1, %s337
        $region48: #{tpu_custom_call.1} parent=39 // pred_fallthru
          _
      $region40: #{tpu_custom_call.1} parent=5 // pred_fallthru
        _
      %p339 = scmp.le.s32.totalorder 1, %s26
      %p340 = scmp.lt.s32.totalorder %s26, 3
      %p341 = pnand %p339, %p340
      %p342 = pneg %p341
      // Predicated region
      $region49: #{tpu_custom_call.1} parent=5 // pred_check
        _
      $region50: #{tpu_custom_call.1} parent=5 // pred_check_branch
        %344 = sbr.rel (%p341) target = $region52
      $region51: #{tpu_custom_call.1} parent=5 // pred_region
        %s345 = ssub.s32 %s26, 1
        %s346 = sand.u32 %s39, 1
        %s347 = scalar_lea.sflag [#allocation3], %s346
        %s348 = sand.u32 %s39, 1
        %s349 = smul.addr %s348, 64
        %s350 = scalar_lea.vmem [#allocation2], %s349
        // Predicated region
        $region53: #{tpu_custom_call.1} parent=51 // pred_check
          %p351 = pneg %p52
        $region54: #{tpu_custom_call.1} parent=51 // pred_check_branch
          %353 = sbr.rel (%p351) target = $region56
        $region55: #{tpu_custom_call.1} parent=51 // pred_region
          %354 = dma.done %s347, 1024
        $region56: #{tpu_custom_call.1} parent=51 // pred_fallthru
          _
        // Predicated region
        $region57: #{tpu_custom_call.1} parent=51 // pred_check
          %p355 = pneg %p141
        $region58: #{tpu_custom_call.1} parent=51 // pred_check_branch
          %357 = sbr.rel (%p355) target = $region60
        $region59: #{tpu_custom_call.1} parent=51 // pred_region
          %358 = dma.done [#allocation6], 512
        $region60: #{tpu_custom_call.1} parent=51 // pred_fallthru
          _
        // Predicated region
        $region61: #{tpu_custom_call.1} parent=51 // pred_check
          %p359 = pneg %p204
        $region62: #{tpu_custom_call.1} parent=51 // pred_check_branch
          %361 = sbr.rel (%p359) target = $region64
        $region63: #{tpu_custom_call.1} parent=51 // pred_region
          %362 = dma.done [#allocation6], 128
        $region64: #{tpu_custom_call.1} parent=51 // pred_fallthru
          _
        %s363 = sand.u32 %s39, 1
        %s364 = scalar_lea.sflag [#allocation3], %s363
        %s365 = sand.u32 %s39, 1
        %s366 = smul.addr %s365, 64
        %s367 = scalar_lea.vmem [#allocation2], %s366
        %p368 = pneg %p52
        %p369 = pneg %p49
        %p370 = scmp.lt.s32.totalorder %s31, 1
        %s371 = scalar_select %p370, %s31, 1
        %s372 = smul.addr %s371, 8
        %s373 = scalar_lea.vmem %s1, %s372
        %p374 = pneg %p78
        %p375 = pneg %p75
        %p376 = pneg %p99
        %p377 = pneg %p96
        %p378 = pneg %p120
        %p379 = pneg %p117
        %p380 = pneg %p141
        %p381 = pneg %p138
        %p382 = pneg %p162
        %p383 = pneg %p159
        %p384 = pneg %p183
        %p385 = pneg %p180
        %p386 = pneg %p204
        %p387 = pneg %p201
        %p388 = pneg %p230
        %p389 = pneg %p227
        %s390 = sand.u32 %s217, 1
        %s391 = scalar_lea.sflag [#allocation4], %s390
        %s392 = sand.u32 %s217, 1
        %s393 = smul.addr %s392, 8
        %s394 = scalar_lea.vmem [#allocation8], %s393
        %p395 = pneg %p256
        %p396 = pneg %p253
        %s397 = sand.u32 %s243, 1
        %s398 = scalar_lea.sflag [#allocation10], %s397
        %s399 = sand.u32 %s243, 1
        %s400 = smul.addr %s399, 8
        %s401 = scalar_lea.vmem [#allocation9], %s400
        %s402 = smul.u32 8, %s31
        %p403 = scmp.lt.s32.totalorder %s31, 1
        %s404 = scalar_select %p403, %s31, 1
        %s405 = smul.addr %s404, 8
        %s406 = scalar_lea.vmem %s1, %s405
        %v407 = vld [vmem:[%s350] sm:$0xff]
        %v408 = vld [vmem:[%s350 + $0x8] sm:$0xff]
        %v409 = vld [vmem:[%s350 + $0x10] sm:$0xff]
        %v410 = vld [vmem:[%s350 + $0x18] sm:$0xff]
        %v411 = vld [vmem:[%s350 + $0x20] sm:$0xff]
        %v412 = vld [vmem:[%s350 + $0x28] sm:$0xff]
        %v413 = vld [vmem:[%s350 + $0x30] sm:$0xff]
        %v414 = vld [vmem:[%s350 + $0x38] sm:$0xff]
        %v415 = vld [vmem:[%s406] sm:$0xff]
        %v416 = vld [vmem:[%s2] sm:$0xff]
        %v417 = vld [vmem:[%s2 + $0x8] sm:$0xff]
        %v418 = vld [vmem:[%s2 + $0x10] sm:$0xff]
        %v419 = vld [vmem:[%s2 + $0x18] sm:$0xff]
        %vm420 = vcmask 261120
        %v422 = vsel %vm420, %v407, 0
        %v425 = vsel %vm420, %v408, 0
        %v428 = vsel %vm420, %v409, 0
        %v431 = vsel %vm420, %v410, 0
        %v434 = vsel %vm420, %v411, 0
        %v437 = vsel %vm420, %v412, 0
        %v440 = vsel %vm420, %v413, 0
        %v443 = vsel %vm420, %v414, 0
        %445 = vmatprep.subr.mxu0 0.0
        %446 = vmatpush1.msra.mxu0 0.0
        %447 = vmatprep.subr.mxu0 0.0
        %448 = vmatpush1.msra.mxu0 0.0
        %449 = vmatprep.subr.mxu0 0.0
        %450 = vmatpush1.msra.mxu0 0.0
        %451 = vmatprep.subr.mxu0 0.0
        %452 = vmatpush1.msra.mxu0 0.0
        %453 = vmatprep.subr.mxu0 0.0
        %454 = vmatpush1.msra.mxu0 0.0
        %455 = vmatprep.subr.mxu0 0.0
        %456 = vmatpush1.msra.mxu0 0.0
        %457 = vmatprep.subr.mxu0 0.0
        %458 = vmatpush1.msra.mxu0 0.0
        %459 = vmatprep.subr.mxu0 0.0
        %460 = vmatpush1.msra.mxu0 0.0
        %461 = vmatprep.subr.mxu0 0.0
        %462 = vmatpush1.msra.mxu0 0.0
        %463 = vmatprep.subr.mxu0 0.0
        %464 = vmatpush1.msra.mxu0 0.0
        %465 = vmatprep.subr.mxu0 0.0
        %466 = vmatpush1.msra.mxu0 0.0
        %467 = vmatprep.subr.mxu0 0.0
        %468 = vmatpush1.msra.mxu0 0.0
        %469 = vmatprep.subr.mxu0 0.0
        %470 = vmatpush1.msra.mxu0 %v419
        %471 = vmatprep.subr.mxu0 0.0
        %472 = vmatpush1.msra.mxu0 %v418
        %473 = vmatprep.subr.mxu0 0.0
        %474 = vmatpush1.msra.mxu0 %v417
        %475 = vmatprep.subr.mxu0 0.0
        %476 = vmatpush1.msra.mxu0 %v416
        %477 = vmatprep.subr.mxu0 0.0
        %478 = vmatpush2.msra.mxu0 0.0
        %479 = vmatprep.subr.mxu0 0.0
        %480 = vmatpush2.msra.mxu0 0.0
        %481 = vmatprep.subr.mxu0 0.0
        %482 = vmatpush2.msra.mxu0 0.0
        %483 = vmatprep.subr.mxu0 0.0
        %484 = vmatpush2.msra.mxu0 0.0
        %485 = vmatprep.subr.mxu0 0.0
        %486 = vmatpush2.msra.mxu0 0.0
        %487 = vmatprep.subr.mxu0 0.0
        %488 = vmatpush2.msra.mxu0 0.0
        %489 = vmatprep.subr.mxu0 0.0
        %490 = vmatpush2.msra.mxu0 0.0
        %491 = vmatprep.subr.mxu0 0.0
        %492 = vmatpush2.msra.mxu0 0.0
        %493 = vmatprep.subr.mxu0 0.0
        %494 = vmatpush2.msra.mxu0 0.0
        %495 = vmatprep.subr.mxu0 0.0
        %496 = vmatpush2.msra.mxu0 0.0
        %497 = vmatprep.subr.mxu0 0.0
        %498 = vmatpush2.msra.mxu0 0.0
        %499 = vmatprep.subr.mxu0 0.0
        %500 = vmatpush2.msra.mxu0 0.0
        %501 = vmatprep.subr.mxu0 0.0
        %502 = vmatpush2.msra.mxu0 0.0
        %503 = vmatprep.subr.mxu0 0.0
        %504 = vmatpush2.msra.mxu0 0.0
        %505 = vmatprep.subr.mxu0 0.0
        %506 = vmatpush2.msra.mxu0 0.0
        %507 = vmatprep.subr.mxu0 0.0
        %508 = vmatpush2.msra.mxu0 0.0
        %509 = vmatprep.mubr.f32.mxu0 0.0
        %510 = vmatmul.mubr.f32.gmra.mxu0 %v422
        %v511 = vpop.f32.mrf.mxu0
        %v512 = vadd.f32 0.0, %v511
        %v513 = vpop.f32.mrf.mxu0
        %514 = vmatprep.mubr.f32.mxu0 0.0
        %515 = vmatmul.mubr.f32.gmra.mxu0 %v425
        %v516 = vpop.f32.mrf.mxu0
        %v517 = vadd.f32 0.0, %v516
        %v518 = vpop.f32.mrf.mxu0
        %519 = vmatprep.mubr.f32.mxu0 0.0
        %520 = vmatmul.mubr.f32.gmra.mxu0 %v428
        %v521 = vpop.f32.mrf.mxu0
        %v522 = vadd.f32 0.0, %v521
        %v523 = vpop.f32.mrf.mxu0
        %524 = vmatprep.mubr.f32.mxu0 0.0
        %525 = vmatmul.mubr.f32.gmra.mxu0 %v431
        %v526 = vpop.f32.mrf.mxu0
        %v527 = vadd.f32 0.0, %v526
        %v528 = vpop.f32.mrf.mxu0
        %529 = vmatprep.mubr.f32.mxu0 0.0
        %530 = vmatmul.mubr.f32.gmra.mxu0 %v434
        %v531 = vpop.f32.mrf.mxu0
        %v532 = vadd.f32 0.0, %v531
        %v533 = vpop.f32.mrf.mxu0
        %534 = vmatprep.mubr.f32.mxu0 0.0
        %535 = vmatmul.mubr.f32.gmra.mxu0 %v437
        %v536 = vpop.f32.mrf.mxu0
        %v537 = vadd.f32 0.0, %v536
        %v538 = vpop.f32.mrf.mxu0
        %539 = vmatprep.mubr.f32.mxu0 0.0
        %540 = vmatmul.mubr.f32.gmra.mxu0 %v440
        %v541 = vpop.f32.mrf.mxu0
        %v542 = vadd.f32 0.0, %v541
        %v543 = vpop.f32.mrf.mxu0
        %544 = vmatprep.mubr.f32.mxu0 0.0
        %545 = vmatmul.mubr.f32.gmra.mxu0 %v443
        %v546 = vpop.f32.mrf.mxu0
        %v547 = vadd.f32 0.0, %v546
        %v548 = vpop.f32.mrf.mxu0
        %549 = vdwg.mxu0
        %554 = vrot.lane.b32.xlu0 %v416, 96
        %v555 = vpop.permute.xlu0 %554
        %556 = vrot.lane.b32.xlu0 %v417, 96
        %v557 = vpop.permute.xlu0 %556
        %558 = vrot.lane.b32.xlu0 %v418, 96
        %v559 = vpop.permute.xlu0 %558
        %560 = vrot.lane.b32.xlu0 %v419, 96
        %v561 = vpop.permute.xlu0 %560
        %566 = vmatprep.subr.mxu0 0.0
        %567 = vmatpush1.msra.mxu0 0.0
        %568 = vmatprep.subr.mxu0 0.0
        %569 = vmatpush1.msra.mxu0 0.0
        %570 = vmatprep.subr.mxu0 0.0
        %571 = vmatpush1.msra.mxu0 0.0
        %572 = vmatprep.subr.mxu0 0.0
        %573 = vmatpush1.msra.mxu0 0.0
        %574 = vmatprep.subr.mxu0 0.0
        %575 = vmatpush1.msra.mxu0 0.0
        %576 = vmatprep.subr.mxu0 0.0
        %577 = vmatpush1.msra.mxu0 0.0
        %578 = vmatprep.subr.mxu0 0.0
        %579 = vmatpush1.msra.mxu0 0.0
        %580 = vmatprep.subr.mxu0 0.0
        %581 = vmatpush1.msra.mxu0 0.0
        %582 = vmatprep.subr.mxu0 0.0
        %583 = vmatpush1.msra.mxu0 0.0
        %584 = vmatprep.subr.mxu0 0.0
        %585 = vmatpush1.msra.mxu0 0.0
        %586 = vmatprep.subr.mxu0 0.0
        %587 = vmatpush1.msra.mxu0 0.0
        %588 = vmatprep.subr.mxu0 0.0
        %589 = vmatpush1.msra.mxu0 0.0
        %590 = vmatprep.subr.mxu0 0.0
        %591 = vmatpush1.msra.mxu0 %v561
        %592 = vmatprep.subr.mxu0 0.0
        %593 = vmatpush1.msra.mxu0 %v559
        %594 = vmatprep.subr.mxu0 0.0
        %595 = vmatpush1.msra.mxu0 %v557
        %596 = vmatprep.subr.mxu0 0.0
        %597 = vmatpush1.msra.mxu0 %v555
        %598 = vmatprep.subr.mxu0 0.0
        %599 = vmatpush2.msra.mxu0 0.0
        %600 = vmatprep.subr.mxu0 0.0
        %601 = vmatpush2.msra.mxu0 0.0
        %602 = vmatprep.subr.mxu0 0.0
        %603 = vmatpush2.msra.mxu0 0.0
        %604 = vmatprep.subr.mxu0 0.0
        %605 = vmatpush2.msra.mxu0 0.0
        %606 = vmatprep.subr.mxu0 0.0
        %607 = vmatpush2.msra.mxu0 0.0
        %608 = vmatprep.subr.mxu0 0.0
        %609 = vmatpush2.msra.mxu0 0.0
        %610 = vmatprep.subr.mxu0 0.0
        %611 = vmatpush2.msra.mxu0 0.0
        %612 = vmatprep.subr.mxu0 0.0
        %613 = vmatpush2.msra.mxu0 0.0
        %614 = vmatprep.subr.mxu0 0.0
        %615 = vmatpush2.msra.mxu0 0.0
        %616 = vmatprep.subr.mxu0 0.0
        %617 = vmatpush2.msra.mxu0 0.0
        %618 = vmatprep.subr.mxu0 0.0
        %619 = vmatpush2.msra.mxu0 0.0
        %620 = vmatprep.subr.mxu0 0.0
        %621 = vmatpush2.msra.mxu0 0.0
        %622 = vmatprep.subr.mxu0 0.0
        %623 = vmatpush2.msra.mxu0 0.0
        %624 = vmatprep.subr.mxu0 0.0
        %625 = vmatpush2.msra.mxu0 0.0
        %626 = vmatprep.subr.mxu0 0.0
        %627 = vmatpush2.msra.mxu0 0.0
        %628 = vmatprep.subr.mxu0 0.0
        %629 = vmatpush2.msra.mxu0 0.0
        %630 = vmatprep.mubr.f32.mxu0 0.0
        %631 = vmatmul.mubr.f32.gmra.mxu0 %v422
        %v632 = vpop.f32.mrf.mxu0
        %v633 = vadd.f32 0.0, %v632
        %v634 = vpop.f32.mrf.mxu0
        %635 = vmatprep.mubr.f32.mxu0 0.0
        %636 = vmatmul.mubr.f32.gmra.mxu0 %v425
        %v637 = vpop.f32.mrf.mxu0
        %v638 = vadd.f32 0.0, %v637
        %v639 = vpop.f32.mrf.mxu0
        %640 = vmatprep.mubr.f32.mxu0 0.0
        %641 = vmatmul.mubr.f32.gmra.mxu0 %v428
        %v642 = vpop.f32.mrf.mxu0
        %v643 = vadd.f32 0.0, %v642
        %v644 = vpop.f32.mrf.mxu0
        %645 = vmatprep.mubr.f32.mxu0 0.0
        %646 = vmatmul.mubr.f32.gmra.mxu0 %v431
        %v647 = vpop.f32.mrf.mxu0
        %v648 = vadd.f32 0.0, %v647
        %v649 = vpop.f32.mrf.mxu0
        %650 = vmatprep.mubr.f32.mxu0 0.0
        %651 = vmatmul.mubr.f32.gmra.mxu0 %v434
        %v652 = vpop.f32.mrf.mxu0
        %v653 = vadd.f32 0.0, %v652
        %v654 = vpop.f32.mrf.mxu0
        %655 = vmatprep.mubr.f32.mxu0 0.0
        %656 = vmatmul.mubr.f32.gmra.mxu0 %v437
        %v657 = vpop.f32.mrf.mxu0
        %v658 = vadd.f32 0.0, %v657
        %v659 = vpop.f32.mrf.mxu0
        %660 = vmatprep.mubr.f32.mxu0 0.0
        %661 = vmatmul.mubr.f32.gmra.mxu0 %v440
        %v662 = vpop.f32.mrf.mxu0
        %v663 = vadd.f32 0.0, %v662
        %v664 = vpop.f32.mrf.mxu0
        %665 = vmatprep.mubr.f32.mxu0 0.0
        %666 = vmatmul.mubr.f32.gmra.mxu0 %v443
        %v667 = vpop.f32.mrf.mxu0
        %v668 = vadd.f32 0.0, %v667
        %v669 = vpop.f32.mrf.mxu0
        %670 = vdwg.mxu0
        %671 = vrot.lane.b32.xlu0 %v416, 64
        %v672 = vpop.permute.xlu0 %671
        %673 = vrot.lane.b32.xlu0 %v417, 64
        %v674 = vpop.permute.xlu0 %673
        %675 = vrot.lane.b32.xlu0 %v418, 64
        %v676 = vpop.permute.xlu0 %675
        %677 = vrot.lane.b32.xlu0 %v419, 64
        %v678 = vpop.permute.xlu0 %677
        %683 = vmatprep.subr.mxu0 0.0
        %684 = vmatpush1.msra.mxu0 0.0
        %685 = vmatprep.subr.mxu0 0.0
        %686 = vmatpush1.msra.mxu0 0.0
        %687 = vmatprep.subr.mxu0 0.0
        %688 = vmatpush1.msra.mxu0 0.0
        %689 = vmatprep.subr.mxu0 0.0
        %690 = vmatpush1.msra.mxu0 0.0
        %691 = vmatprep.subr.mxu0 0.0
        %692 = vmatpush1.msra.mxu0 0.0
        %693 = vmatprep.subr.mxu0 0.0
        %694 = vmatpush1.msra.mxu0 0.0
        %695 = vmatprep.subr.mxu0 0.0
        %696 = vmatpush1.msra.mxu0 0.0
        %697 = vmatprep.subr.mxu0 0.0
        %698 = vmatpush1.msra.mxu0 0.0
        %699 = vmatprep.subr.mxu0 0.0
        %700 = vmatpush1.msra.mxu0 0.0
        %701 = vmatprep.subr.mxu0 0.0
        %702 = vmatpush1.msra.mxu0 0.0
        %703 = vmatprep.subr.mxu0 0.0
        %704 = vmatpush1.msra.mxu0 0.0
        %705 = vmatprep.subr.mxu0 0.0
        %706 = vmatpush1.msra.mxu0 0.0
        %707 = vmatprep.subr.mxu0 0.0
        %708 = vmatpush1.msra.mxu0 %v678
        %709 = vmatprep.subr.mxu0 0.0
        %710 = vmatpush1.msra.mxu0 %v676
        %711 = vmatprep.subr.mxu0 0.0
        %712 = vmatpush1.msra.mxu0 %v674
        %713 = vmatprep.subr.mxu0 0.0
        %714 = vmatpush1.msra.mxu0 %v672
        %715 = vmatprep.subr.mxu0 0.0
        %716 = vmatpush2.msra.mxu0 0.0
        %717 = vmatprep.subr.mxu0 0.0
        %718 = vmatpush2.msra.mxu0 0.0
        %719 = vmatprep.subr.mxu0 0.0
        %720 = vmatpush2.msra.mxu0 0.0
        %721 = vmatprep.subr.mxu0 0.0
        %722 = vmatpush2.msra.mxu0 0.0
        %723 = vmatprep.subr.mxu0 0.0
        %724 = vmatpush2.msra.mxu0 0.0
        %725 = vmatprep.subr.mxu0 0.0
        %726 = vmatpush2.msra.mxu0 0.0
        %727 = vmatprep.subr.mxu0 0.0
        %728 = vmatpush2.msra.mxu0 0.0
        %729 = vmatprep.subr.mxu0 0.0
        %730 = vmatpush2.msra.mxu0 0.0
        %731 = vmatprep.subr.mxu0 0.0
        %732 = vmatpush2.msra.mxu0 0.0
        %733 = vmatprep.subr.mxu0 0.0
        %734 = vmatpush2.msra.mxu0 0.0
        %735 = vmatprep.subr.mxu0 0.0
        %736 = vmatpush2.msra.mxu0 0.0
        %737 = vmatprep.subr.mxu0 0.0
        %738 = vmatpush2.msra.mxu0 0.0
        %739 = vmatprep.subr.mxu0 0.0
        %740 = vmatpush2.msra.mxu0 0.0
        %741 = vmatprep.subr.mxu0 0.0
        %742 = vmatpush2.msra.mxu0 0.0
        %743 = vmatprep.subr.mxu0 0.0
        %744 = vmatpush2.msra.mxu0 0.0
        %745 = vmatprep.subr.mxu0 0.0
        %746 = vmatpush2.msra.mxu0 0.0
        %747 = vmatprep.mubr.f32.mxu0 0.0
        %748 = vmatmul.mubr.f32.gmra.mxu0 %v422
        %v749 = vpop.f32.mrf.mxu0
        %v750 = vadd.f32 0.0, %v749
        %v751 = vpop.f32.mrf.mxu0
        %752 = vmatprep.mubr.f32.mxu0 0.0
        %753 = vmatmul.mubr.f32.gmra.mxu0 %v425
        %v754 = vpop.f32.mrf.mxu0
        %v755 = vadd.f32 0.0, %v754
        %v756 = vpop.f32.mrf.mxu0
        %757 = vmatprep.mubr.f32.mxu0 0.0
        %758 = vmatmul.mubr.f32.gmra.mxu0 %v428
        %v759 = vpop.f32.mrf.mxu0
        %v760 = vadd.f32 0.0, %v759
        %v761 = vpop.f32.mrf.mxu0
        %762 = vmatprep.mubr.f32.mxu0 0.0
        %763 = vmatmul.mubr.f32.gmra.mxu0 %v431
        %v764 = vpop.f32.mrf.mxu0
        %v765 = vadd.f32 0.0, %v764
        %v766 = vpop.f32.mrf.mxu0
        %767 = vmatprep.mubr.f32.mxu0 0.0
        %768 = vmatmul.mubr.f32.gmra.mxu0 %v434
        %v769 = vpop.f32.mrf.mxu0
        %v770 = vadd.f32 0.0, %v769
        %v771 = vpop.f32.mrf.mxu0
        %772 = vmatprep.mubr.f32.mxu0 0.0
        %773 = vmatmul.mubr.f32.gmra.mxu0 %v437
        %v774 = vpop.f32.mrf.mxu0
        %v775 = vadd.f32 0.0, %v774
        %v776 = vpop.f32.mrf.mxu0
        %777 = vmatprep.mubr.f32.mxu0 0.0
        %778 = vmatmul.mubr.f32.gmra.mxu0 %v440
        %v779 = vpop.f32.mrf.mxu0
        %v780 = vadd.f32 0.0, %v779
        %v781 = vpop.f32.mrf.mxu0
        %782 = vmatprep.mubr.f32.mxu0 0.0
        %783 = vmatmul.mubr.f32.gmra.mxu0 %v443
        %v784 = vpop.f32.mrf.mxu0
        %v785 = vadd.f32 0.0, %v784
        %v786 = vpop.f32.mrf.mxu0
        %787 = vdwg.mxu0
        %v788 = vsel %vm420, %v407, 0.0
        %v789 = vrot.slane %v788, 4
        %v790 = vadd.f32 %v788, %v789
        %v791 = vrot.slane %v790, 2
        %v792 = vadd.f32 %v790, %v791
        %v793 = vrot.slane %v792, 1
        %v794 = vadd.f32 %v792, %v793
        %v795 = vsel %vm420, %v408, 0.0
        %v796 = vrot.slane %v795, 4
        %v797 = vadd.f32 %v795, %v796
        %v798 = vrot.slane %v797, 2
        %v799 = vadd.f32 %v797, %v798
        %v800 = vrot.slane %v799, 1
        %v801 = vadd.f32 %v799, %v800
        %v802 = vsel %vm420, %v409, 0.0
        %v803 = vrot.slane %v802, 4
        %v804 = vadd.f32 %v802, %v803
        %v805 = vrot.slane %v804, 2
        %v806 = vadd.f32 %v804, %v805
        %v807 = vrot.slane %v806, 1
        %v808 = vadd.f32 %v806, %v807
        %v809 = vsel %vm420, %v410, 0.0
        %v810 = vrot.slane %v809, 4
        %v811 = vadd.f32 %v809, %v810
        %v812 = vrot.slane %v811, 2
        %v813 = vadd.f32 %v811, %v812
        %v814 = vrot.slane %v813, 1
        %v815 = vadd.f32 %v813, %v814
        %v816 = vsel %vm420, %v411, 0.0
        %v817 = vrot.slane %v816, 4
        %v818 = vadd.f32 %v816, %v817
        %v819 = vrot.slane %v818, 2
        %v820 = vadd.f32 %v818, %v819
        %v821 = vrot.slane %v820, 1
        %v822 = vadd.f32 %v820, %v821
        %v823 = vsel %vm420, %v412, 0.0
        %v824 = vrot.slane %v823, 4
        %v825 = vadd.f32 %v823, %v824
        %v826 = vrot.slane %v825, 2
        %v827 = vadd.f32 %v825, %v826
        %v828 = vrot.slane %v827, 1
        %v829 = vadd.f32 %v827, %v828
        %v830 = vsel %vm420, %v413, 0.0
        %v831 = vrot.slane %v830, 4
        %v832 = vadd.f32 %v830, %v831
        %v833 = vrot.slane %v832, 2
        %v834 = vadd.f32 %v832, %v833
        %v835 = vrot.slane %v834, 1
        %v836 = vadd.f32 %v834, %v835
        %v837 = vsel %vm420, %v414, 0.0
        %v838 = vrot.slane %v837, 4
        %v839 = vadd.f32 %v837, %v838
        %v840 = vrot.slane %v839, 2
        %v841 = vadd.f32 %v839, %v840
        %v842 = vrot.slane %v841, 1
        %v843 = vadd.f32 %v841, %v842
        %v844 = vmul.f32 %v794, 0.125
        %v845 = vmul.f32 %v801, 0.125
        %v846 = vmul.f32 %v808, 0.125
        %v847 = vmul.f32 %v815, 0.125
        %v848 = vmul.f32 %v822, 0.125
        %v849 = vmul.f32 %v829, 0.125
        %v850 = vmul.f32 %v836, 0.125
        %v851 = vmul.f32 %v843, 0.125
        %v852 = vld [vmem:[%s3] sm:$0xff]
        %v853 = vld [vmem:[%s3 + $0x8] sm:$0xff]
        %v854 = vld [vmem:[%s3 + $0x10] sm:$0xff]
        %v855 = vld [vmem:[%s3 + $0x18] sm:$0xff]
        %v856 = vld [vmem:[%s5] sm:$0x1]
        %v858 = vlaneseq
        %v859 = vshrl.u32 %v858, 7
        %v860 = vsub.s32 0, %v859
        %v861 = vrot.slane %v856, %v860
        %vm871 = vcmask 1041409
        %v872 = vsel %vm871, %v845, %v844
        %vm873 = vcmask 1042434
        %v874 = vsel %vm873, %v846, %v872
        %vm875 = vcmask 1043459
        %v876 = vsel %vm875, %v847, %v874
        %vm877 = vcmask 1044484
        %v878 = vsel %vm877, %v848, %v876
        %vm879 = vcmask 1045509
        %v880 = vsel %vm879, %v849, %v878
        %vm881 = vcmask 1046534
        %v882 = vsel %vm881, %v850, %v880
        %vm883 = vcmask 1047559
        %v884 = vsel %vm883, %v851, %v882
        %v885 = vsel %vm420, %v884, 0
        %887 = vmatprep.subr.mxu0 0.0
        %888 = vmatpush1.msra.mxu0 0.0
        %889 = vmatprep.subr.mxu0 0.0
        %890 = vmatpush1.msra.mxu0 0.0
        %891 = vmatprep.subr.mxu0 0.0
        %892 = vmatpush1.msra.mxu0 0.0
        %893 = vmatprep.subr.mxu0 0.0
        %894 = vmatpush1.msra.mxu0 0.0
        %895 = vmatprep.subr.mxu0 0.0
        %896 = vmatpush1.msra.mxu0 0.0
        %897 = vmatprep.subr.mxu0 0.0
        %898 = vmatpush1.msra.mxu0 0.0
        %899 = vmatprep.subr.mxu0 0.0
        %900 = vmatpush1.msra.mxu0 0.0
        %901 = vmatprep.subr.mxu0 0.0
        %902 = vmatpush1.msra.mxu0 0.0
        %903 = vmatprep.subr.mxu0 0.0
        %904 = vmatpush1.msra.mxu0 0.0
        %905 = vmatprep.subr.mxu0 0.0
        %906 = vmatpush1.msra.mxu0 0.0
        %907 = vmatprep.subr.mxu0 0.0
        %908 = vmatpush1.msra.mxu0 0.0
        %909 = vmatprep.subr.mxu0 0.0
        %910 = vmatpush1.msra.mxu0 0.0
        %911 = vmatprep.subr.mxu0 0.0
        %912 = vmatpush1.msra.mxu0 %v855
        %913 = vmatprep.subr.mxu0 0.0
        %914 = vmatpush1.msra.mxu0 %v854
        %915 = vmatprep.subr.mxu0 0.0
        %916 = vmatpush1.msra.mxu0 %v853
        %917 = vmatprep.subr.mxu0 0.0
        %918 = vmatpush1.msra.mxu0 %v852
        %919 = vmatprep.subr.mxu0 0.0
        %920 = vmatpush2.msra.mxu0 0.0
        %921 = vmatprep.subr.mxu0 0.0
        %922 = vmatpush2.msra.mxu0 0.0
        %923 = vmatprep.subr.mxu0 0.0
        %924 = vmatpush2.msra.mxu0 0.0
        %925 = vmatprep.subr.mxu0 0.0
        %926 = vmatpush2.msra.mxu0 0.0
        %927 = vmatprep.subr.mxu0 0.0
        %928 = vmatpush2.msra.mxu0 0.0
        %929 = vmatprep.subr.mxu0 0.0
        %930 = vmatpush2.msra.mxu0 0.0
        %931 = vmatprep.subr.mxu0 0.0
        %932 = vmatpush2.msra.mxu0 0.0
        %933 = vmatprep.subr.mxu0 0.0
        %934 = vmatpush2.msra.mxu0 0.0
        %935 = vmatprep.subr.mxu0 0.0
        %936 = vmatpush2.msra.mxu0 0.0
        %937 = vmatprep.subr.mxu0 0.0
        %938 = vmatpush2.msra.mxu0 0.0
        %939 = vmatprep.subr.mxu0 0.0
        %940 = vmatpush2.msra.mxu0 0.0
        %941 = vmatprep.subr.mxu0 0.0
        %942 = vmatpush2.msra.mxu0 0.0
        %943 = vmatprep.subr.mxu0 0.0
        %944 = vmatpush2.msra.mxu0 0.0
        %945 = vmatprep.subr.mxu0 0.0
        %946 = vmatpush2.msra.mxu0 0.0
        %947 = vmatprep.subr.mxu0 0.0
        %948 = vmatpush2.msra.mxu0 0.0
        %949 = vmatprep.subr.mxu0 0.0
        %950 = vmatpush2.msra.mxu0 0.0
        %951 = vmatprep.mubr.f32.mxu0 0.0
        %952 = vmatmul.mubr.f32.gmra.mxu0 %v885
        %v953 = vpop.f32.mrf.mxu0
        %v954 = vadd.f32 %v861, %v953
        %v955 = vpop.f32.mrf.mxu0
        %956 = vdwg.mxu0
        %v957 = vmul.f32 %v954, 0.5
        %v958 = vld [vmem:[%s6] sm:$0xff]
        %v959 = vld [vmem:[%s6 + $0x8] sm:$0xff]
        %v960 = vld [vmem:[%s6 + $0x10] sm:$0xff]
        %v961 = vld [vmem:[%s6 + $0x18] sm:$0xff]
        %v962 = vld [vmem:[#allocation7] sm:$0xff]
        %v963 = vlaneseq
        %v964 = vshrl.u32 %v963, 7
        %v965 = vsub.s32 0, %v964
        %v966 = vrot.slane %v957, %v965
        %968 = vbcast.lane.b32.xlu0 %v966, 256
        %v969 = vpop.permute.xlu0 %968
        %s971 = sor.u32 256, 8
        %972 = vbcast.lane.b32.xlu0 %v966, %s971
        %v973 = vpop.permute.xlu0 %972
        %s975 = sor.u32 256, 16
        %976 = vbcast.lane.b32.xlu0 %v966, %s975
        %v977 = vpop.permute.xlu0 %976
        %s979 = sor.u32 256, 24
        %980 = vbcast.lane.b32.xlu0 %v966, %s979
        %v981 = vpop.permute.xlu0 %980
        %v982 = vlaneseq
        %v983 = vshrl.u32 %v982, 7
        %v984 = vsub.s32 1, %v983
        %v985 = vrot.slane %v957, %v984
        %987 = vbcast.lane.b32.xlu0 %v985, 256
        %v988 = vpop.permute.xlu0 %987
        %s990 = sor.u32 256, 8
        %991 = vbcast.lane.b32.xlu0 %v985, %s990
        %v992 = vpop.permute.xlu0 %991
        %s994 = sor.u32 256, 16
        %995 = vbcast.lane.b32.xlu0 %v985, %s994
        %v996 = vpop.permute.xlu0 %995
        %s998 = sor.u32 256, 24
        %999 = vbcast.lane.b32.xlu0 %v985, %s998
        %v1000 = vpop.permute.xlu0 %999
        %v1001 = vlaneseq
        %v1002 = vshrl.u32 %v1001, 7
        %v1003 = vsub.s32 2, %v1002
        %v1004 = vrot.slane %v957, %v1003
        %1006 = vbcast.lane.b32.xlu0 %v1004, 256
        %v1007 = vpop.permute.xlu0 %1006
        %s1009 = sor.u32 256, 8
        %1010 = vbcast.lane.b32.xlu0 %v1004, %s1009
        %v1011 = vpop.permute.xlu0 %1010
        %s1013 = sor.u32 256, 16
        %1014 = vbcast.lane.b32.xlu0 %v1004, %s1013
        %v1015 = vpop.permute.xlu0 %1014
        %s1017 = sor.u32 256, 24
        %1018 = vbcast.lane.b32.xlu0 %v1004, %s1017
        %v1019 = vpop.permute.xlu0 %1018
        %v1020 = vlaneseq
        %v1021 = vshrl.u32 %v1020, 7
        %v1022 = vsub.s32 3, %v1021
        %v1023 = vrot.slane %v957, %v1022
        %1025 = vbcast.lane.b32.xlu0 %v1023, 256
        %v1026 = vpop.permute.xlu0 %1025
        %s1028 = sor.u32 256, 8
        %1029 = vbcast.lane.b32.xlu0 %v1023, %s1028
        %v1030 = vpop.permute.xlu0 %1029
        %s1032 = sor.u32 256, 16
        %1033 = vbcast.lane.b32.xlu0 %v1023, %s1032
        %v1034 = vpop.permute.xlu0 %1033
        %s1036 = sor.u32 256, 24
        %1037 = vbcast.lane.b32.xlu0 %v1023, %s1036
        %v1038 = vpop.permute.xlu0 %1037
        %v1039 = vlaneseq
        %v1040 = vshrl.u32 %v1039, 7
        %v1041 = vsub.s32 4, %v1040
        %v1042 = vrot.slane %v957, %v1041
        %1044 = vbcast.lane.b32.xlu0 %v1042, 256
        %v1045 = vpop.permute.xlu0 %1044
        %s1047 = sor.u32 256, 8
        %1048 = vbcast.lane.b32.xlu0 %v1042, %s1047
        %v1049 = vpop.permute.xlu0 %1048
        %s1051 = sor.u32 256, 16
        %1052 = vbcast.lane.b32.xlu0 %v1042, %s1051
        %v1053 = vpop.permute.xlu0 %1052
        %s1055 = sor.u32 256, 24
        %1056 = vbcast.lane.b32.xlu0 %v1042, %s1055
        %v1057 = vpop.permute.xlu0 %1056
        %v1058 = vlaneseq
        %v1059 = vshrl.u32 %v1058, 7
        %v1060 = vsub.s32 5, %v1059
        %v1061 = vrot.slane %v957, %v1060
        %1063 = vbcast.lane.b32.xlu0 %v1061, 256
        %v1064 = vpop.permute.xlu0 %1063
        %s1066 = sor.u32 256, 8
        %1067 = vbcast.lane.b32.xlu0 %v1061, %s1066
        %v1068 = vpop.permute.xlu0 %1067
        %s1070 = sor.u32 256, 16
        %1071 = vbcast.lane.b32.xlu0 %v1061, %s1070
        %v1072 = vpop.permute.xlu0 %1071
        %s1074 = sor.u32 256, 24
        %1075 = vbcast.lane.b32.xlu0 %v1061, %s1074
        %v1076 = vpop.permute.xlu0 %1075
        %v1077 = vlaneseq
        %v1078 = vshrl.u32 %v1077, 7
        %v1079 = vsub.s32 6, %v1078
        %v1080 = vrot.slane %v957, %v1079
        %1082 = vbcast.lane.b32.xlu0 %v1080, 256
        %v1083 = vpop.permute.xlu0 %1082
        %s1085 = sor.u32 256, 8
        %1086 = vbcast.lane.b32.xlu0 %v1080, %s1085
        %v1087 = vpop.permute.xlu0 %1086
        %s1089 = sor.u32 256, 16
        %1090 = vbcast.lane.b32.xlu0 %v1080, %s1089
        %v1091 = vpop.permute.xlu0 %1090
        %s1093 = sor.u32 256, 24
        %1094 = vbcast.lane.b32.xlu0 %v1080, %s1093
        %v1095 = vpop.permute.xlu0 %1094
        %v1096 = vlaneseq
        %v1097 = vshrl.u32 %v1096, 7
        %v1098 = vsub.s32 7, %v1097
        %v1099 = vrot.slane %v957, %v1098
        %1101 = vbcast.lane.b32.xlu0 %v1099, 256
        %v1102 = vpop.permute.xlu0 %1101
        %s1104 = sor.u32 256, 8
        %1105 = vbcast.lane.b32.xlu0 %v1099, %s1104
        %v1106 = vpop.permute.xlu0 %1105
        %s1108 = sor.u32 256, 16
        %1109 = vbcast.lane.b32.xlu0 %v1099, %s1108
        %v1110 = vpop.permute.xlu0 %1109
        %s1112 = sor.u32 256, 24
        %1113 = vbcast.lane.b32.xlu0 %v1099, %s1112
        %v1114 = vpop.permute.xlu0 %1113
        %v1115 = vmul.f32 %v969, %v958
        %v1116 = vmul.f32 %v973, %v959
        %v1117 = vmul.f32 %v977, %v960
        %v1118 = vmul.f32 %v981, %v961
        %v1119 = vmul.f32 %v988, %v958
        %v1120 = vmul.f32 %v992, %v959
        %v1121 = vmul.f32 %v996, %v960
        %v1122 = vmul.f32 %v1000, %v961
        %v1123 = vmul.f32 %v1007, %v958
        %v1124 = vmul.f32 %v1011, %v959
        %v1125 = vmul.f32 %v1015, %v960
        %v1126 = vmul.f32 %v1019, %v961
        %v1127 = vmul.f32 %v1026, %v958
        %v1128 = vmul.f32 %v1030, %v959
        %v1129 = vmul.f32 %v1034, %v960
        %v1130 = vmul.f32 %v1038, %v961
        %v1131 = vmul.f32 %v1045, %v958
        %v1132 = vmul.f32 %v1049, %v959
        %v1133 = vmul.f32 %v1053, %v960
        %v1134 = vmul.f32 %v1057, %v961
        %v1135 = vmul.f32 %v1064, %v958
        %v1136 = vmul.f32 %v1068, %v959
        %v1137 = vmul.f32 %v1072, %v960
        %v1138 = vmul.f32 %v1076, %v961
        %v1139 = vmul.f32 %v1083, %v958
        %v1140 = vmul.f32 %v1087, %v959
        %v1141 = vmul.f32 %v1091, %v960
        %v1142 = vmul.f32 %v1095, %v961
        %v1143 = vmul.f32 %v1102, %v958
        %v1144 = vmul.f32 %v1106, %v959
        %v1145 = vmul.f32 %v1110, %v960
        %v1146 = vmul.f32 %v1114, %v961
        %v1147 = vlaneseq
        %v1148 = vshrl.u32 %v1147, 7
        %v1149 = vsub.s32 0, %v1148
        %v1150 = vrot.slane %v415, %v1149
        %1152 = vbcast.lane.b32.xlu0 %v1150, 256
        %v1153 = vpop.permute.xlu0 %1152
        %v1154 = vlaneseq
        %v1155 = vshrl.u32 %v1154, 7
        %v1156 = vsub.s32 1, %v1155
        %v1157 = vrot.slane %v415, %v1156
        %1159 = vbcast.lane.b32.xlu0 %v1157, 256
        %v1160 = vpop.permute.xlu0 %1159
        %v1161 = vlaneseq
        %v1162 = vshrl.u32 %v1161, 7
        %v1163 = vsub.s32 2, %v1162
        %v1164 = vrot.slane %v415, %v1163
        %1166 = vbcast.lane.b32.xlu0 %v1164, 256
        %v1167 = vpop.permute.xlu0 %1166
        %v1168 = vlaneseq
        %v1169 = vshrl.u32 %v1168, 7
        %v1170 = vsub.s32 3, %v1169
        %v1171 = vrot.slane %v415, %v1170
        %1173 = vbcast.lane.b32.xlu0 %v1171, 256
        %v1174 = vpop.permute.xlu0 %1173
        %v1175 = vlaneseq
        %v1176 = vshrl.u32 %v1175, 7
        %v1177 = vsub.s32 4, %v1176
        %v1178 = vrot.slane %v415, %v1177
        %1180 = vbcast.lane.b32.xlu0 %v1178, 256
        %v1181 = vpop.permute.xlu0 %1180
        %v1182 = vlaneseq
        %v1183 = vshrl.u32 %v1182, 7
        %v1184 = vsub.s32 5, %v1183
        %v1185 = vrot.slane %v415, %v1184
        %1187 = vbcast.lane.b32.xlu0 %v1185, 256
        %v1188 = vpop.permute.xlu0 %1187
        %v1189 = vlaneseq
        %v1190 = vshrl.u32 %v1189, 7
        %v1191 = vsub.s32 6, %v1190
        %v1192 = vrot.slane %v415, %v1191
        %1194 = vbcast.lane.b32.xlu0 %v1192, 256
        %v1195 = vpop.permute.xlu0 %1194
        %v1196 = vlaneseq
        %v1197 = vshrl.u32 %v1196, 7
        %v1198 = vsub.s32 7, %v1197
        %v1199 = vrot.slane %v415, %v1198
        %1201 = vbcast.lane.b32.xlu0 %v1199, 256
        %v1202 = vpop.permute.xlu0 %1201
        %v1204 = vsel %vm420, %v512, 0
        %1206 = vmatprep.subr.mxu0 0.0
        %1207 = vmatpush1.msra.mxu0 0.0
        %1208 = vmatprep.subr.mxu0 0.0
        %1209 = vmatpush1.msra.mxu0 0.0
        %1210 = vmatprep.subr.mxu0 0.0
        %1211 = vmatpush1.msra.mxu0 0.0
        %1212 = vmatprep.subr.mxu0 0.0
        %1213 = vmatpush1.msra.mxu0 0.0
        %1214 = vmatprep.subr.mxu0 0.0
        %1215 = vmatpush1.msra.mxu0 0.0
        %1216 = vmatprep.subr.mxu0 0.0
        %1217 = vmatpush1.msra.mxu0 0.0
        %1218 = vmatprep.subr.mxu0 0.0
        %1219 = vmatpush1.msra.mxu0 0.0
        %1220 = vmatprep.subr.mxu0 0.0
        %1221 = vmatpush1.msra.mxu0 0.0
        %1222 = vmatprep.subr.mxu0 0.0
        %1223 = vmatpush1.msra.mxu0 0.0
        %1224 = vmatprep.subr.mxu0 0.0
        %1225 = vmatpush1.msra.mxu0 0.0
        %1226 = vmatprep.subr.mxu0 0.0
        %1227 = vmatpush1.msra.mxu0 0.0
        %1228 = vmatprep.subr.mxu0 0.0
        %1229 = vmatpush1.msra.mxu0 0.0
        %1230 = vmatprep.subr.mxu0 0.0
        %1231 = vmatpush1.msra.mxu0 %v1118
        %1232 = vmatprep.subr.mxu0 0.0
        %1233 = vmatpush1.msra.mxu0 %v1117
        %1234 = vmatprep.subr.mxu0 0.0
        %1235 = vmatpush1.msra.mxu0 %v1116
        %1236 = vmatprep.subr.mxu0 0.0
        %1237 = vmatpush1.msra.mxu0 %v1115
        %1238 = vmatprep.subr.mxu0 0.0
        %1239 = vmatpush2.msra.mxu0 0.0
        %1240 = vmatprep.subr.mxu0 0.0
        %1241 = vmatpush2.msra.mxu0 0.0
        %1242 = vmatprep.subr.mxu0 0.0
        %1243 = vmatpush2.msra.mxu0 0.0
        %1244 = vmatprep.subr.mxu0 0.0
        %1245 = vmatpush2.msra.mxu0 0.0
        %1246 = vmatprep.subr.mxu0 0.0
        %1247 = vmatpush2.msra.mxu0 0.0
        %1248 = vmatprep.subr.mxu0 0.0
        %1249 = vmatpush2.msra.mxu0 0.0
        %1250 = vmatprep.subr.mxu0 0.0
        %1251 = vmatpush2.msra.mxu0 0.0
        %1252 = vmatprep.subr.mxu0 0.0
        %1253 = vmatpush2.msra.mxu0 0.0
        %1254 = vmatprep.subr.mxu0 0.0
        %1255 = vmatpush2.msra.mxu0 0.0
        %1256 = vmatprep.subr.mxu0 0.0
        %1257 = vmatpush2.msra.mxu0 0.0
        %1258 = vmatprep.subr.mxu0 0.0
        %1259 = vmatpush2.msra.mxu0 0.0
        %1260 = vmatprep.subr.mxu0 0.0
        %1261 = vmatpush2.msra.mxu0 0.0
        %1262 = vmatprep.subr.mxu0 0.0
        %1263 = vmatpush2.msra.mxu0 0.0
        %1264 = vmatprep.subr.mxu0 0.0
        %1265 = vmatpush2.msra.mxu0 0.0
        %1266 = vmatprep.subr.mxu0 0.0
        %1267 = vmatpush2.msra.mxu0 0.0
        %1268 = vmatprep.subr.mxu0 0.0
        %1269 = vmatpush2.msra.mxu0 0.0
        %1270 = vmatprep.mubr.f32.mxu0 0.0
        %1271 = vmatmul.mubr.f32.gmra.mxu0 %v1204
        %v1272 = vpop.f32.mrf.mxu0
        %v1273 = vadd.f32 %v1153, %v1272
        %v1274 = vpop.f32.mrf.mxu0
        %1275 = vdwg.mxu0
        %v1277 = vsel %vm420, %v517, 0
        %1279 = vmatprep.subr.mxu0 0.0
        %1280 = vmatpush1.msra.mxu0 0.0
        %1281 = vmatprep.subr.mxu0 0.0
        %1282 = vmatpush1.msra.mxu0 0.0
        %1283 = vmatprep.subr.mxu0 0.0
        %1284 = vmatpush1.msra.mxu0 0.0
        %1285 = vmatprep.subr.mxu0 0.0
        %1286 = vmatpush1.msra.mxu0 0.0
        %1287 = vmatprep.subr.mxu0 0.0
        %1288 = vmatpush1.msra.mxu0 0.0
        %1289 = vmatprep.subr.mxu0 0.0
        %1290 = vmatpush1.msra.mxu0 0.0
        %1291 = vmatprep.subr.mxu0 0.0
        %1292 = vmatpush1.msra.mxu0 0.0
        %1293 = vmatprep.subr.mxu0 0.0
        %1294 = vmatpush1.msra.mxu0 0.0
        %1295 = vmatprep.subr.mxu0 0.0
        %1296 = vmatpush1.msra.mxu0 0.0
        %1297 = vmatprep.subr.mxu0 0.0
        %1298 = vmatpush1.msra.mxu0 0.0
        %1299 = vmatprep.subr.mxu0 0.0
        %1300 = vmatpush1.msra.mxu0 0.0
        %1301 = vmatprep.subr.mxu0 0.0
        %1302 = vmatpush1.msra.mxu0 0.0
        %1303 = vmatprep.subr.mxu0 0.0
        %1304 = vmatpush1.msra.mxu0 %v1122
        %1305 = vmatprep.subr.mxu0 0.0
        %1306 = vmatpush1.msra.mxu0 %v1121
        %1307 = vmatprep.subr.mxu0 0.0
        %1308 = vmatpush1.msra.mxu0 %v1120
        %1309 = vmatprep.subr.mxu0 0.0
        %1310 = vmatpush1.msra.mxu0 %v1119
        %1311 = vmatprep.subr.mxu0 0.0
        %1312 = vmatpush2.msra.mxu0 0.0
        %1313 = vmatprep.subr.mxu0 0.0
        %1314 = vmatpush2.msra.mxu0 0.0
        %1315 = vmatprep.subr.mxu0 0.0
        %1316 = vmatpush2.msra.mxu0 0.0
        %1317 = vmatprep.subr.mxu0 0.0
        %1318 = vmatpush2.msra.mxu0 0.0
        %1319 = vmatprep.subr.mxu0 0.0
        %1320 = vmatpush2.msra.mxu0 0.0
        %1321 = vmatprep.subr.mxu0 0.0
        %1322 = vmatpush2.msra.mxu0 0.0
        %1323 = vmatprep.subr.mxu0 0.0
        %1324 = vmatpush2.msra.mxu0 0.0
        %1325 = vmatprep.subr.mxu0 0.0
        %1326 = vmatpush2.msra.mxu0 0.0
        %1327 = vmatprep.subr.mxu0 0.0
        %1328 = vmatpush2.msra.mxu0 0.0
        %1329 = vmatprep.subr.mxu0 0.0
        %1330 = vmatpush2.msra.mxu0 0.0
        %1331 = vmatprep.subr.mxu0 0.0
        %1332 = vmatpush2.msra.mxu0 0.0
        %1333 = vmatprep.subr.mxu0 0.0
        %1334 = vmatpush2.msra.mxu0 0.0
        %1335 = vmatprep.subr.mxu0 0.0
        %1336 = vmatpush2.msra.mxu0 0.0
        %1337 = vmatprep.subr.mxu0 0.0
        %1338 = vmatpush2.msra.mxu0 0.0
        %1339 = vmatprep.subr.mxu0 0.0
        %1340 = vmatpush2.msra.mxu0 0.0
        %1341 = vmatprep.subr.mxu0 0.0
        %1342 = vmatpush2.msra.mxu0 0.0
        %1343 = vmatprep.mubr.f32.mxu0 0.0
        %1344 = vmatmul.mubr.f32.gmra.mxu0 %v1277
        %v1345 = vpop.f32.mrf.mxu0
        %v1346 = vadd.f32 %v1160, %v1345
        %v1347 = vpop.f32.mrf.mxu0
        %1348 = vdwg.mxu0
        %v1350 = vsel %vm420, %v522, 0
        %1352 = vmatprep.subr.mxu0 0.0
        %1353 = vmatpush1.msra.mxu0 0.0
        %1354 = vmatprep.subr.mxu0 0.0
        %1355 = vmatpush1.msra.mxu0 0.0
        %1356 = vmatprep.subr.mxu0 0.0
        %1357 = vmatpush1.msra.mxu0 0.0
        %1358 = vmatprep.subr.mxu0 0.0
        %1359 = vmatpush1.msra.mxu0 0.0
        %1360 = vmatprep.subr.mxu0 0.0
        %1361 = vmatpush1.msra.mxu0 0.0
        %1362 = vmatprep.subr.mxu0 0.0
        %1363 = vmatpush1.msra.mxu0 0.0
        %1364 = vmatprep.subr.mxu0 0.0
        %1365 = vmatpush1.msra.mxu0 0.0
        %1366 = vmatprep.subr.mxu0 0.0
        %1367 = vmatpush1.msra.mxu0 0.0
        %1368 = vmatprep.subr.mxu0 0.0
        %1369 = vmatpush1.msra.mxu0 0.0
        %1370 = vmatprep.subr.mxu0 0.0
        %1371 = vmatpush1.msra.mxu0 0.0
        %1372 = vmatprep.subr.mxu0 0.0
        %1373 = vmatpush1.msra.mxu0 0.0
        %1374 = vmatprep.subr.mxu0 0.0
        %1375 = vmatpush1.msra.mxu0 0.0
        %1376 = vmatprep.subr.mxu0 0.0
        %1377 = vmatpush1.msra.mxu0 %v1126
        %1378 = vmatprep.subr.mxu0 0.0
        %1379 = vmatpush1.msra.mxu0 %v1125
        %1380 = vmatprep.subr.mxu0 0.0
        %1381 = vmatpush1.msra.mxu0 %v1124
        %1382 = vmatprep.subr.mxu0 0.0
        %1383 = vmatpush1.msra.mxu0 %v1123
        %1384 = vmatprep.subr.mxu0 0.0
        %1385 = vmatpush2.msra.mxu0 0.0
        %1386 = vmatprep.subr.mxu0 0.0
        %1387 = vmatpush2.msra.mxu0 0.0
        %1388 = vmatprep.subr.mxu0 0.0
        %1389 = vmatpush2.msra.mxu0 0.0
        %1390 = vmatprep.subr.mxu0 0.0
        %1391 = vmatpush2.msra.mxu0 0.0
        %1392 = vmatprep.subr.mxu0 0.0
        %1393 = vmatpush2.msra.mxu0 0.0
        %1394 = vmatprep.subr.mxu0 0.0
        %1395 = vmatpush2.msra.mxu0 0.0
        %1396 = vmatprep.subr.mxu0 0.0
        %1397 = vmatpush2.msra.mxu0 0.0
        %1398 = vmatprep.subr.mxu0 0.0
        %1399 = vmatpush2.msra.mxu0 0.0
        %1400 = vmatprep.subr.mxu0 0.0
        %1401 = vmatpush2.msra.mxu0 0.0
        %1402 = vmatprep.subr.mxu0 0.0
        %1403 = vmatpush2.msra.mxu0 0.0
        %1404 = vmatprep.subr.mxu0 0.0
        %1405 = vmatpush2.msra.mxu0 0.0
        %1406 = vmatprep.subr.mxu0 0.0
        %1407 = vmatpush2.msra.mxu0 0.0
        %1408 = vmatprep.subr.mxu0 0.0
        %1409 = vmatpush2.msra.mxu0 0.0
        %1410 = vmatprep.subr.mxu0 0.0
        %1411 = vmatpush2.msra.mxu0 0.0
        %1412 = vmatprep.subr.mxu0 0.0
        %1413 = vmatpush2.msra.mxu0 0.0
        %1414 = vmatprep.subr.mxu0 0.0
        %1415 = vmatpush2.msra.mxu0 0.0
        %1416 = vmatprep.mubr.f32.mxu0 0.0
        %1417 = vmatmul.mubr.f32.gmra.mxu0 %v1350
        %v1418 = vpop.f32.mrf.mxu0
        %v1419 = vadd.f32 %v1167, %v1418
        %v1420 = vpop.f32.mrf.mxu0
        %1421 = vdwg.mxu0
        %v1423 = vsel %vm420, %v527, 0
        %1425 = vmatprep.subr.mxu0 0.0
        %1426 = vmatpush1.msra.mxu0 0.0
        %1427 = vmatprep.subr.mxu0 0.0
        %1428 = vmatpush1.msra.mxu0 0.0
        %1429 = vmatprep.subr.mxu0 0.0
        %1430 = vmatpush1.msra.mxu0 0.0
        %1431 = vmatprep.subr.mxu0 0.0
        %1432 = vmatpush1.msra.mxu0 0.0
        %1433 = vmatprep.subr.mxu0 0.0
        %1434 = vmatpush1.msra.mxu0 0.0
        %1435 = vmatprep.subr.mxu0 0.0
        %1436 = vmatpush1.msra.mxu0 0.0
        %1437 = vmatprep.subr.mxu0 0.0
        %1438 = vmatpush1.msra.mxu0 0.0
        %1439 = vmatprep.subr.mxu0 0.0
        %1440 = vmatpush1.msra.mxu0 0.0
        %1441 = vmatprep.subr.mxu0 0.0
        %1442 = vmatpush1.msra.mxu0 0.0
        %1443 = vmatprep.subr.mxu0 0.0
        %1444 = vmatpush1.msra.mxu0 0.0
        %1445 = vmatprep.subr.mxu0 0.0
        %1446 = vmatpush1.msra.mxu0 0.0
        %1447 = vmatprep.subr.mxu0 0.0
        %1448 = vmatpush1.msra.mxu0 0.0
        %1449 = vmatprep.subr.mxu0 0.0
        %1450 = vmatpush1.msra.mxu0 %v1130
        %1451 = vmatprep.subr.mxu0 0.0
        %1452 = vmatpush1.msra.mxu0 %v1129
        %1453 = vmatprep.subr.mxu0 0.0
        %1454 = vmatpush1.msra.mxu0 %v1128
        %1455 = vmatprep.subr.mxu0 0.0
        %1456 = vmatpush1.msra.mxu0 %v1127
        %1457 = vmatprep.subr.mxu0 0.0
        %1458 = vmatpush2.msra.mxu0 0.0
        %1459 = vmatprep.subr.mxu0 0.0
        %1460 = vmatpush2.msra.mxu0 0.0
        %1461 = vmatprep.subr.mxu0 0.0
        %1462 = vmatpush2.msra.mxu0 0.0
        %1463 = vmatprep.subr.mxu0 0.0
        %1464 = vmatpush2.msra.mxu0 0.0
        %1465 = vmatprep.subr.mxu0 0.0
        %1466 = vmatpush2.msra.mxu0 0.0
        %1467 = vmatprep.subr.mxu0 0.0
        %1468 = vmatpush2.msra.mxu0 0.0
        %1469 = vmatprep.subr.mxu0 0.0
        %1470 = vmatpush2.msra.mxu0 0.0
        %1471 = vmatprep.subr.mxu0 0.0
        %1472 = vmatpush2.msra.mxu0 0.0
        %1473 = vmatprep.subr.mxu0 0.0
        %1474 = vmatpush2.msra.mxu0 0.0
        %1475 = vmatprep.subr.mxu0 0.0
        %1476 = vmatpush2.msra.mxu0 0.0
        %1477 = vmatprep.subr.mxu0 0.0
        %1478 = vmatpush2.msra.mxu0 0.0
        %1479 = vmatprep.subr.mxu0 0.0
        %1480 = vmatpush2.msra.mxu0 0.0
        %1481 = vmatprep.subr.mxu0 0.0
        %1482 = vmatpush2.msra.mxu0 0.0
        %1483 = vmatprep.subr.mxu0 0.0
        %1484 = vmatpush2.msra.mxu0 0.0
        %1485 = vmatprep.subr.mxu0 0.0
        %1486 = vmatpush2.msra.mxu0 0.0
        %1487 = vmatprep.subr.mxu0 0.0
        %1488 = vmatpush2.msra.mxu0 0.0
        %1489 = vmatprep.mubr.f32.mxu0 0.0
        %1490 = vmatmul.mubr.f32.gmra.mxu0 %v1423
        %v1491 = vpop.f32.mrf.mxu0
        %v1492 = vadd.f32 %v1174, %v1491
        %v1493 = vpop.f32.mrf.mxu0
        %1494 = vdwg.mxu0
        %v1496 = vsel %vm420, %v532, 0
        %1498 = vmatprep.subr.mxu0 0.0
        %1499 = vmatpush1.msra.mxu0 0.0
        %1500 = vmatprep.subr.mxu0 0.0
        %1501 = vmatpush1.msra.mxu0 0.0
        %1502 = vmatprep.subr.mxu0 0.0
        %1503 = vmatpush1.msra.mxu0 0.0
        %1504 = vmatprep.subr.mxu0 0.0
        %1505 = vmatpush1.msra.mxu0 0.0
        %1506 = vmatprep.subr.mxu0 0.0
        %1507 = vmatpush1.msra.mxu0 0.0
        %1508 = vmatprep.subr.mxu0 0.0
        %1509 = vmatpush1.msra.mxu0 0.0
        %1510 = vmatprep.subr.mxu0 0.0
        %1511 = vmatpush1.msra.mxu0 0.0
        %1512 = vmatprep.subr.mxu0 0.0
        %1513 = vmatpush1.msra.mxu0 0.0
        %1514 = vmatprep.subr.mxu0 0.0
        %1515 = vmatpush1.msra.mxu0 0.0
        %1516 = vmatprep.subr.mxu0 0.0
        %1517 = vmatpush1.msra.mxu0 0.0
        %1518 = vmatprep.subr.mxu0 0.0
        %1519 = vmatpush1.msra.mxu0 0.0
        %1520 = vmatprep.subr.mxu0 0.0
        %1521 = vmatpush1.msra.mxu0 0.0
        %1522 = vmatprep.subr.mxu0 0.0
        %1523 = vmatpush1.msra.mxu0 %v1134
        %1524 = vmatprep.subr.mxu0 0.0
        %1525 = vmatpush1.msra.mxu0 %v1133
        %1526 = vmatprep.subr.mxu0 0.0
        %1527 = vmatpush1.msra.mxu0 %v1132
        %1528 = vmatprep.subr.mxu0 0.0
        %1529 = vmatpush1.msra.mxu0 %v1131
        %1530 = vmatprep.subr.mxu0 0.0
        %1531 = vmatpush2.msra.mxu0 0.0
        %1532 = vmatprep.subr.mxu0 0.0
        %1533 = vmatpush2.msra.mxu0 0.0
        %1534 = vmatprep.subr.mxu0 0.0
        %1535 = vmatpush2.msra.mxu0 0.0
        %1536 = vmatprep.subr.mxu0 0.0
        %1537 = vmatpush2.msra.mxu0 0.0
        %1538 = vmatprep.subr.mxu0 0.0
        %1539 = vmatpush2.msra.mxu0 0.0
        %1540 = vmatprep.subr.mxu0 0.0
        %1541 = vmatpush2.msra.mxu0 0.0
        %1542 = vmatprep.subr.mxu0 0.0
        %1543 = vmatpush2.msra.mxu0 0.0
        %1544 = vmatprep.subr.mxu0 0.0
        %1545 = vmatpush2.msra.mxu0 0.0
        %1546 = vmatprep.subr.mxu0 0.0
        %1547 = vmatpush2.msra.mxu0 0.0
        %1548 = vmatprep.subr.mxu0 0.0
        %1549 = vmatpush2.msra.mxu0 0.0
        %1550 = vmatprep.subr.mxu0 0.0
        %1551 = vmatpush2.msra.mxu0 0.0
        %1552 = vmatprep.subr.mxu0 0.0
        %1553 = vmatpush2.msra.mxu0 0.0
        %1554 = vmatprep.subr.mxu0 0.0
        %1555 = vmatpush2.msra.mxu0 0.0
        %1556 = vmatprep.subr.mxu0 0.0
        %1557 = vmatpush2.msra.mxu0 0.0
        %1558 = vmatprep.subr.mxu0 0.0
        %1559 = vmatpush2.msra.mxu0 0.0
        %1560 = vmatprep.subr.mxu0 0.0
        %1561 = vmatpush2.msra.mxu0 0.0
        %1562 = vmatprep.mubr.f32.mxu0 0.0
        %1563 = vmatmul.mubr.f32.gmra.mxu0 %v1496
        %v1564 = vpop.f32.mrf.mxu0
        %v1565 = vadd.f32 %v1181, %v1564
        %v1566 = vpop.f32.mrf.mxu0
        %1567 = vdwg.mxu0
        %v1569 = vsel %vm420, %v537, 0
        %1571 = vmatprep.subr.mxu0 0.0
        %1572 = vmatpush1.msra.mxu0 0.0
        %1573 = vmatprep.subr.mxu0 0.0
        %1574 = vmatpush1.msra.mxu0 0.0
        %1575 = vmatprep.subr.mxu0 0.0
        %1576 = vmatpush1.msra.mxu0 0.0
        %1577 = vmatprep.subr.mxu0 0.0
        %1578 = vmatpush1.msra.mxu0 0.0
        %1579 = vmatprep.subr.mxu0 0.0
        %1580 = vmatpush1.msra.mxu0 0.0
        %1581 = vmatprep.subr.mxu0 0.0
        %1582 = vmatpush1.msra.mxu0 0.0
        %1583 = vmatprep.subr.mxu0 0.0
        %1584 = vmatpush1.msra.mxu0 0.0
        %1585 = vmatprep.subr.mxu0 0.0
        %1586 = vmatpush1.msra.mxu0 0.0
        %1587 = vmatprep.subr.mxu0 0.0
        %1588 = vmatpush1.msra.mxu0 0.0
        %1589 = vmatprep.subr.mxu0 0.0
        %1590 = vmatpush1.msra.mxu0 0.0
        %1591 = vmatprep.subr.mxu0 0.0
        %1592 = vmatpush1.msra.mxu0 0.0
        %1593 = vmatprep.subr.mxu0 0.0
        %1594 = vmatpush1.msra.mxu0 0.0
        %1595 = vmatprep.subr.mxu0 0.0
        %1596 = vmatpush1.msra.mxu0 %v1138
        %1597 = vmatprep.subr.mxu0 0.0
        %1598 = vmatpush1.msra.mxu0 %v1137
        %1599 = vmatprep.subr.mxu0 0.0
        %1600 = vmatpush1.msra.mxu0 %v1136
        %1601 = vmatprep.subr.mxu0 0.0
        %1602 = vmatpush1.msra.mxu0 %v1135
        %1603 = vmatprep.subr.mxu0 0.0
        %1604 = vmatpush2.msra.mxu0 0.0
        %1605 = vmatprep.subr.mxu0 0.0
        %1606 = vmatpush2.msra.mxu0 0.0
        %1607 = vmatprep.subr.mxu0 0.0
        %1608 = vmatpush2.msra.mxu0 0.0
        %1609 = vmatprep.subr.mxu0 0.0
        %1610 = vmatpush2.msra.mxu0 0.0
        %1611 = vmatprep.subr.mxu0 0.0
        %1612 = vmatpush2.msra.mxu0 0.0
        %1613 = vmatprep.subr.mxu0 0.0
        %1614 = vmatpush2.msra.mxu0 0.0
        %1615 = vmatprep.subr.mxu0 0.0
        %1616 = vmatpush2.msra.mxu0 0.0
        %1617 = vmatprep.subr.mxu0 0.0
        %1618 = vmatpush2.msra.mxu0 0.0
        %1619 = vmatprep.subr.mxu0 0.0
        %1620 = vmatpush2.msra.mxu0 0.0
        %1621 = vmatprep.subr.mxu0 0.0
        %1622 = vmatpush2.msra.mxu0 0.0
        %1623 = vmatprep.subr.mxu0 0.0
        %1624 = vmatpush2.msra.mxu0 0.0
        %1625 = vmatprep.subr.mxu0 0.0
        %1626 = vmatpush2.msra.mxu0 0.0
        %1627 = vmatprep.subr.mxu0 0.0
        %1628 = vmatpush2.msra.mxu0 0.0
        %1629 = vmatprep.subr.mxu0 0.0
        %1630 = vmatpush2.msra.mxu0 0.0
        %1631 = vmatprep.subr.mxu0 0.0
        %1632 = vmatpush2.msra.mxu0 0.0
        %1633 = vmatprep.subr.mxu0 0.0
        %1634 = vmatpush2.msra.mxu0 0.0
        %1635 = vmatprep.mubr.f32.mxu0 0.0
        %1636 = vmatmul.mubr.f32.gmra.mxu0 %v1569
        %v1637 = vpop.f32.mrf.mxu0
        %v1638 = vadd.f32 %v1188, %v1637
        %v1639 = vpop.f32.mrf.mxu0
        %1640 = vdwg.mxu0
        %v1642 = vsel %vm420, %v542, 0
        %1644 = vmatprep.subr.mxu0 0.0
        %1645 = vmatpush1.msra.mxu0 0.0
        %1646 = vmatprep.subr.mxu0 0.0
        %1647 = vmatpush1.msra.mxu0 0.0
        %1648 = vmatprep.subr.mxu0 0.0
        %1649 = vmatpush1.msra.mxu0 0.0
        %1650 = vmatprep.subr.mxu0 0.0
        %1651 = vmatpush1.msra.mxu0 0.0
        %1652 = vmatprep.subr.mxu0 0.0
        %1653 = vmatpush1.msra.mxu0 0.0
        %1654 = vmatprep.subr.mxu0 0.0
        %1655 = vmatpush1.msra.mxu0 0.0
        %1656 = vmatprep.subr.mxu0 0.0
        %1657 = vmatpush1.msra.mxu0 0.0
        %1658 = vmatprep.subr.mxu0 0.0
        %1659 = vmatpush1.msra.mxu0 0.0
        %1660 = vmatprep.subr.mxu0 0.0
        %1661 = vmatpush1.msra.mxu0 0.0
        %1662 = vmatprep.subr.mxu0 0.0
        %1663 = vmatpush1.msra.mxu0 0.0
        %1664 = vmatprep.subr.mxu0 0.0
        %1665 = vmatpush1.msra.mxu0 0.0
        %1666 = vmatprep.subr.mxu0 0.0
        %1667 = vmatpush1.msra.mxu0 0.0
        %1668 = vmatprep.subr.mxu0 0.0
        %1669 = vmatpush1.msra.mxu0 %v1142
        %1670 = vmatprep.subr.mxu0 0.0
        %1671 = vmatpush1.msra.mxu0 %v1141
        %1672 = vmatprep.subr.mxu0 0.0
        %1673 = vmatpush1.msra.mxu0 %v1140
        %1674 = vmatprep.subr.mxu0 0.0
        %1675 = vmatpush1.msra.mxu0 %v1139
        %1676 = vmatprep.subr.mxu0 0.0
        %1677 = vmatpush2.msra.mxu0 0.0
        %1678 = vmatprep.subr.mxu0 0.0
        %1679 = vmatpush2.msra.mxu0 0.0
        %1680 = vmatprep.subr.mxu0 0.0
        %1681 = vmatpush2.msra.mxu0 0.0
        %1682 = vmatprep.subr.mxu0 0.0
        %1683 = vmatpush2.msra.mxu0 0.0
        %1684 = vmatprep.subr.mxu0 0.0
        %1685 = vmatpush2.msra.mxu0 0.0
        %1686 = vmatprep.subr.mxu0 0.0
        %1687 = vmatpush2.msra.mxu0 0.0
        %1688 = vmatprep.subr.mxu0 0.0
        %1689 = vmatpush2.msra.mxu0 0.0
        %1690 = vmatprep.subr.mxu0 0.0
        %1691 = vmatpush2.msra.mxu0 0.0
        %1692 = vmatprep.subr.mxu0 0.0
        %1693 = vmatpush2.msra.mxu0 0.0
        %1694 = vmatprep.subr.mxu0 0.0
        %1695 = vmatpush2.msra.mxu0 0.0
        %1696 = vmatprep.subr.mxu0 0.0
        %1697 = vmatpush2.msra.mxu0 0.0
        %1698 = vmatprep.subr.mxu0 0.0
        %1699 = vmatpush2.msra.mxu0 0.0
        %1700 = vmatprep.subr.mxu0 0.0
        %1701 = vmatpush2.msra.mxu0 0.0
        %1702 = vmatprep.subr.mxu0 0.0
        %1703 = vmatpush2.msra.mxu0 0.0
        %1704 = vmatprep.subr.mxu0 0.0
        %1705 = vmatpush2.msra.mxu0 0.0
        %1706 = vmatprep.subr.mxu0 0.0
        %1707 = vmatpush2.msra.mxu0 0.0
        %1708 = vmatprep.mubr.f32.mxu0 0.0
        %1709 = vmatmul.mubr.f32.gmra.mxu0 %v1642
        %v1710 = vpop.f32.mrf.mxu0
        %v1711 = vadd.f32 %v1195, %v1710
        %v1712 = vpop.f32.mrf.mxu0
        %1713 = vdwg.mxu0
        %v1715 = vsel %vm420, %v547, 0
        %1717 = vmatprep.subr.mxu0 0.0
        %1718 = vmatpush1.msra.mxu0 0.0
        %1719 = vmatprep.subr.mxu0 0.0
        %1720 = vmatpush1.msra.mxu0 0.0
        %1721 = vmatprep.subr.mxu0 0.0
        %1722 = vmatpush1.msra.mxu0 0.0
        %1723 = vmatprep.subr.mxu0 0.0
        %1724 = vmatpush1.msra.mxu0 0.0
        %1725 = vmatprep.subr.mxu0 0.0
        %1726 = vmatpush1.msra.mxu0 0.0
        %1727 = vmatprep.subr.mxu0 0.0
        %1728 = vmatpush1.msra.mxu0 0.0
        %1729 = vmatprep.subr.mxu0 0.0
        %1730 = vmatpush1.msra.mxu0 0.0
        %1731 = vmatprep.subr.mxu0 0.0
        %1732 = vmatpush1.msra.mxu0 0.0
        %1733 = vmatprep.subr.mxu0 0.0
        %1734 = vmatpush1.msra.mxu0 0.0
        %1735 = vmatprep.subr.mxu0 0.0
        %1736 = vmatpush1.msra.mxu0 0.0
        %1737 = vmatprep.subr.mxu0 0.0
        %1738 = vmatpush1.msra.mxu0 0.0
        %1739 = vmatprep.subr.mxu0 0.0
        %1740 = vmatpush1.msra.mxu0 0.0
        %1741 = vmatprep.subr.mxu0 0.0
        %1742 = vmatpush1.msra.mxu0 %v1146
        %1743 = vmatprep.subr.mxu0 0.0
        %1744 = vmatpush1.msra.mxu0 %v1145
        %1745 = vmatprep.subr.mxu0 0.0
        %1746 = vmatpush1.msra.mxu0 %v1144
        %1747 = vmatprep.subr.mxu0 0.0
        %1748 = vmatpush1.msra.mxu0 %v1143
        %1749 = vmatprep.subr.mxu0 0.0
        %1750 = vmatpush2.msra.mxu0 0.0
        %1751 = vmatprep.subr.mxu0 0.0
        %1752 = vmatpush2.msra.mxu0 0.0
        %1753 = vmatprep.subr.mxu0 0.0
        %1754 = vmatpush2.msra.mxu0 0.0
        %1755 = vmatprep.subr.mxu0 0.0
        %1756 = vmatpush2.msra.mxu0 0.0
        %1757 = vmatprep.subr.mxu0 0.0
        %1758 = vmatpush2.msra.mxu0 0.0
        %1759 = vmatprep.subr.mxu0 0.0
        %1760 = vmatpush2.msra.mxu0 0.0
        %1761 = vmatprep.subr.mxu0 0.0
        %1762 = vmatpush2.msra.mxu0 0.0
        %1763 = vmatprep.subr.mxu0 0.0
        %1764 = vmatpush2.msra.mxu0 0.0
        %1765 = vmatprep.subr.mxu0 0.0
        %1766 = vmatpush2.msra.mxu0 0.0
        %1767 = vmatprep.subr.mxu0 0.0
        %1768 = vmatpush2.msra.mxu0 0.0
        %1769 = vmatprep.subr.mxu0 0.0
        %1770 = vmatpush2.msra.mxu0 0.0
        %1771 = vmatprep.subr.mxu0 0.0
        %1772 = vmatpush2.msra.mxu0 0.0
        %1773 = vmatprep.subr.mxu0 0.0
        %1774 = vmatpush2.msra.mxu0 0.0
        %1775 = vmatprep.subr.mxu0 0.0
        %1776 = vmatpush2.msra.mxu0 0.0
        %1777 = vmatprep.subr.mxu0 0.0
        %1778 = vmatpush2.msra.mxu0 0.0
        %1779 = vmatprep.subr.mxu0 0.0
        %1780 = vmatpush2.msra.mxu0 0.0
        %1781 = vmatprep.mubr.f32.mxu0 0.0
        %1782 = vmatmul.mubr.f32.gmra.mxu0 %v1715
        %v1783 = vpop.f32.mrf.mxu0
        %v1784 = vadd.f32 %v1202, %v1783
        %v1785 = vpop.f32.mrf.mxu0
        %1786 = vdwg.mxu0
        %vm1787 = vcmask 64512
        %v1788 = vsel %vm1787, %v1273, -inf
        %v1789 = vrot.slane %v1788, 4
        %v1790 = vmax.f32 %v1788, %v1789
        %v1791 = vrot.slane %v1790, 2
        %v1792 = vmax.f32 %v1790, %v1791
        %v1793 = vrot.slane %v1792, 1
        %v1794 = vmax.f32 %v1792, %v1793
        %v1795 = vsel %vm1787, %v1346, -inf
        %v1796 = vrot.slane %v1795, 4
        %v1797 = vmax.f32 %v1795, %v1796
        %v1798 = vrot.slane %v1797, 2
        %v1799 = vmax.f32 %v1797, %v1798
        %v1800 = vrot.slane %v1799, 1
        %v1801 = vmax.f32 %v1799, %v1800
        %v1802 = vsel %vm1787, %v1419, -inf
        %v1803 = vrot.slane %v1802, 4
        %v1804 = vmax.f32 %v1802, %v1803
        %v1805 = vrot.slane %v1804, 2
        %v1806 = vmax.f32 %v1804, %v1805
        %v1807 = vrot.slane %v1806, 1
        %v1808 = vmax.f32 %v1806, %v1807
        %v1809 = vsel %vm1787, %v1492, -inf
        %v1810 = vrot.slane %v1809, 4
        %v1811 = vmax.f32 %v1809, %v1810
        %v1812 = vrot.slane %v1811, 2
        %v1813 = vmax.f32 %v1811, %v1812
        %v1814 = vrot.slane %v1813, 1
        %v1815 = vmax.f32 %v1813, %v1814
        %v1816 = vsel %vm1787, %v1565, -inf
        %v1817 = vrot.slane %v1816, 4
        %v1818 = vmax.f32 %v1816, %v1817
        %v1819 = vrot.slane %v1818, 2
        %v1820 = vmax.f32 %v1818, %v1819
        %v1821 = vrot.slane %v1820, 1
        %v1822 = vmax.f32 %v1820, %v1821
        %v1823 = vsel %vm1787, %v1638, -inf
        %v1824 = vrot.slane %v1823, 4
        %v1825 = vmax.f32 %v1823, %v1824
        %v1826 = vrot.slane %v1825, 2
        %v1827 = vmax.f32 %v1825, %v1826
        %v1828 = vrot.slane %v1827, 1
        %v1829 = vmax.f32 %v1827, %v1828
        %v1830 = vsel %vm1787, %v1711, -inf
        %v1831 = vrot.slane %v1830, 4
        %v1832 = vmax.f32 %v1830, %v1831
        %v1833 = vrot.slane %v1832, 2
        %v1834 = vmax.f32 %v1832, %v1833
        %v1835 = vrot.slane %v1834, 1
        %v1836 = vmax.f32 %v1834, %v1835
        %v1837 = vsel %vm1787, %v1784, -inf
        %v1838 = vrot.slane %v1837, 4
        %v1839 = vmax.f32 %v1837, %v1838
        %v1840 = vrot.slane %v1839, 2
        %v1841 = vmax.f32 %v1839, %v1840
        %v1842 = vrot.slane %v1841, 1
        %v1843 = vmax.f32 %v1841, %v1842
        %v1844 = vsub.f32 %v1273, %v1794
        %v1845 = vsub.f32 %v1346, %v1801
        %v1846 = vsub.f32 %v1419, %v1808
        %v1847 = vsub.f32 %v1492, %v1815
        %v1848 = vsub.f32 %v1565, %v1822
        %v1849 = vsub.f32 %v1638, %v1829
        %v1850 = vsub.f32 %v1711, %v1836
        %v1851 = vsub.f32 %v1784, %v1843
        %v1852 = vmul.f32 %v1844, 1.442695
        %v1853 = vpow.pop %v1852
        %v1854 = vmul.f32 %v1845, 1.442695
        %v1855 = vpow.pop %v1854
        %v1856 = vmul.f32 %v1846, 1.442695
        %v1857 = vpow.pop %v1856
        %v1858 = vmul.f32 %v1847, 1.442695
        %v1859 = vpow.pop %v1858
        %v1860 = vmul.f32 %v1848, 1.442695
        %v1861 = vpow.pop %v1860
        %v1862 = vmul.f32 %v1849, 1.442695
        %v1863 = vpow.pop %v1862
        %v1864 = vmul.f32 %v1850, 1.442695
        %v1865 = vpow.pop %v1864
        %v1866 = vmul.f32 %v1851, 1.442695
        %v1867 = vpow.pop %v1866
        %v1868 = vsel %vm1787, %v1853, 0.0
        %v1869 = vrot.slane %v1868, 4
        %v1870 = vadd.f32 %v1868, %v1869
        %v1871 = vrot.slane %v1870, 2
        %v1872 = vadd.f32 %v1870, %v1871
        %v1873 = vrot.slane %v1872, 1
        %v1874 = vadd.f32 %v1872, %v1873
        %v1875 = vsel %vm1787, %v1855, 0.0
        %v1876 = vrot.slane %v1875, 4
        %v1877 = vadd.f32 %v1875, %v1876
        %v1878 = vrot.slane %v1877, 2
        %v1879 = vadd.f32 %v1877, %v1878
        %v1880 = vrot.slane %v1879, 1
        %v1881 = vadd.f32 %v1879, %v1880
        %v1882 = vsel %vm1787, %v1857, 0.0
        %v1883 = vrot.slane %v1882, 4
        %v1884 = vadd.f32 %v1882, %v1883
        %v1885 = vrot.slane %v1884, 2
        %v1886 = vadd.f32 %v1884, %v1885
        %v1887 = vrot.slane %v1886, 1
        %v1888 = vadd.f32 %v1886, %v1887
        %v1889 = vsel %vm1787, %v1859, 0.0
        %v1890 = vrot.slane %v1889, 4
        %v1891 = vadd.f32 %v1889, %v1890
        %v1892 = vrot.slane %v1891, 2
        %v1893 = vadd.f32 %v1891, %v1892
        %v1894 = vrot.slane %v1893, 1
        %v1895 = vadd.f32 %v1893, %v1894
        %v1896 = vsel %vm1787, %v1861, 0.0
        %v1897 = vrot.slane %v1896, 4
        %v1898 = vadd.f32 %v1896, %v1897
        %v1899 = vrot.slane %v1898, 2
        %v1900 = vadd.f32 %v1898, %v1899
        %v1901 = vrot.slane %v1900, 1
        %v1902 = vadd.f32 %v1900, %v1901
        %v1903 = vsel %vm1787, %v1863, 0.0
        %v1904 = vrot.slane %v1903, 4
        %v1905 = vadd.f32 %v1903, %v1904
        %v1906 = vrot.slane %v1905, 2
        %v1907 = vadd.f32 %v1905, %v1906
        %v1908 = vrot.slane %v1907, 1
        %v1909 = vadd.f32 %v1907, %v1908
        %v1910 = vsel %vm1787, %v1865, 0.0
        %v1911 = vrot.slane %v1910, 4
        %v1912 = vadd.f32 %v1910, %v1911
        %v1913 = vrot.slane %v1912, 2
        %v1914 = vadd.f32 %v1912, %v1913
        %v1915 = vrot.slane %v1914, 1
        %v1916 = vadd.f32 %v1914, %v1915
        %v1917 = vsel %vm1787, %v1867, 0.0
        %v1918 = vrot.slane %v1917, 4
        %v1919 = vadd.f32 %v1917, %v1918
        %v1920 = vrot.slane %v1919, 2
        %v1921 = vadd.f32 %v1919, %v1920
        %v1922 = vrot.slane %v1921, 1
        %v1923 = vadd.f32 %v1921, %v1922
        %v1924 = vrcp.pop %v1874
        %v1925 = vmul.f32 %v1853, %v1924
        %v1926 = vrcp.pop %v1881
        %v1927 = vmul.f32 %v1855, %v1926
        %v1928 = vrcp.pop %v1888
        %v1929 = vmul.f32 %v1857, %v1928
        %v1930 = vrcp.pop %v1895
        %v1931 = vmul.f32 %v1859, %v1930
        %v1932 = vrcp.pop %v1902
        %v1933 = vmul.f32 %v1861, %v1932
        %v1934 = vrcp.pop %v1909
        %v1935 = vmul.f32 %v1863, %v1934
        %v1936 = vrcp.pop %v1916
        %v1937 = vmul.f32 %v1865, %v1936
        %v1938 = vrcp.pop %v1923
        %v1939 = vmul.f32 %v1867, %v1938
        %1940 = vxpose.xlu0.b32.start [1/16] %v1925, 128
        %1941 = vxpose.xlu0.b32.cont [2/16] 0.0, 128
        %1942 = vxpose.xlu0.b32.cont [3/16] 0.0, 128
        %1943 = vxpose.xlu0.b32.cont [4/16] 0.0, 128
        %1944 = vxpose.xlu0.b32.cont [5/16] 0.0, 128
        %1945 = vxpose.xlu0.b32.cont [6/16] 0.0, 128
        %1946 = vxpose.xlu0.b32.cont [7/16] 0.0, 128
        %1947 = vxpose.xlu0.b32.cont [8/16] 0.0, 128
        %1948 = vxpose.xlu0.b32.cont [9/16] 0.0, 128
        %1949 = vxpose.xlu0.b32.cont [10/16] 0.0, 128
        %1950 = vxpose.xlu0.b32.cont [11/16] 0.0, 128
        %1951 = vxpose.xlu0.b32.cont [12/16] 0.0, 128
        %1952 = vxpose.xlu0.b32.cont [13/16] 0.0, 128
        %1953 = vxpose.xlu0.b32.cont [14/16] 0.0, 128
        %1954 = vxpose.xlu0.b32.cont [15/16] 0.0, 128
        %1955 = vxpose.xlu0.b32.end [16/16] 0.0, 128
        %v1956 = vpop.trf.xlu0
        %v1957 = vpop.trf.xlu0
        %v1958 = vpop.trf.xlu0
        %v1959 = vpop.trf.xlu0
        %v1960 = vpop.trf.xlu0
        %v1961 = vpop.trf.xlu0
        %v1962 = vpop.trf.xlu0
        %v1963 = vpop.trf.xlu0
        %v1964 = vpop.trf.xlu0
        %v1965 = vpop.trf.xlu0
        %v1966 = vpop.trf.xlu0
        %v1967 = vpop.trf.xlu0
        %v1968 = vpop.trf.xlu0
        %v1969 = vpop.trf.xlu0
        %v1970 = vpop.trf.xlu0
        %v1971 = vpop.trf.xlu0
        %v1973 = vsel %vm1787, %v1956, 0
        %1975 = vmatprep.subr.mxu0 0.0
        %1976 = vmatpush1.msra.mxu0 0.0
        %1977 = vmatprep.subr.mxu0 0.0
        %1978 = vmatpush1.msra.mxu0 0.0
        %1979 = vmatprep.subr.mxu0 0.0
        %1980 = vmatpush1.msra.mxu0 0.0
        %1981 = vmatprep.subr.mxu0 0.0
        %1982 = vmatpush1.msra.mxu0 0.0
        %1983 = vmatprep.subr.mxu0 0.0
        %1984 = vmatpush1.msra.mxu0 0.0
        %1985 = vmatprep.subr.mxu0 0.0
        %1986 = vmatpush1.msra.mxu0 0.0
        %1987 = vmatprep.subr.mxu0 0.0
        %1988 = vmatpush1.msra.mxu0 0.0
        %1989 = vmatprep.subr.mxu0 0.0
        %1990 = vmatpush1.msra.mxu0 0.0
        %1991 = vmatprep.subr.mxu0 0.0
        %1992 = vmatpush1.msra.mxu0 0.0
        %1993 = vmatprep.subr.mxu0 0.0
        %1994 = vmatpush1.msra.mxu0 0.0
        %1995 = vmatprep.subr.mxu0 0.0
        %1996 = vmatpush1.msra.mxu0 0.0
        %1997 = vmatprep.subr.mxu0 0.0
        %1998 = vmatpush1.msra.mxu0 0.0
        %1999 = vmatprep.subr.mxu0 0.0
        %2000 = vmatpush1.msra.mxu0 0.0
        %2001 = vmatprep.subr.mxu0 0.0
        %2002 = vmatpush1.msra.mxu0 0.0
        %2003 = vmatprep.subr.mxu0 0.0
        %2004 = vmatpush1.msra.mxu0 0.0
        %2005 = vmatprep.subr.mxu0 0.0
        %2006 = vmatpush1.msra.mxu0 %v633
        %2007 = vmatprep.subr.mxu0 0.0
        %2008 = vmatpush2.msra.mxu0 0.0
        %2009 = vmatprep.subr.mxu0 0.0
        %2010 = vmatpush2.msra.mxu0 0.0
        %2011 = vmatprep.subr.mxu0 0.0
        %2012 = vmatpush2.msra.mxu0 0.0
        %2013 = vmatprep.subr.mxu0 0.0
        %2014 = vmatpush2.msra.mxu0 0.0
        %2015 = vmatprep.subr.mxu0 0.0
        %2016 = vmatpush2.msra.mxu0 0.0
        %2017 = vmatprep.subr.mxu0 0.0
        %2018 = vmatpush2.msra.mxu0 0.0
        %2019 = vmatprep.subr.mxu0 0.0
        %2020 = vmatpush2.msra.mxu0 0.0
        %2021 = vmatprep.subr.mxu0 0.0
        %2022 = vmatpush2.msra.mxu0 0.0
        %2023 = vmatprep.subr.mxu0 0.0
        %2024 = vmatpush2.msra.mxu0 0.0
        %2025 = vmatprep.subr.mxu0 0.0
        %2026 = vmatpush2.msra.mxu0 0.0
        %2027 = vmatprep.subr.mxu0 0.0
        %2028 = vmatpush2.msra.mxu0 0.0
        %2029 = vmatprep.subr.mxu0 0.0
        %2030 = vmatpush2.msra.mxu0 0.0
        %2031 = vmatprep.subr.mxu0 0.0
        %2032 = vmatpush2.msra.mxu0 0.0
        %2033 = vmatprep.subr.mxu0 0.0
        %2034 = vmatpush2.msra.mxu0 0.0
        %2035 = vmatprep.subr.mxu0 0.0
        %2036 = vmatpush2.msra.mxu0 0.0
        %2037 = vmatprep.subr.mxu0 0.0
        %2038 = vmatpush2.msra.mxu0 0.0
        %2039 = vmatprep.mubr.f32.mxu0 0.0
        %2040 = vmatmul.mubr.f32.gmra.mxu0 %v1973
        %v2041 = vpop.f32.mrf.mxu0
        %v2042 = vadd.f32 0.0, %v2041
        %v2043 = vpop.f32.mrf.mxu0
        %2044 = vdwg.mxu0
        %2045 = vxpose.xlu0.b32.start [1/16] %v1927, 128
        %2046 = vxpose.xlu0.b32.cont [2/16] 0.0, 128
        %2047 = vxpose.xlu0.b32.cont [3/16] 0.0, 128
        %2048 = vxpose.xlu0.b32.cont [4/16] 0.0, 128
        %2049 = vxpose.xlu0.b32.cont [5/16] 0.0, 128
        %2050 = vxpose.xlu0.b32.cont [6/16] 0.0, 128
        %2051 = vxpose.xlu0.b32.cont [7/16] 0.0, 128
        %2052 = vxpose.xlu0.b32.cont [8/16] 0.0, 128
        %2053 = vxpose.xlu0.b32.cont [9/16] 0.0, 128
        %2054 = vxpose.xlu0.b32.cont [10/16] 0.0, 128
        %2055 = vxpose.xlu0.b32.cont [11/16] 0.0, 128
        %2056 = vxpose.xlu0.b32.cont [12/16] 0.0, 128
        %2057 = vxpose.xlu0.b32.cont [13/16] 0.0, 128
        %2058 = vxpose.xlu0.b32.cont [14/16] 0.0, 128
        %2059 = vxpose.xlu0.b32.cont [15/16] 0.0, 128
        %2060 = vxpose.xlu0.b32.end [16/16] 0.0, 128
        %v2061 = vpop.trf.xlu0
        %v2062 = vpop.trf.xlu0
        %v2063 = vpop.trf.xlu0
        %v2064 = vpop.trf.xlu0
        %v2065 = vpop.trf.xlu0
        %v2066 = vpop.trf.xlu0
        %v2067 = vpop.trf.xlu0
        %v2068 = vpop.trf.xlu0
        %v2069 = vpop.trf.xlu0
        %v2070 = vpop.trf.xlu0
        %v2071 = vpop.trf.xlu0
        %v2072 = vpop.trf.xlu0
        %v2073 = vpop.trf.xlu0
        %v2074 = vpop.trf.xlu0
        %v2075 = vpop.trf.xlu0
        %v2076 = vpop.trf.xlu0
        %v2078 = vsel %vm1787, %v2061, 0
        %2080 = vmatprep.subr.mxu0 0.0
        %2081 = vmatpush1.msra.mxu0 0.0
        %2082 = vmatprep.subr.mxu0 0.0
        %2083 = vmatpush1.msra.mxu0 0.0
        %2084 = vmatprep.subr.mxu0 0.0
        %2085 = vmatpush1.msra.mxu0 0.0
        %2086 = vmatprep.subr.mxu0 0.0
        %2087 = vmatpush1.msra.mxu0 0.0
        %2088 = vmatprep.subr.mxu0 0.0
        %2089 = vmatpush1.msra.mxu0 0.0
        %2090 = vmatprep.subr.mxu0 0.0
        %2091 = vmatpush1.msra.mxu0 0.0
        %2092 = vmatprep.subr.mxu0 0.0
        %2093 = vmatpush1.msra.mxu0 0.0
        %2094 = vmatprep.subr.mxu0 0.0
        %2095 = vmatpush1.msra.mxu0 0.0
        %2096 = vmatprep.subr.mxu0 0.0
        %2097 = vmatpush1.msra.mxu0 0.0
        %2098 = vmatprep.subr.mxu0 0.0
        %2099 = vmatpush1.msra.mxu0 0.0
        %2100 = vmatprep.subr.mxu0 0.0
        %2101 = vmatpush1.msra.mxu0 0.0
        %2102 = vmatprep.subr.mxu0 0.0
        %2103 = vmatpush1.msra.mxu0 0.0
        %2104 = vmatprep.subr.mxu0 0.0
        %2105 = vmatpush1.msra.mxu0 0.0
        %2106 = vmatprep.subr.mxu0 0.0
        %2107 = vmatpush1.msra.mxu0 0.0
        %2108 = vmatprep.subr.mxu0 0.0
        %2109 = vmatpush1.msra.mxu0 0.0
        %2110 = vmatprep.subr.mxu0 0.0
        %2111 = vmatpush1.msra.mxu0 %v638
        %2112 = vmatprep.subr.mxu0 0.0
        %2113 = vmatpush2.msra.mxu0 0.0
        %2114 = vmatprep.subr.mxu0 0.0
        %2115 = vmatpush2.msra.mxu0 0.0
        %2116 = vmatprep.subr.mxu0 0.0
        %2117 = vmatpush2.msra.mxu0 0.0
        %2118 = vmatprep.subr.mxu0 0.0
        %2119 = vmatpush2.msra.mxu0 0.0
        %2120 = vmatprep.subr.mxu0 0.0
        %2121 = vmatpush2.msra.mxu0 0.0
        %2122 = vmatprep.subr.mxu0 0.0
        %2123 = vmatpush2.msra.mxu0 0.0
        %2124 = vmatprep.subr.mxu0 0.0
        %2125 = vmatpush2.msra.mxu0 0.0
        %2126 = vmatprep.subr.mxu0 0.0
        %2127 = vmatpush2.msra.mxu0 0.0
        %2128 = vmatprep.subr.mxu0 0.0
        %2129 = vmatpush2.msra.mxu0 0.0
        %2130 = vmatprep.subr.mxu0 0.0
        %2131 = vmatpush2.msra.mxu0 0.0
        %2132 = vmatprep.subr.mxu0 0.0
        %2133 = vmatpush2.msra.mxu0 0.0
        %2134 = vmatprep.subr.mxu0 0.0
        %2135 = vmatpush2.msra.mxu0 0.0
        %2136 = vmatprep.subr.mxu0 0.0
        %2137 = vmatpush2.msra.mxu0 0.0
        %2138 = vmatprep.subr.mxu0 0.0
        %2139 = vmatpush2.msra.mxu0 0.0
        %2140 = vmatprep.subr.mxu0 0.0
        %2141 = vmatpush2.msra.mxu0 0.0
        %2142 = vmatprep.subr.mxu0 0.0
        %2143 = vmatpush2.msra.mxu0 0.0
        %2144 = vmatprep.mubr.f32.mxu0 0.0
        %2145 = vmatmul.mubr.f32.gmra.mxu0 %v2078
        %v2146 = vpop.f32.mrf.mxu0
        %v2147 = vadd.f32 0.0, %v2146
        %v2148 = vpop.f32.mrf.mxu0
        %2149 = vdwg.mxu0
        %2150 = vxpose.xlu0.b32.start [1/16] %v1929, 128
        %2151 = vxpose.xlu0.b32.cont [2/16] 0.0, 128
        %2152 = vxpose.xlu0.b32.cont [3/16] 0.0, 128
        %2153 = vxpose.xlu0.b32.cont [4/16] 0.0, 128
        %2154 = vxpose.xlu0.b32.cont [5/16] 0.0, 128
        %2155 = vxpose.xlu0.b32.cont [6/16] 0.0, 128
        %2156 = vxpose.xlu0.b32.cont [7/16] 0.0, 128
        %2157 = vxpose.xlu0.b32.cont [8/16] 0.0, 128
        %2158 = vxpose.xlu0.b32.cont [9/16] 0.0, 128
        %2159 = vxpose.xlu0.b32.cont [10/16] 0.0, 128
        %2160 = vxpose.xlu0.b32.cont [11/16] 0.0, 128
        %2161 = vxpose.xlu0.b32.cont [12/16] 0.0, 128
        %2162 = vxpose.xlu0.b32.cont [13/16] 0.0, 128
        %2163 = vxpose.xlu0.b32.cont [14/16] 0.0, 128
        %2164 = vxpose.xlu0.b32.cont [15/16] 0.0, 128
        %2165 = vxpose.xlu0.b32.end [16/16] 0.0, 128
        %v2166 = vpop.trf.xlu0
        %v2167 = vpop.trf.xlu0
        %v2168 = vpop.trf.xlu0
        %v2169 = vpop.trf.xlu0
        %v2170 = vpop.trf.xlu0
        %v2171 = vpop.trf.xlu0
        %v2172 = vpop.trf.xlu0
        %v2173 = vpop.trf.xlu0
        %v2174 = vpop.trf.xlu0
        %v2175 = vpop.trf.xlu0
        %v2176 = vpop.trf.xlu0
        %v2177 = vpop.trf.xlu0
        %v2178 = vpop.trf.xlu0
        %v2179 = vpop.trf.xlu0
        %v2180 = vpop.trf.xlu0
        %v2181 = vpop.trf.xlu0
        %v2183 = vsel %vm1787, %v2166, 0
        %2185 = vmatprep.subr.mxu0 0.0
        %2186 = vmatpush1.msra.mxu0 0.0
        %2187 = vmatprep.subr.mxu0 0.0
        %2188 = vmatpush1.msra.mxu0 0.0
        %2189 = vmatprep.subr.mxu0 0.0
        %2190 = vmatpush1.msra.mxu0 0.0
        %2191 = vmatprep.subr.mxu0 0.0
        %2192 = vmatpush1.msra.mxu0 0.0
        %2193 = vmatprep.subr.mxu0 0.0
        %2194 = vmatpush1.msra.mxu0 0.0
        %2195 = vmatprep.subr.mxu0 0.0
        %2196 = vmatpush1.msra.mxu0 0.0
        %2197 = vmatprep.subr.mxu0 0.0
        %2198 = vmatpush1.msra.mxu0 0.0
        %2199 = vmatprep.subr.mxu0 0.0
        %2200 = vmatpush1.msra.mxu0 0.0
        %2201 = vmatprep.subr.mxu0 0.0
        %2202 = vmatpush1.msra.mxu0 0.0
        %2203 = vmatprep.subr.mxu0 0.0
        %2204 = vmatpush1.msra.mxu0 0.0
        %2205 = vmatprep.subr.mxu0 0.0
        %2206 = vmatpush1.msra.mxu0 0.0
        %2207 = vmatprep.subr.mxu0 0.0
        %2208 = vmatpush1.msra.mxu0 0.0
        %2209 = vmatprep.subr.mxu0 0.0
        %2210 = vmatpush1.msra.mxu0 0.0
        %2211 = vmatprep.subr.mxu0 0.0
        %2212 = vmatpush1.msra.mxu0 0.0
        %2213 = vmatprep.subr.mxu0 0.0
        %2214 = vmatpush1.msra.mxu0 0.0
        %2215 = vmatprep.subr.mxu0 0.0
        %2216 = vmatpush1.msra.mxu0 %v643
        %2217 = vmatprep.subr.mxu0 0.0
        %2218 = vmatpush2.msra.mxu0 0.0
        %2219 = vmatprep.subr.mxu0 0.0
        %2220 = vmatpush2.msra.mxu0 0.0
        %2221 = vmatprep.subr.mxu0 0.0
        %2222 = vmatpush2.msra.mxu0 0.0
        %2223 = vmatprep.subr.mxu0 0.0
        %2224 = vmatpush2.msra.mxu0 0.0
        %2225 = vmatprep.subr.mxu0 0.0
        %2226 = vmatpush2.msra.mxu0 0.0
        %2227 = vmatprep.subr.mxu0 0.0
        %2228 = vmatpush2.msra.mxu0 0.0
        %2229 = vmatprep.subr.mxu0 0.0
        %2230 = vmatpush2.msra.mxu0 0.0
        %2231 = vmatprep.subr.mxu0 0.0
        %2232 = vmatpush2.msra.mxu0 0.0
        %2233 = vmatprep.subr.mxu0 0.0
        %2234 = vmatpush2.msra.mxu0 0.0
        %2235 = vmatprep.subr.mxu0 0.0
        %2236 = vmatpush2.msra.mxu0 0.0
        %2237 = vmatprep.subr.mxu0 0.0
        %2238 = vmatpush2.msra.mxu0 0.0
        %2239 = vmatprep.subr.mxu0 0.0
        %2240 = vmatpush2.msra.mxu0 0.0
        %2241 = vmatprep.subr.mxu0 0.0
        %2242 = vmatpush2.msra.mxu0 0.0
        %2243 = vmatprep.subr.mxu0 0.0
        %2244 = vmatpush2.msra.mxu0 0.0
        %2245 = vmatprep.subr.mxu0 0.0
        %2246 = vmatpush2.msra.mxu0 0.0
        %2247 = vmatprep.subr.mxu0 0.0
        %2248 = vmatpush2.msra.mxu0 0.0
        %2249 = vmatprep.mubr.f32.mxu0 0.0
        %2250 = vmatmul.mubr.f32.gmra.mxu0 %v2183
        %v2251 = vpop.f32.mrf.mxu0
        %v2252 = vadd.f32 0.0, %v2251
        %v2253 = vpop.f32.mrf.mxu0
        %2254 = vdwg.mxu0
        %2255 = vxpose.xlu0.b32.start [1/16] %v1931, 128
        %2256 = vxpose.xlu0.b32.cont [2/16] 0.0, 128
        %2257 = vxpose.xlu0.b32.cont [3/16] 0.0, 128
        %2258 = vxpose.xlu0.b32.cont [4/16] 0.0, 128
        %2259 = vxpose.xlu0.b32.cont [5/16] 0.0, 128
        %2260 = vxpose.xlu0.b32.cont [6/16] 0.0, 128
        %2261 = vxpose.xlu0.b32.cont [7/16] 0.0, 128
        %2262 = vxpose.xlu0.b32.cont [8/16] 0.0, 128
        %2263 = vxpose.xlu0.b32.cont [9/16] 0.0, 128
        %2264 = vxpose.xlu0.b32.cont [10/16] 0.0, 128
        %2265 = vxpose.xlu0.b32.cont [11/16] 0.0, 128
        %2266 = vxpose.xlu0.b32.cont [12/16] 0.0, 128
        %2267 = vxpose.xlu0.b32.cont [13/16] 0.0, 128
        %2268 = vxpose.xlu0.b32.cont [14/16] 0.0, 128
        %2269 = vxpose.xlu0.b32.cont [15/16] 0.0, 128
        %2270 = vxpose.xlu0.b32.end [16/16] 0.0, 128
        %v2271 = vpop.trf.xlu0
        %v2272 = vpop.trf.xlu0
        %v2273 = vpop.trf.xlu0
        %v2274 = vpop.trf.xlu0
        %v2275 = vpop.trf.xlu0
        %v2276 = vpop.trf.xlu0
        %v2277 = vpop.trf.xlu0
        %v2278 = vpop.trf.xlu0
        %v2279 = vpop.trf.xlu0
        %v2280 = vpop.trf.xlu0
        %v2281 = vpop.trf.xlu0
        %v2282 = vpop.trf.xlu0
        %v2283 = vpop.trf.xlu0
        %v2284 = vpop.trf.xlu0
        %v2285 = vpop.trf.xlu0
        %v2286 = vpop.trf.xlu0
        %v2288 = vsel %vm1787, %v2271, 0
        %2290 = vmatprep.subr.mxu0 0.0
        %2291 = vmatpush1.msra.mxu0 0.0
        %2292 = vmatprep.subr.mxu0 0.0
        %2293 = vmatpush1.msra.mxu0 0.0
        %2294 = vmatprep.subr.mxu0 0.0
        %2295 = vmatpush1.msra.mxu0 0.0
        %2296 = vmatprep.subr.mxu0 0.0
        %2297 = vmatpush1.msra.mxu0 0.0
        %2298 = vmatprep.subr.mxu0 0.0
        %2299 = vmatpush1.msra.mxu0 0.0
        %2300 = vmatprep.subr.mxu0 0.0
        %2301 = vmatpush1.msra.mxu0 0.0
        %2302 = vmatprep.subr.mxu0 0.0
        %2303 = vmatpush1.msra.mxu0 0.0
        %2304 = vmatprep.subr.mxu0 0.0
        %2305 = vmatpush1.msra.mxu0 0.0
        %2306 = vmatprep.subr.mxu0 0.0
        %2307 = vmatpush1.msra.mxu0 0.0
        %2308 = vmatprep.subr.mxu0 0.0
        %2309 = vmatpush1.msra.mxu0 0.0
        %2310 = vmatprep.subr.mxu0 0.0
        %2311 = vmatpush1.msra.mxu0 0.0
        %2312 = vmatprep.subr.mxu0 0.0
        %2313 = vmatpush1.msra.mxu0 0.0
        %2314 = vmatprep.subr.mxu0 0.0
        %2315 = vmatpush1.msra.mxu0 0.0
        %2316 = vmatprep.subr.mxu0 0.0
        %2317 = vmatpush1.msra.mxu0 0.0
        %2318 = vmatprep.subr.mxu0 0.0
        %2319 = vmatpush1.msra.mxu0 0.0
        %2320 = vmatprep.subr.mxu0 0.0
        %2321 = vmatpush1.msra.mxu0 %v648
        %2322 = vmatprep.subr.mxu0 0.0
        %2323 = vmatpush2.msra.mxu0 0.0
        %2324 = vmatprep.subr.mxu0 0.0
        %2325 = vmatpush2.msra.mxu0 0.0
        %2326 = vmatprep.subr.mxu0 0.0
        %2327 = vmatpush2.msra.mxu0 0.0
        %2328 = vmatprep.subr.mxu0 0.0
        %2329 = vmatpush2.msra.mxu0 0.0
        %2330 = vmatprep.subr.mxu0 0.0
        %2331 = vmatpush2.msra.mxu0 0.0
        %2332 = vmatprep.subr.mxu0 0.0
        %2333 = vmatpush2.msra.mxu0 0.0
        %2334 = vmatprep.subr.mxu0 0.0
        %2335 = vmatpush2.msra.mxu0 0.0
        %2336 = vmatprep.subr.mxu0 0.0
        %2337 = vmatpush2.msra.mxu0 0.0
        %2338 = vmatprep.subr.mxu0 0.0
        %2339 = vmatpush2.msra.mxu0 0.0
        %2340 = vmatprep.subr.mxu0 0.0
        %2341 = vmatpush2.msra.mxu0 0.0
        %2342 = vmatprep.subr.mxu0 0.0
        %2343 = vmatpush2.msra.mxu0 0.0
        %2344 = vmatprep.subr.mxu0 0.0
        %2345 = vmatpush2.msra.mxu0 0.0
        %2346 = vmatprep.subr.mxu0 0.0
        %2347 = vmatpush2.msra.mxu0 0.0
        %2348 = vmatprep.subr.mxu0 0.0
        %2349 = vmatpush2.msra.mxu0 0.0
        %2350 = vmatprep.subr.mxu0 0.0
        %2351 = vmatpush2.msra.mxu0 0.0
        %2352 = vmatprep.subr.mxu0 0.0
        %2353 = vmatpush2.msra.mxu0 0.0
        %2354 = vmatprep.mubr.f32.mxu0 0.0
        %2355 = vmatmul.mubr.f32.gmra.mxu0 %v2288
        %v2356 = vpop.f32.mrf.mxu0
        %v2357 = vadd.f32 0.0, %v2356
        %v2358 = vpop.f32.mrf.mxu0
        %2359 = vdwg.mxu0
        %2360 = vxpose.xlu0.b32.start [1/16] %v1933, 128
        %2361 = vxpose.xlu0.b32.cont [2/16] 0.0, 128
        %2362 = vxpose.xlu0.b32.cont [3/16] 0.0, 128
        %2363 = vxpose.xlu0.b32.cont [4/16] 0.0, 128
        %2364 = vxpose.xlu0.b32.cont [5/16] 0.0, 128
        %2365 = vxpose.xlu0.b32.cont [6/16] 0.0, 128
        %2366 = vxpose.xlu0.b32.cont [7/16] 0.0, 128
        %2367 = vxpose.xlu0.b32.cont [8/16] 0.0, 128
        %2368 = vxpose.xlu0.b32.cont [9/16] 0.0, 128
        %2369 = vxpose.xlu0.b32.cont [10/16] 0.0, 128
        %2370 = vxpose.xlu0.b32.cont [11/16] 0.0, 128
        %2371 = vxpose.xlu0.b32.cont [12/16] 0.0, 128
        %2372 = vxpose.xlu0.b32.cont [13/16] 0.0, 128
        %2373 = vxpose.xlu0.b32.cont [14/16] 0.0, 128
        %2374 = vxpose.xlu0.b32.cont [15/16] 0.0, 128
        %2375 = vxpose.xlu0.b32.end [16/16] 0.0, 128
        %v2376 = vpop.trf.xlu0
        %v2377 = vpop.trf.xlu0
        %v2378 = vpop.trf.xlu0
        %v2379 = vpop.trf.xlu0
        %v2380 = vpop.trf.xlu0
        %v2381 = vpop.trf.xlu0
        %v2382 = vpop.trf.xlu0
        %v2383 = vpop.trf.xlu0
        %v2384 = vpop.trf.xlu0
        %v2385 = vpop.trf.xlu0
        %v2386 = vpop.trf.xlu0
        %v2387 = vpop.trf.xlu0
        %v2388 = vpop.trf.xlu0
        %v2389 = vpop.trf.xlu0
        %v2390 = vpop.trf.xlu0
        %v2391 = vpop.trf.xlu0
        %v2393 = vsel %vm1787, %v2376, 0
        %2395 = vmatprep.subr.mxu0 0.0
        %2396 = vmatpush1.msra.mxu0 0.0
        %2397 = vmatprep.subr.mxu0 0.0
        %2398 = vmatpush1.msra.mxu0 0.0
        %2399 = vmatprep.subr.mxu0 0.0
        %2400 = vmatpush1.msra.mxu0 0.0
        %2401 = vmatprep.subr.mxu0 0.0
        %2402 = vmatpush1.msra.mxu0 0.0
        %2403 = vmatprep.subr.mxu0 0.0
        %2404 = vmatpush1.msra.mxu0 0.0
        %2405 = vmatprep.subr.mxu0 0.0
        %2406 = vmatpush1.msra.mxu0 0.0
        %2407 = vmatprep.subr.mxu0 0.0
        %2408 = vmatpush1.msra.mxu0 0.0
        %2409 = vmatprep.subr.mxu0 0.0
        %2410 = vmatpush1.msra.mxu0 0.0
        %2411 = vmatprep.subr.mxu0 0.0
        %2412 = vmatpush1.msra.mxu0 0.0
        %2413 = vmatprep.subr.mxu0 0.0
        %2414 = vmatpush1.msra.mxu0 0.0
        %2415 = vmatprep.subr.mxu0 0.0
        %2416 = vmatpush1.msra.mxu0 0.0
        %2417 = vmatprep.subr.mxu0 0.0
        %2418 = vmatpush1.msra.mxu0 0.0
        %2419 = vmatprep.subr.mxu0 0.0
        %2420 = vmatpush1.msra.mxu0 0.0
        %2421 = vmatprep.subr.mxu0 0.0
        %2422 = vmatpush1.msra.mxu0 0.0
        %2423 = vmatprep.subr.mxu0 0.0
        %2424 = vmatpush1.msra.mxu0 0.0
        %2425 = vmatprep.subr.mxu0 0.0
        %2426 = vmatpush1.msra.mxu0 %v653
        %2427 = vmatprep.subr.mxu0 0.0
        %2428 = vmatpush2.msra.mxu0 0.0
        %2429 = vmatprep.subr.mxu0 0.0
        %2430 = vmatpush2.msra.mxu0 0.0
        %2431 = vmatprep.subr.mxu0 0.0
        %2432 = vmatpush2.msra.mxu0 0.0
        %2433 = vmatprep.subr.mxu0 0.0
        %2434 = vmatpush2.msra.mxu0 0.0
        %2435 = vmatprep.subr.mxu0 0.0
        %2436 = vmatpush2.msra.mxu0 0.0
        %2437 = vmatprep.subr.mxu0 0.0
        %2438 = vmatpush2.msra.mxu0 0.0
        %2439 = vmatprep.subr.mxu0 0.0
        %2440 = vmatpush2.msra.mxu0 0.0
        %2441 = vmatprep.subr.mxu0 0.0
        %2442 = vmatpush2.msra.mxu0 0.0
        %2443 = vmatprep.subr.mxu0 0.0
        %2444 = vmatpush2.msra.mxu0 0.0
        %2445 = vmatprep.subr.mxu0 0.0
        %2446 = vmatpush2.msra.mxu0 0.0
        %2447 = vmatprep.subr.mxu0 0.0
        %2448 = vmatpush2.msra.mxu0 0.0
        %2449 = vmatprep.subr.mxu0 0.0
        %2450 = vmatpush2.msra.mxu0 0.0
        %2451 = vmatprep.subr.mxu0 0.0
        %2452 = vmatpush2.msra.mxu0 0.0
        %2453 = vmatprep.subr.mxu0 0.0
        %2454 = vmatpush2.msra.mxu0 0.0
        %2455 = vmatprep.subr.mxu0 0.0
        %2456 = vmatpush2.msra.mxu0 0.0
        %2457 = vmatprep.subr.mxu0 0.0
        %2458 = vmatpush2.msra.mxu0 0.0
        %2459 = vmatprep.mubr.f32.mxu0 0.0
        %2460 = vmatmul.mubr.f32.gmra.mxu0 %v2393
        %v2461 = vpop.f32.mrf.mxu0
        %v2462 = vadd.f32 0.0, %v2461
        %v2463 = vpop.f32.mrf.mxu0
        %2464 = vdwg.mxu0
        %2465 = vxpose.xlu0.b32.start [1/16] %v1935, 128
        %2466 = vxpose.xlu0.b32.cont [2/16] 0.0, 128
        %2467 = vxpose.xlu0.b32.cont [3/16] 0.0, 128
        %2468 = vxpose.xlu0.b32.cont [4/16] 0.0, 128
        %2469 = vxpose.xlu0.b32.cont [5/16] 0.0, 128
        %2470 = vxpose.xlu0.b32.cont [6/16] 0.0, 128
        %2471 = vxpose.xlu0.b32.cont [7/16] 0.0, 128
        %2472 = vxpose.xlu0.b32.cont [8/16] 0.0, 128
        %2473 = vxpose.xlu0.b32.cont [9/16] 0.0, 128
        %2474 = vxpose.xlu0.b32.cont [10/16] 0.0, 128
        %2475 = vxpose.xlu0.b32.cont [11/16] 0.0, 128
        %2476 = vxpose.xlu0.b32.cont [12/16] 0.0, 128
        %2477 = vxpose.xlu0.b32.cont [13/16] 0.0, 128
        %2478 = vxpose.xlu0.b32.cont [14/16] 0.0, 128
        %2479 = vxpose.xlu0.b32.cont [15/16] 0.0, 128
        %2480 = vxpose.xlu0.b32.end [16/16] 0.0, 128
        %v2481 = vpop.trf.xlu0
        %v2482 = vpop.trf.xlu0
        %v2483 = vpop.trf.xlu0
        %v2484 = vpop.trf.xlu0
        %v2485 = vpop.trf.xlu0
        %v2486 = vpop.trf.xlu0
        %v2487 = vpop.trf.xlu0
        %v2488 = vpop.trf.xlu0
        %v2489 = vpop.trf.xlu0
        %v2490 = vpop.trf.xlu0
        %v2491 = vpop.trf.xlu0
        %v2492 = vpop.trf.xlu0
        %v2493 = vpop.trf.xlu0
        %v2494 = vpop.trf.xlu0
        %v2495 = vpop.trf.xlu0
        %v2496 = vpop.trf.xlu0
        %v2498 = vsel %vm1787, %v2481, 0
        %2500 = vmatprep.subr.mxu0 0.0
        %2501 = vmatpush1.msra.mxu0 0.0
        %2502 = vmatprep.subr.mxu0 0.0
        %2503 = vmatpush1.msra.mxu0 0.0
        %2504 = vmatprep.subr.mxu0 0.0
        %2505 = vmatpush1.msra.mxu0 0.0
        %2506 = vmatprep.subr.mxu0 0.0
        %2507 = vmatpush1.msra.mxu0 0.0
        %2508 = vmatprep.subr.mxu0 0.0
        %2509 = vmatpush1.msra.mxu0 0.0
        %2510 = vmatprep.subr.mxu0 0.0
        %2511 = vmatpush1.msra.mxu0 0.0
        %2512 = vmatprep.subr.mxu0 0.0
        %2513 = vmatpush1.msra.mxu0 0.0
        %2514 = vmatprep.subr.mxu0 0.0
        %2515 = vmatpush1.msra.mxu0 0.0
        %2516 = vmatprep.subr.mxu0 0.0
        %2517 = vmatpush1.msra.mxu0 0.0
        %2518 = vmatprep.subr.mxu0 0.0
        %2519 = vmatpush1.msra.mxu0 0.0
        %2520 = vmatprep.subr.mxu0 0.0
        %2521 = vmatpush1.msra.mxu0 0.0
        %2522 = vmatprep.subr.mxu0 0.0
        %2523 = vmatpush1.msra.mxu0 0.0
        %2524 = vmatprep.subr.mxu0 0.0
        %2525 = vmatpush1.msra.mxu0 0.0
        %2526 = vmatprep.subr.mxu0 0.0
        %2527 = vmatpush1.msra.mxu0 0.0
        %2528 = vmatprep.subr.mxu0 0.0
        %2529 = vmatpush1.msra.mxu0 0.0
        %2530 = vmatprep.subr.mxu0 0.0
        %2531 = vmatpush1.msra.mxu0 %v658
        %2532 = vmatprep.subr.mxu0 0.0
        %2533 = vmatpush2.msra.mxu0 0.0
        %2534 = vmatprep.subr.mxu0 0.0
        %2535 = vmatpush2.msra.mxu0 0.0
        %2536 = vmatprep.subr.mxu0 0.0
        %2537 = vmatpush2.msra.mxu0 0.0
        %2538 = vmatprep.subr.mxu0 0.0
        %2539 = vmatpush2.msra.mxu0 0.0
        %2540 = vmatprep.subr.mxu0 0.0
        %2541 = vmatpush2.msra.mxu0 0.0
        %2542 = vmatprep.subr.mxu0 0.0
        %2543 = vmatpush2.msra.mxu0 0.0
        %2544 = vmatprep.subr.mxu0 0.0
        %2545 = vmatpush2.msra.mxu0 0.0
        %2546 = vmatprep.subr.mxu0 0.0
        %2547 = vmatpush2.msra.mxu0 0.0
        %2548 = vmatprep.subr.mxu0 0.0
        %2549 = vmatpush2.msra.mxu0 0.0
        %2550 = vmatprep.subr.mxu0 0.0
        %2551 = vmatpush2.msra.mxu0 0.0
        %2552 = vmatprep.subr.mxu0 0.0
        %2553 = vmatpush2.msra.mxu0 0.0
        %2554 = vmatprep.subr.mxu0 0.0
        %2555 = vmatpush2.msra.mxu0 0.0
        %2556 = vmatprep.subr.mxu0 0.0
        %2557 = vmatpush2.msra.mxu0 0.0
        %2558 = vmatprep.subr.mxu0 0.0
        %2559 = vmatpush2.msra.mxu0 0.0
        %2560 = vmatprep.subr.mxu0 0.0
        %2561 = vmatpush2.msra.mxu0 0.0
        %2562 = vmatprep.subr.mxu0 0.0
        %2563 = vmatpush2.msra.mxu0 0.0
        %2564 = vmatprep.mubr.f32.mxu0 0.0
        %2565 = vmatmul.mubr.f32.gmra.mxu0 %v2498
        %v2566 = vpop.f32.mrf.mxu0
        %v2567 = vadd.f32 0.0, %v2566
        %v2568 = vpop.f32.mrf.mxu0
        %2569 = vdwg.mxu0
        %2570 = vxpose.xlu0.b32.start [1/16] %v1937, 128
        %2571 = vxpose.xlu0.b32.cont [2/16] 0.0, 128
        %2572 = vxpose.xlu0.b32.cont [3/16] 0.0, 128
        %2573 = vxpose.xlu0.b32.cont [4/16] 0.0, 128
        %2574 = vxpose.xlu0.b32.cont [5/16] 0.0, 128
        %2575 = vxpose.xlu0.b32.cont [6/16] 0.0, 128
        %2576 = vxpose.xlu0.b32.cont [7/16] 0.0, 128
        %2577 = vxpose.xlu0.b32.cont [8/16] 0.0, 128
        %2578 = vxpose.xlu0.b32.cont [9/16] 0.0, 128
        %2579 = vxpose.xlu0.b32.cont [10/16] 0.0, 128
        %2580 = vxpose.xlu0.b32.cont [11/16] 0.0, 128
        %2581 = vxpose.xlu0.b32.cont [12/16] 0.0, 128
        %2582 = vxpose.xlu0.b32.cont [13/16] 0.0, 128
        %2583 = vxpose.xlu0.b32.cont [14/16] 0.0, 128
        %2584 = vxpose.xlu0.b32.cont [15/16] 0.0, 128
        %2585 = vxpose.xlu0.b32.end [16/16] 0.0, 128
        %v2586 = vpop.trf.xlu0
        %v2587 = vpop.trf.xlu0
        %v2588 = vpop.trf.xlu0
        %v2589 = vpop.trf.xlu0
        %v2590 = vpop.trf.xlu0
        %v2591 = vpop.trf.xlu0
        %v2592 = vpop.trf.xlu0
        %v2593 = vpop.trf.xlu0
        %v2594 = vpop.trf.xlu0
        %v2595 = vpop.trf.xlu0
        %v2596 = vpop.trf.xlu0
        %v2597 = vpop.trf.xlu0
        %v2598 = vpop.trf.xlu0
        %v2599 = vpop.trf.xlu0
        %v2600 = vpop.trf.xlu0
        %v2601 = vpop.trf.xlu0
        %v2603 = vsel %vm1787, %v2586, 0
        %2605 = vmatprep.subr.mxu0 0.0
        %2606 = vmatpush1.msra.mxu0 0.0
        %2607 = vmatprep.subr.mxu0 0.0
        %2608 = vmatpush1.msra.mxu0 0.0
        %2609 = vmatprep.subr.mxu0 0.0
        %2610 = vmatpush1.msra.mxu0 0.0
        %2611 = vmatprep.subr.mxu0 0.0
        %2612 = vmatpush1.msra.mxu0 0.0
        %2613 = vmatprep.subr.mxu0 0.0
        %2614 = vmatpush1.msra.mxu0 0.0
        %2615 = vmatprep.subr.mxu0 0.0
        %2616 = vmatpush1.msra.mxu0 0.0
        %2617 = vmatprep.subr.mxu0 0.0
        %2618 = vmatpush1.msra.mxu0 0.0
        %2619 = vmatprep.subr.mxu0 0.0
        %2620 = vmatpush1.msra.mxu0 0.0
        %2621 = vmatprep.subr.mxu0 0.0
        %2622 = vmatpush1.msra.mxu0 0.0
        %2623 = vmatprep.subr.mxu0 0.0
        %2624 = vmatpush1.msra.mxu0 0.0
        %2625 = vmatprep.subr.mxu0 0.0
        %2626 = vmatpush1.msra.mxu0 0.0
        %2627 = vmatprep.subr.mxu0 0.0
        %2628 = vmatpush1.msra.mxu0 0.0
        %2629 = vmatprep.subr.mxu0 0.0
        %2630 = vmatpush1.msra.mxu0 0.0
        %2631 = vmatprep.subr.mxu0 0.0
        %2632 = vmatpush1.msra.mxu0 0.0
        %2633 = vmatprep.subr.mxu0 0.0
        %2634 = vmatpush1.msra.mxu0 0.0
        %2635 = vmatprep.subr.mxu0 0.0
        %2636 = vmatpush1.msra.mxu0 %v663
        %2637 = vmatprep.subr.mxu0 0.0
        %2638 = vmatpush2.msra.mxu0 0.0
        %2639 = vmatprep.subr.mxu0 0.0
        %2640 = vmatpush2.msra.mxu0 0.0
        %2641 = vmatprep.subr.mxu0 0.0
        %2642 = vmatpush2.msra.mxu0 0.0
        %2643 = vmatprep.subr.mxu0 0.0
        %2644 = vmatpush2.msra.mxu0 0.0
        %2645 = vmatprep.subr.mxu0 0.0
        %2646 = vmatpush2.msra.mxu0 0.0
        %2647 = vmatprep.subr.mxu0 0.0
        %2648 = vmatpush2.msra.mxu0 0.0
        %2649 = vmatprep.subr.mxu0 0.0
        %2650 = vmatpush2.msra.mxu0 0.0
        %2651 = vmatprep.subr.mxu0 0.0
        %2652 = vmatpush2.msra.mxu0 0.0
        %2653 = vmatprep.subr.mxu0 0.0
        %2654 = vmatpush2.msra.mxu0 0.0
        %2655 = vmatprep.subr.mxu0 0.0
        %2656 = vmatpush2.msra.mxu0 0.0
        %2657 = vmatprep.subr.mxu0 0.0
        %2658 = vmatpush2.msra.mxu0 0.0
        %2659 = vmatprep.subr.mxu0 0.0
        %2660 = vmatpush2.msra.mxu0 0.0
        %2661 = vmatprep.subr.mxu0 0.0
        %2662 = vmatpush2.msra.mxu0 0.0
        %2663 = vmatprep.subr.mxu0 0.0
        %2664 = vmatpush2.msra.mxu0 0.0
        %2665 = vmatprep.subr.mxu0 0.0
        %2666 = vmatpush2.msra.mxu0 0.0
        %2667 = vmatprep.subr.mxu0 0.0
        %2668 = vmatpush2.msra.mxu0 0.0
        %2669 = vmatprep.mubr.f32.mxu0 0.0
        %2670 = vmatmul.mubr.f32.gmra.mxu0 %v2603
        %v2671 = vpop.f32.mrf.mxu0
        %v2672 = vadd.f32 0.0, %v2671
        %v2673 = vpop.f32.mrf.mxu0
        %2674 = vdwg.mxu0
        %2675 = vxpose.xlu0.b32.start [1/16] %v1939, 128
        %2676 = vxpose.xlu0.b32.cont [2/16] 0.0, 128
        %2677 = vxpose.xlu0.b32.cont [3/16] 0.0, 128
        %2678 = vxpose.xlu0.b32.cont [4/16] 0.0, 128
        %2679 = vxpose.xlu0.b32.cont [5/16] 0.0, 128
        %2680 = vxpose.xlu0.b32.cont [6/16] 0.0, 128
        %2681 = vxpose.xlu0.b32.cont [7/16] 0.0, 128
        %2682 = vxpose.xlu0.b32.cont [8/16] 0.0, 128
        %2683 = vxpose.xlu0.b32.cont [9/16] 0.0, 128
        %2684 = vxpose.xlu0.b32.cont [10/16] 0.0, 128
        %2685 = vxpose.xlu0.b32.cont [11/16] 0.0, 128
        %2686 = vxpose.xlu0.b32.cont [12/16] 0.0, 128
        %2687 = vxpose.xlu0.b32.cont [13/16] 0.0, 128
        %2688 = vxpose.xlu0.b32.cont [14/16] 0.0, 128
        %2689 = vxpose.xlu0.b32.cont [15/16] 0.0, 128
        %2690 = vxpose.xlu0.b32.end [16/16] 0.0, 128
        %v2691 = vpop.trf.xlu0
        %v2692 = vpop.trf.xlu0
        %v2693 = vpop.trf.xlu0
        %v2694 = vpop.trf.xlu0
        %v2695 = vpop.trf.xlu0
        %v2696 = vpop.trf.xlu0
        %v2697 = vpop.trf.xlu0
        %v2698 = vpop.trf.xlu0
        %v2699 = vpop.trf.xlu0
        %v2700 = vpop.trf.xlu0
        %v2701 = vpop.trf.xlu0
        %v2702 = vpop.trf.xlu0
        %v2703 = vpop.trf.xlu0
        %v2704 = vpop.trf.xlu0
        %v2705 = vpop.trf.xlu0
        %v2706 = vpop.trf.xlu0
        %v2708 = vsel %vm1787, %v2691, 0
        %2710 = vmatprep.subr.mxu0 0.0
        %2711 = vmatpush1.msra.mxu0 0.0
        %2712 = vmatprep.subr.mxu0 0.0
        %2713 = vmatpush1.msra.mxu0 0.0
        %2714 = vmatprep.subr.mxu0 0.0
        %2715 = vmatpush1.msra.mxu0 0.0
        %2716 = vmatprep.subr.mxu0 0.0
        %2717 = vmatpush1.msra.mxu0 0.0
        %2718 = vmatprep.subr.mxu0 0.0
        %2719 = vmatpush1.msra.mxu0 0.0
        %2720 = vmatprep.subr.mxu0 0.0
        %2721 = vmatpush1.msra.mxu0 0.0
        %2722 = vmatprep.subr.mxu0 0.0
        %2723 = vmatpush1.msra.mxu0 0.0
        %2724 = vmatprep.subr.mxu0 0.0
        %2725 = vmatpush1.msra.mxu0 0.0
        %2726 = vmatprep.subr.mxu0 0.0
        %2727 = vmatpush1.msra.mxu0 0.0
        %2728 = vmatprep.subr.mxu0 0.0
        %2729 = vmatpush1.msra.mxu0 0.0
        %2730 = vmatprep.subr.mxu0 0.0
        %2731 = vmatpush1.msra.mxu0 0.0
        %2732 = vmatprep.subr.mxu0 0.0
        %2733 = vmatpush1.msra.mxu0 0.0
        %2734 = vmatprep.subr.mxu0 0.0
        %2735 = vmatpush1.msra.mxu0 0.0
        %2736 = vmatprep.subr.mxu0 0.0
        %2737 = vmatpush1.msra.mxu0 0.0
        %2738 = vmatprep.subr.mxu0 0.0
        %2739 = vmatpush1.msra.mxu0 0.0
        %2740 = vmatprep.subr.mxu0 0.0
        %2741 = vmatpush1.msra.mxu0 %v668
        %2742 = vmatprep.subr.mxu0 0.0
        %2743 = vmatpush2.msra.mxu0 0.0
        %2744 = vmatprep.subr.mxu0 0.0
        %2745 = vmatpush2.msra.mxu0 0.0
        %2746 = vmatprep.subr.mxu0 0.0
        %2747 = vmatpush2.msra.mxu0 0.0
        %2748 = vmatprep.subr.mxu0 0.0
        %2749 = vmatpush2.msra.mxu0 0.0
        %2750 = vmatprep.subr.mxu0 0.0
        %2751 = vmatpush2.msra.mxu0 0.0
        %2752 = vmatprep.subr.mxu0 0.0
        %2753 = vmatpush2.msra.mxu0 0.0
        %2754 = vmatprep.subr.mxu0 0.0
        %2755 = vmatpush2.msra.mxu0 0.0
        %2756 = vmatprep.subr.mxu0 0.0
        %2757 = vmatpush2.msra.mxu0 0.0
        %2758 = vmatprep.subr.mxu0 0.0
        %2759 = vmatpush2.msra.mxu0 0.0
        %2760 = vmatprep.subr.mxu0 0.0
        %2761 = vmatpush2.msra.mxu0 0.0
        %2762 = vmatprep.subr.mxu0 0.0
        %2763 = vmatpush2.msra.mxu0 0.0
        %2764 = vmatprep.subr.mxu0 0.0
        %2765 = vmatpush2.msra.mxu0 0.0
        %2766 = vmatprep.subr.mxu0 0.0
        %2767 = vmatpush2.msra.mxu0 0.0
        %2768 = vmatprep.subr.mxu0 0.0
        %2769 = vmatpush2.msra.mxu0 0.0
        %2770 = vmatprep.subr.mxu0 0.0
        %2771 = vmatpush2.msra.mxu0 0.0
        %2772 = vmatprep.subr.mxu0 0.0
        %2773 = vmatpush2.msra.mxu0 0.0
        %2774 = vmatprep.mubr.f32.mxu0 0.0
        %2775 = vmatmul.mubr.f32.gmra.mxu0 %v2708
        %v2776 = vpop.f32.mrf.mxu0
        %v2777 = vadd.f32 0.0, %v2776
        %v2778 = vpop.f32.mrf.mxu0
        %2779 = vdwg.mxu0
        %v2780 = vmul.f32 %v2042, %v962
        %v2781 = vmul.f32 %v2147, %v962
        %v2782 = vmul.f32 %v2252, %v962
        %v2783 = vmul.f32 %v2357, %v962
        %v2784 = vmul.f32 %v2462, %v962
        %v2785 = vmul.f32 %v2567, %v962
        %v2786 = vmul.f32 %v2672, %v962
        %v2787 = vmul.f32 %v2777, %v962
        %v2788 = vsel %vm420, %v2780, 0.0
        %v2789 = vrot.slane %v2788, 4
        %v2790 = vadd.f32 %v2788, %v2789
        %v2791 = vrot.slane %v2790, 2
        %v2792 = vadd.f32 %v2790, %v2791
        %v2793 = vrot.slane %v2792, 1
        %v2794 = vadd.f32 %v2792, %v2793
        %v2795 = vsel %vm420, %v2781, 0.0
        %v2796 = vrot.slane %v2795, 4
        %v2797 = vadd.f32 %v2795, %v2796
        %v2798 = vrot.slane %v2797, 2
        %v2799 = vadd.f32 %v2797, %v2798
        %v2800 = vrot.slane %v2799, 1
        %v2801 = vadd.f32 %v2799, %v2800
        %v2802 = vsel %vm420, %v2782, 0.0
        %v2803 = vrot.slane %v2802, 4
        %v2804 = vadd.f32 %v2802, %v2803
        %v2805 = vrot.slane %v2804, 2
        %v2806 = vadd.f32 %v2804, %v2805
        %v2807 = vrot.slane %v2806, 1
        %v2808 = vadd.f32 %v2806, %v2807
        %v2809 = vsel %vm420, %v2783, 0.0
        %v2810 = vrot.slane %v2809, 4
        %v2811 = vadd.f32 %v2809, %v2810
        %v2812 = vrot.slane %v2811, 2
        %v2813 = vadd.f32 %v2811, %v2812
        %v2814 = vrot.slane %v2813, 1
        %v2815 = vadd.f32 %v2813, %v2814
        %v2816 = vsel %vm420, %v2784, 0.0
        %v2817 = vrot.slane %v2816, 4
        %v2818 = vadd.f32 %v2816, %v2817
        %v2819 = vrot.slane %v2818, 2
        %v2820 = vadd.f32 %v2818, %v2819
        %v2821 = vrot.slane %v2820, 1
        %v2822 = vadd.f32 %v2820, %v2821
        %v2823 = vsel %vm420, %v2785, 0.0
        %v2824 = vrot.slane %v2823, 4
        %v2825 = vadd.f32 %v2823, %v2824
        %v2826 = vrot.slane %v2825, 2
        %v2827 = vadd.f32 %v2825, %v2826
        %v2828 = vrot.slane %v2827, 1
        %v2829 = vadd.f32 %v2827, %v2828
        %v2830 = vsel %vm420, %v2786, 0.0
        %v2831 = vrot.slane %v2830, 4
        %v2832 = vadd.f32 %v2830, %v2831
        %v2833 = vrot.slane %v2832, 2
        %v2834 = vadd.f32 %v2832, %v2833
        %v2835 = vrot.slane %v2834, 1
        %v2836 = vadd.f32 %v2834, %v2835
        %v2837 = vsel %vm420, %v2787, 0.0
        %v2838 = vrot.slane %v2837, 4
        %v2839 = vadd.f32 %v2837, %v2838
        %v2840 = vrot.slane %v2839, 2
        %v2841 = vadd.f32 %v2839, %v2840
        %v2842 = vrot.slane %v2841, 1
        %v2843 = vadd.f32 %v2841, %v2842
        %v2844 = vld [vmem:[#allocation5] sm:$0xff]
        %v2845 = vld [vmem:[#allocation5 + $0x8] sm:$0xff]
        %v2846 = vld [vmem:[#allocation5 + $0x10] sm:$0xff]
        %v2847 = vld [vmem:[#allocation5 + $0x18] sm:$0xff]
        %v2856 = vsel %vm871, %v2801, %v2794
        %v2857 = vsel %vm873, %v2808, %v2856
        %v2858 = vsel %vm875, %v2815, %v2857
        %v2859 = vsel %vm877, %v2822, %v2858
        %v2860 = vsel %vm879, %v2829, %v2859
        %v2861 = vsel %vm881, %v2836, %v2860
        %v2862 = vsel %vm883, %v2843, %v2861
        %v2863 = vsel %vm420, %v2862, 0
        %2865 = vmatprep.subr.mxu0 0.0
        %2866 = vmatpush1.msra.mxu0 0.0
        %2867 = vmatprep.subr.mxu0 0.0
        %2868 = vmatpush1.msra.mxu0 0.0
        %2869 = vmatprep.subr.mxu0 0.0
        %2870 = vmatpush1.msra.mxu0 0.0
        %2871 = vmatprep.subr.mxu0 0.0
        %2872 = vmatpush1.msra.mxu0 0.0
        %2873 = vmatprep.subr.mxu0 0.0
        %2874 = vmatpush1.msra.mxu0 0.0
        %2875 = vmatprep.subr.mxu0 0.0
        %2876 = vmatpush1.msra.mxu0 0.0
        %2877 = vmatprep.subr.mxu0 0.0
        %2878 = vmatpush1.msra.mxu0 0.0
        %2879 = vmatprep.subr.mxu0 0.0
        %2880 = vmatpush1.msra.mxu0 0.0
        %2881 = vmatprep.subr.mxu0 0.0
        %2882 = vmatpush1.msra.mxu0 0.0
        %2883 = vmatprep.subr.mxu0 0.0
        %2884 = vmatpush1.msra.mxu0 0.0
        %2885 = vmatprep.subr.mxu0 0.0
        %2886 = vmatpush1.msra.mxu0 0.0
        %2887 = vmatprep.subr.mxu0 0.0
        %2888 = vmatpush1.msra.mxu0 0.0
        %2889 = vmatprep.subr.mxu0 0.0
        %2890 = vmatpush1.msra.mxu0 %v2847
        %2891 = vmatprep.subr.mxu0 0.0
        %2892 = vmatpush1.msra.mxu0 %v2846
        %2893 = vmatprep.subr.mxu0 0.0
        %2894 = vmatpush1.msra.mxu0 %v2845
        %2895 = vmatprep.subr.mxu0 0.0
        %2896 = vmatpush1.msra.mxu0 %v2844
        %2897 = vmatprep.subr.mxu0 0.0
        %2898 = vmatpush2.msra.mxu0 0.0
        %2899 = vmatprep.subr.mxu0 0.0
        %2900 = vmatpush2.msra.mxu0 0.0
        %2901 = vmatprep.subr.mxu0 0.0
        %2902 = vmatpush2.msra.mxu0 0.0
        %2903 = vmatprep.subr.mxu0 0.0
        %2904 = vmatpush2.msra.mxu0 0.0
        %2905 = vmatprep.subr.mxu0 0.0
        %2906 = vmatpush2.msra.mxu0 0.0
        %2907 = vmatprep.subr.mxu0 0.0
        %2908 = vmatpush2.msra.mxu0 0.0
        %2909 = vmatprep.subr.mxu0 0.0
        %2910 = vmatpush2.msra.mxu0 0.0
        %2911 = vmatprep.subr.mxu0 0.0
        %2912 = vmatpush2.msra.mxu0 0.0
        %2913 = vmatprep.subr.mxu0 0.0
        %2914 = vmatpush2.msra.mxu0 0.0
        %2915 = vmatprep.subr.mxu0 0.0
        %2916 = vmatpush2.msra.mxu0 0.0
        %2917 = vmatprep.subr.mxu0 0.0
        %2918 = vmatpush2.msra.mxu0 0.0
        %2919 = vmatprep.subr.mxu0 0.0
        %2920 = vmatpush2.msra.mxu0 0.0
        %2921 = vmatprep.subr.mxu0 0.0
        %2922 = vmatpush2.msra.mxu0 0.0
        %2923 = vmatprep.subr.mxu0 0.0
        %2924 = vmatpush2.msra.mxu0 0.0
        %2925 = vmatprep.subr.mxu0 0.0
        %2926 = vmatpush2.msra.mxu0 0.0
        %2927 = vmatprep.subr.mxu0 0.0
        %2928 = vmatpush2.msra.mxu0 0.0
        %2929 = vmatprep.mubr.f32.mxu0 0.0
        %2930 = vmatmul.mubr.f32.gmra.mxu0 %v2863
        %v2931 = vpop.f32.mrf.mxu0
        %v2932 = vadd.f32 0.0, %v2931
        %v2933 = vpop.f32.mrf.mxu0
        %2934 = vdwg.mxu0
        %v2936 = vcombine.high %v2932, %v2932
        %v2938 = vunpack.c.l.s4 1966171168
        %v2939 = vunpack.c.0.s8 %v2938
        %v2940 = vlaneseq
        %v2941 = vshrl.u32 %v2940, 7
        %v2942 = vsub.s32 %v2939, %v2941
        %v2943 = vrot.slane %v2932, %v2942
        %v2945 = vunpack.c.l.s4 1966171168
        %v2946 = vunpack.c.0.s8 %v2945
        %v2947 = vlaneseq
        %v2948 = vshrl.u32 %v2947, 7
        %v2949 = vsub.s32 %v2946, %v2948
        %v2950 = vrot.slane %v2936, %v2949
        %v2951 = vcombine.high %v2943, %v2943
        %v2952 = vcombine.high %v2950, %v2950
        %v2954 = vunpack.c.l.s4 1966171168
        %v2955 = vunpack.c.0.s8 %v2954
        %v2956 = vlaneseq
        %v2957 = vshrl.u32 %v2956, 7
        %v2958 = vsub.s32 %v2955, %v2957
        %v2959 = vrot.slane %v2943, %v2958
        %v2961 = vunpack.c.l.s4 1966171168
        %v2962 = vunpack.c.0.s8 %v2961
        %v2963 = vlaneseq
        %v2964 = vshrl.u32 %v2963, 7
        %v2965 = vsub.s32 %v2962, %v2964
        %v2966 = vrot.slane %v2950, %v2965
        %v2968 = vunpack.c.l.s4 1966171168
        %v2969 = vunpack.c.0.s8 %v2968
        %v2970 = vlaneseq
        %v2971 = vshrl.u32 %v2970, 7
        %v2972 = vsub.s32 %v2969, %v2971
        %v2973 = vrot.slane %v2951, %v2972
        %v2975 = vunpack.c.l.s4 1966171168
        %v2976 = vunpack.c.0.s8 %v2975
        %v2977 = vlaneseq
        %v2978 = vshrl.u32 %v2977, 7
        %v2979 = vsub.s32 %v2976, %v2978
        %v2980 = vrot.slane %v2952, %v2979
        %v2981 = vcombine.high %v2959, %v2959
        %v2982 = vcombine.high %v2966, %v2966
        %v2983 = vcombine.high %v2973, %v2973
        %v2984 = vcombine.high %v2980, %v2980
        %v2985 = vlaneseq
        %v2986 = vshrl.u32 %v2985, 7
        %v2987 = vsub.s32 0, %v2986
        %v2988 = vrot.slane %v2959, %v2987
        %v2989 = vlaneseq
        %v2990 = vshrl.u32 %v2989, 7
        %v2991 = vsub.s32 0, %v2990
        %v2992 = vrot.slane %v2973, %v2991
        %v2993 = vlaneseq
        %v2994 = vshrl.u32 %v2993, 7
        %v2995 = vsub.s32 0, %v2994
        %v2996 = vrot.slane %v2981, %v2995
        %v2997 = vlaneseq
        %v2998 = vshrl.u32 %v2997, 7
        %v2999 = vsub.s32 0, %v2998
        %v3000 = vrot.slane %v2983, %v2999
        %v3001 = vlaneseq
        %v3002 = vshrl.u32 %v3001, 7
        %v3003 = vsub.s32 0, %v3002
        %v3004 = vrot.slane %v2966, %v3003
        %v3005 = vlaneseq
        %v3006 = vshrl.u32 %v3005, 7
        %v3007 = vsub.s32 0, %v3006
        %v3008 = vrot.slane %v2980, %v3007
        %v3009 = vlaneseq
        %v3010 = vshrl.u32 %v3009, 7
        %v3011 = vsub.s32 0, %v3010
        %v3012 = vrot.slane %v2982, %v3011
        %v3013 = vlaneseq
        %v3014 = vshrl.u32 %v3013, 7
        %v3015 = vsub.s32 0, %v3014
        %v3016 = vrot.slane %v2984, %v3015
        %v3025 = vmul.f32 %v750, %v2988
        %v3026 = vmul.f32 %v755, %v2992
        %v3027 = vmul.f32 %v760, %v2996
        %v3028 = vmul.f32 %v765, %v3000
        %v3029 = vmul.f32 %v770, %v3004
        %v3030 = vmul.f32 %v775, %v3008
        %v3031 = vmul.f32 %v780, %v3012
        %v3032 = vmul.f32 %v785, %v3016
        %v3033 = vsel %vm420, %v3025, 0.0
        %3034 = vadd.xlane.f32.xlu0 %v3033
        %v3035 = vpop.xlane.xlu0 %3034
        %v3036 = vsel %vm420, %v3026, 0.0
        %3037 = vadd.xlane.f32.xlu0 %v3036
        %v3038 = vpop.xlane.xlu0 %3037
        %v3039 = vsel %vm420, %v3027, 0.0
        %3040 = vadd.xlane.f32.xlu0 %v3039
        %v3041 = vpop.xlane.xlu0 %3040
        %v3042 = vsel %vm420, %v3028, 0.0
        %3043 = vadd.xlane.f32.xlu0 %v3042
        %v3044 = vpop.xlane.xlu0 %3043
        %v3045 = vsel %vm420, %v3029, 0.0
        %3046 = vadd.xlane.f32.xlu0 %v3045
        %v3047 = vpop.xlane.xlu0 %3046
        %v3048 = vsel %vm420, %v3030, 0.0
        %3049 = vadd.xlane.f32.xlu0 %v3048
        %v3050 = vpop.xlane.xlu0 %3049
        %v3051 = vsel %vm420, %v3031, 0.0
        %3052 = vadd.xlane.f32.xlu0 %v3051
        %v3053 = vpop.xlane.xlu0 %3052
        %v3054 = vsel %vm420, %v3032, 0.0
        %3055 = vadd.xlane.f32.xlu0 %v3054
        %v3056 = vpop.xlane.xlu0 %3055
        %v3057 = vmul.f32 %v3035, 0.17677669
        %v3058 = vmul.f32 %v3038, 0.17677669
        %v3059 = vmul.f32 %v3041, 0.17677669
        %v3060 = vmul.f32 %v3044, 0.17677669
        %v3061 = vmul.f32 %v3047, 0.17677669
        %v3062 = vmul.f32 %v3050, 0.17677669
        %v3063 = vmul.f32 %v3053, 0.17677669
        %v3064 = vmul.f32 %v3056, 0.17677669
        %v3065 = vtanh.pop %v3057
        %v3066 = vtanh.pop %v3058
        %v3067 = vtanh.pop %v3059
        %v3068 = vtanh.pop %v3060
        %v3069 = vtanh.pop %v3061
        %v3070 = vtanh.pop %v3062
        %v3071 = vtanh.pop %v3063
        %v3072 = vtanh.pop %v3064
        %v3073 = vmul.f32 %v3065, 10.0
        %v3074 = vmul.f32 %v3066, 10.0
        %v3075 = vmul.f32 %v3067, 10.0
        %v3076 = vmul.f32 %v3068, 10.0
        %v3077 = vmul.f32 %v3069, 10.0
        %v3078 = vmul.f32 %v3070, 10.0
        %v3079 = vmul.f32 %v3071, 10.0
        %v3080 = vmul.f32 %v3072, 10.0
        %v3082 = vlaneseq
        %v3083 = vshrl.u32 %v3082, 7
        %v3084 = vsub.s32 0, %v3083
        %v3085 = vrot.slane %v415, %v3084
        %3087 = vbcast.lane.b32.xlu0 %v3085, 256
        %v3088 = vpop.permute.xlu0 %3087
        %v3089 = vlaneseq
        %v3090 = vshrl.u32 %v3089, 7
        %v3091 = vsub.s32 1, %v3090
        %v3092 = vrot.slane %v415, %v3091
        %3094 = vbcast.lane.b32.xlu0 %v3092, 256
        %v3095 = vpop.permute.xlu0 %3094
        %v3096 = vlaneseq
        %v3097 = vshrl.u32 %v3096, 7
        %v3098 = vsub.s32 2, %v3097
        %v3099 = vrot.slane %v415, %v3098
        %3101 = vbcast.lane.b32.xlu0 %v3099, 256
        %v3102 = vpop.permute.xlu0 %3101
        %v3103 = vlaneseq
        %v3104 = vshrl.u32 %v3103, 7
        %v3105 = vsub.s32 3, %v3104
        %v3106 = vrot.slane %v415, %v3105
        %3108 = vbcast.lane.b32.xlu0 %v3106, 256
        %v3109 = vpop.permute.xlu0 %3108
        %v3110 = vlaneseq
        %v3111 = vshrl.u32 %v3110, 7
        %v3112 = vsub.s32 4, %v3111
        %v3113 = vrot.slane %v415, %v3112
        %3115 = vbcast.lane.b32.xlu0 %v3113, 256
        %v3116 = vpop.permute.xlu0 %3115
        %v3117 = vlaneseq
        %v3118 = vshrl.u32 %v3117, 7
        %v3119 = vsub.s32 5, %v3118
        %v3120 = vrot.slane %v415, %v3119
        %3122 = vbcast.lane.b32.xlu0 %v3120, 256
        %v3123 = vpop.permute.xlu0 %3122
        %v3124 = vlaneseq
        %v3125 = vshrl.u32 %v3124, 7
        %v3126 = vsub.s32 6, %v3125
        %v3127 = vrot.slane %v415, %v3126
        %3129 = vbcast.lane.b32.xlu0 %v3127, 256
        %v3130 = vpop.permute.xlu0 %3129
        %v3131 = vlaneseq
        %v3132 = vshrl.u32 %v3131, 7
        %v3133 = vsub.s32 7, %v3132
        %v3134 = vrot.slane %v415, %v3133
        %3136 = vbcast.lane.b32.xlu0 %v3134, 256
        %v3137 = vpop.permute.xlu0 %3136
        %v3146 = vadd.f32 %v3073, %v3088
        %v3147 = vadd.f32 %v3074, %v3095
        %v3148 = vadd.f32 %v3075, %v3102
        %v3149 = vadd.f32 %v3076, %v3109
        %v3150 = vadd.f32 %v3077, %v3116
        %v3151 = vadd.f32 %v3078, %v3123
        %v3152 = vadd.f32 %v3079, %v3130
        %v3153 = vadd.f32 %v3080, %v3137
        %3162 = vset.pattern.permute.xlu0 0
        %3163 = vperm.xlu0 %3162, %v3146
        %v3164 = vpop.permute.xlu0 %3163
        %3165 = vset.pattern.permute.xlu0 0
        %3166 = vperm.xlu0 %3165, %v3147
        %v3167 = vpop.permute.xlu0 %3166
        %3168 = vset.pattern.permute.xlu0 0
        %3169 = vperm.xlu0 %3168, %v3148
        %v3170 = vpop.permute.xlu0 %3169
        %3171 = vset.pattern.permute.xlu0 0
        %3172 = vperm.xlu0 %3171, %v3149
        %v3173 = vpop.permute.xlu0 %3172
        %3174 = vset.pattern.permute.xlu0 0
        %3175 = vperm.xlu0 %3174, %v3150
        %v3176 = vpop.permute.xlu0 %3175
        %3177 = vset.pattern.permute.xlu0 0
        %3178 = vperm.xlu0 %3177, %v3151
        %v3179 = vpop.permute.xlu0 %3178
        %3180 = vset.pattern.permute.xlu0 0
        %3181 = vperm.xlu0 %3180, %v3152
        %v3182 = vpop.permute.xlu0 %3181
        %3183 = vset.pattern.permute.xlu0 0
        %3184 = vperm.xlu0 %3183, %v3153
        %v3185 = vpop.permute.xlu0 %3184
        %v3186 = vlaneseq
        %v3187 = vand.u32 %v3186, 127
        %v3188 = vlaneseq
        %v3189 = vshrl.u32 %v3188, 7
        %v3190 = vsub.s32 %v3187, %v3189
        %v3191 = vrot.slane %v3164, %v3190
        %v3192 = vlaneseq
        %v3193 = vshrl.u32 %v3192, 7
        %v3194 = vsub.s32 %v3187, %v3193
        %v3195 = vrot.slane %v3167, %v3194
        %v3196 = vlaneseq
        %v3197 = vshrl.u32 %v3196, 7
        %v3198 = vsub.s32 %v3187, %v3197
        %v3199 = vrot.slane %v3170, %v3198
        %v3200 = vlaneseq
        %v3201 = vshrl.u32 %v3200, 7
        %v3202 = vsub.s32 %v3187, %v3201
        %v3203 = vrot.slane %v3173, %v3202
        %v3204 = vlaneseq
        %v3205 = vshrl.u32 %v3204, 7
        %v3206 = vsub.s32 %v3187, %v3205
        %v3207 = vrot.slane %v3176, %v3206
        %v3208 = vlaneseq
        %v3209 = vshrl.u32 %v3208, 7
        %v3210 = vsub.s32 %v3187, %v3209
        %v3211 = vrot.slane %v3179, %v3210
        %v3212 = vlaneseq
        %v3213 = vshrl.u32 %v3212, 7
        %v3214 = vsub.s32 %v3187, %v3213
        %v3215 = vrot.slane %v3182, %v3214
        %v3216 = vlaneseq
        %v3217 = vshrl.u32 %v3216, 7
        %v3218 = vsub.s32 %v3187, %v3217
        %v3219 = vrot.slane %v3185, %v3218
        %v3220 = vsel %vm871, %v3195, %v3191
        %v3221 = vsel %vm873, %v3199, %v3220
        %v3222 = vsel %vm875, %v3203, %v3221
        %v3223 = vsel %vm877, %v3207, %v3222
        %v3224 = vsel %vm879, %v3211, %v3223
        %v3225 = vsel %vm881, %v3215, %v3224
        %v3226 = vsel %vm883, %v3219, %v3225
        %v3228 = vsel %vm1787, %v3226, -inf
        %3229 = vmax.xlane.f32.xlu0 %v3228
        %v3230 = vpop.xlane.xlu0 %3229
        %v3232 = vlaneseq
        %v3233 = vshrl.u32 %v3232, 7
        %v3234 = vsub.s32 0, %v3233
        %v3235 = vrot.slane %v3230, %v3234
        %v3236 = vlaneseq
        %v3237 = vshrl.u32 %v3236, 7
        %v3238 = vsub.s32 1, %v3237
        %v3239 = vrot.slane %v3230, %v3238
        %v3240 = vlaneseq
        %v3241 = vshrl.u32 %v3240, 7
        %v3242 = vsub.s32 2, %v3241
        %v3243 = vrot.slane %v3230, %v3242
        %v3244 = vlaneseq
        %v3245 = vshrl.u32 %v3244, 7
        %v3246 = vsub.s32 3, %v3245
        %v3247 = vrot.slane %v3230, %v3246
        %v3248 = vlaneseq
        %v3249 = vshrl.u32 %v3248, 7
        %v3250 = vsub.s32 4, %v3249
        %v3251 = vrot.slane %v3230, %v3250
        %v3252 = vlaneseq
        %v3253 = vshrl.u32 %v3252, 7
        %v3254 = vsub.s32 5, %v3253
        %v3255 = vrot.slane %v3230, %v3254
        %v3256 = vlaneseq
        %v3257 = vshrl.u32 %v3256, 7
        %v3258 = vsub.s32 6, %v3257
        %v3259 = vrot.slane %v3230, %v3258
        %v3260 = vlaneseq
        %v3261 = vshrl.u32 %v3260, 7
        %v3262 = vsub.s32 7, %v3261
        %v3263 = vrot.slane %v3230, %v3262
        %v3272 = vsub.f32 %v3146, %v3235
        %v3273 = vsub.f32 %v3147, %v3239
        %v3274 = vsub.f32 %v3148, %v3243
        %v3275 = vsub.f32 %v3149, %v3247
        %v3276 = vsub.f32 %v3150, %v3251
        %v3277 = vsub.f32 %v3151, %v3255
        %v3278 = vsub.f32 %v3152, %v3259
        %v3279 = vsub.f32 %v3153, %v3263
        %v3280 = vmul.f32 %v3272, 1.442695
        %v3281 = vpow.pop %v3280
        %v3282 = vmul.f32 %v3273, 1.442695
        %v3283 = vpow.pop %v3282
        %v3284 = vmul.f32 %v3274, 1.442695
        %v3285 = vpow.pop %v3284
        %v3286 = vmul.f32 %v3275, 1.442695
        %v3287 = vpow.pop %v3286
        %v3288 = vmul.f32 %v3276, 1.442695
        %v3289 = vpow.pop %v3288
        %v3290 = vmul.f32 %v3277, 1.442695
        %v3291 = vpow.pop %v3290
        %v3292 = vmul.f32 %v3278, 1.442695
        %v3293 = vpow.pop %v3292
        %v3294 = vmul.f32 %v3279, 1.442695
        %v3295 = vpow.pop %v3294
        %3304 = vset.pattern.permute.xlu0 0
        %3305 = vperm.xlu0 %3304, %v3281
        %v3306 = vpop.permute.xlu0 %3305
        %3307 = vset.pattern.permute.xlu0 0
        %3308 = vperm.xlu0 %3307, %v3283
        %v3309 = vpop.permute.xlu0 %3308
        %3310 = vset.pattern.permute.xlu0 0
        %3311 = vperm.xlu0 %3310, %v3285
        %v3312 = vpop.permute.xlu0 %3311
        %3313 = vset.pattern.permute.xlu0 0
        %3314 = vperm.xlu0 %3313, %v3287
        %v3315 = vpop.permute.xlu0 %3314
        %3316 = vset.pattern.permute.xlu0 0
        %3317 = vperm.xlu0 %3316, %v3289
        %v3318 = vpop.permute.xlu0 %3317
        %3319 = vset.pattern.permute.xlu0 0
        %3320 = vperm.xlu0 %3319, %v3291
        %v3321 = vpop.permute.xlu0 %3320
        %3322 = vset.pattern.permute.xlu0 0
        %3323 = vperm.xlu0 %3322, %v3293
        %v3324 = vpop.permute.xlu0 %3323
        %3325 = vset.pattern.permute.xlu0 0
        %3326 = vperm.xlu0 %3325, %v3295
        %v3327 = vpop.permute.xlu0 %3326
        %v3328 = vlaneseq
        %v3329 = vshrl.u32 %v3328, 7
        %v3330 = vsub.s32 %v3187, %v3329
        %v3331 = vrot.slane %v3306, %v3330
        %v3332 = vlaneseq
        %v3333 = vshrl.u32 %v3332, 7
        %v3334 = vsub.s32 %v3187, %v3333
        %v3335 = vrot.slane %v3309, %v3334
        %v3336 = vlaneseq
        %v3337 = vshrl.u32 %v3336, 7
        %v3338 = vsub.s32 %v3187, %v3337
        %v3339 = vrot.slane %v3312, %v3338
        %v3340 = vlaneseq
        %v3341 = vshrl.u32 %v3340, 7
        %v3342 = vsub.s32 %v3187, %v3341
        %v3343 = vrot.slane %v3315, %v3342
        %v3344 = vlaneseq
        %v3345 = vshrl.u32 %v3344, 7
        %v3346 = vsub.s32 %v3187, %v3345
        %v3347 = vrot.slane %v3318, %v3346
        %v3348 = vlaneseq
        %v3349 = vshrl.u32 %v3348, 7
        %v3350 = vsub.s32 %v3187, %v3349
        %v3351 = vrot.slane %v3321, %v3350
        %v3352 = vlaneseq
        %v3353 = vshrl.u32 %v3352, 7
        %v3354 = vsub.s32 %v3187, %v3353
        %v3355 = vrot.slane %v3324, %v3354
        %v3356 = vlaneseq
        %v3357 = vshrl.u32 %v3356, 7
        %v3358 = vsub.s32 %v3187, %v3357
        %v3359 = vrot.slane %v3327, %v3358
        %v3360 = vsel %vm871, %v3335, %v3331
        %v3361 = vsel %vm873, %v3339, %v3360
        %v3362 = vsel %vm875, %v3343, %v3361
        %v3363 = vsel %vm877, %v3347, %v3362
        %v3364 = vsel %vm879, %v3351, %v3363
        %v3365 = vsel %vm881, %v3355, %v3364
        %v3366 = vsel %vm883, %v3359, %v3365
        %v3368 = vsel %vm1787, %v3366, 0.0
        %3369 = vadd.xlane.f32.xlu0 %v3368
        %v3370 = vpop.xlane.xlu0 %3369
        %v3371 = vlog2.pop %v3370
        %v3372 = vmul.f32 %v3371, 0.6931472
        %v3373 = vadd.f32 %v3372, %v3230
        %v3375 = vlaneseq
        %v3376 = vshrl.u32 %v3375, 7
        %v3377 = vsub.s32 0, %v3376
        %v3378 = vrot.slane %v3373, %v3377
        %v3379 = vlaneseq
        %v3380 = vshrl.u32 %v3379, 7
        %v3381 = vsub.s32 1, %v3380
        %v3382 = vrot.slane %v3373, %v3381
        %v3383 = vlaneseq
        %v3384 = vshrl.u32 %v3383, 7
        %v3385 = vsub.s32 2, %v3384
        %v3386 = vrot.slane %v3373, %v3385
        %v3387 = vlaneseq
        %v3388 = vshrl.u32 %v3387, 7
        %v3389 = vsub.s32 3, %v3388
        %v3390 = vrot.slane %v3373, %v3389
        %v3391 = vlaneseq
        %v3392 = vshrl.u32 %v3391, 7
        %v3393 = vsub.s32 4, %v3392
        %v3394 = vrot.slane %v3373, %v3393
        %v3395 = vlaneseq
        %v3396 = vshrl.u32 %v3395, 7
        %v3397 = vsub.s32 5, %v3396
        %v3398 = vrot.slane %v3373, %v3397
        %v3399 = vlaneseq
        %v3400 = vshrl.u32 %v3399, 7
        %v3401 = vsub.s32 6, %v3400
        %v3402 = vrot.slane %v3373, %v3401
        %v3403 = vlaneseq
        %v3404 = vshrl.u32 %v3403, 7
        %v3405 = vsub.s32 7, %v3404
        %v3406 = vrot.slane %v3373, %v3405
        %v3415 = vsub.f32 %v3146, %v3378
        %v3416 = vsub.f32 %v3147, %v3382
        %v3417 = vsub.f32 %v3148, %v3386
        %v3418 = vsub.f32 %v3149, %v3390
        %v3419 = vsub.f32 %v3150, %v3394
        %v3420 = vsub.f32 %v3151, %v3398
        %v3421 = vsub.f32 %v3152, %v3402
        %v3422 = vsub.f32 %v3153, %v3406
        %3431 = vset.pattern.permute.xlu0 0
        %3432 = vperm.xlu0 %3431, %v3415
        %v3433 = vpop.permute.xlu0 %3432
        %3434 = vset.pattern.permute.xlu0 0
        %3435 = vperm.xlu0 %3434, %v3416
        %v3436 = vpop.permute.xlu0 %3435
        %3437 = vset.pattern.permute.xlu0 0
        %3438 = vperm.xlu0 %3437, %v3417
        %v3439 = vpop.permute.xlu0 %3438
        %3440 = vset.pattern.permute.xlu0 0
        %3441 = vperm.xlu0 %3440, %v3418
        %v3442 = vpop.permute.xlu0 %3441
        %3443 = vset.pattern.permute.xlu0 0
        %3444 = vperm.xlu0 %3443, %v3419
        %v3445 = vpop.permute.xlu0 %3444
        %3446 = vset.pattern.permute.xlu0 0
        %3447 = vperm.xlu0 %3446, %v3420
        %v3448 = vpop.permute.xlu0 %3447
        %3449 = vset.pattern.permute.xlu0 0
        %3450 = vperm.xlu0 %3449, %v3421
        %v3451 = vpop.permute.xlu0 %3450
        %3452 = vset.pattern.permute.xlu0 0
        %3453 = vperm.xlu0 %3452, %v3422
        %v3454 = vpop.permute.xlu0 %3453
        %v3455 = vlaneseq
        %v3456 = vshrl.u32 %v3455, 7
        %v3457 = vsub.s32 %v3187, %v3456
        %v3458 = vrot.slane %v3433, %v3457
        %v3459 = vlaneseq
        %v3460 = vshrl.u32 %v3459, 7
        %v3461 = vsub.s32 %v3187, %v3460
        %v3462 = vrot.slane %v3436, %v3461
        %v3463 = vlaneseq
        %v3464 = vshrl.u32 %v3463, 7
        %v3465 = vsub.s32 %v3187, %v3464
        %v3466 = vrot.slane %v3439, %v3465
        %v3467 = vlaneseq
        %v3468 = vshrl.u32 %v3467, 7
        %v3469 = vsub.s32 %v3187, %v3468
        %v3470 = vrot.slane %v3442, %v3469
        %v3471 = vlaneseq
        %v3472 = vshrl.u32 %v3471, 7
        %v3473 = vsub.s32 %v3187, %v3472
        %v3474 = vrot.slane %v3445, %v3473
        %v3475 = vlaneseq
        %v3476 = vshrl.u32 %v3475, 7
        %v3477 = vsub.s32 %v3187, %v3476
        %v3478 = vrot.slane %v3448, %v3477
        %v3479 = vlaneseq
        %v3480 = vshrl.u32 %v3479, 7
        %v3481 = vsub.s32 %v3187, %v3480
        %v3482 = vrot.slane %v3451, %v3481
        %v3483 = vlaneseq
        %v3484 = vshrl.u32 %v3483, 7
        %v3485 = vsub.s32 %v3187, %v3484
        %v3486 = vrot.slane %v3454, %v3485
        %v3487 = vsel %vm871, %v3462, %v3458
        %v3488 = vsel %vm873, %v3466, %v3487
        %v3489 = vsel %vm875, %v3470, %v3488
        %v3490 = vsel %vm877, %v3474, %v3489
        %v3491 = vsel %vm879, %v3478, %v3490
        %v3492 = vsel %vm881, %v3482, %v3491
        %v3493 = vsel %vm883, %v3486, %v3492
        %v3495 = vsel %vm1787, %v3493, 0.0
        %3496 = vst [vmem:[%s394] sm:$0xff] %v3495
        %3497 = vst [vmem:[%s401] sm:$0xff] %v2932
        %s3498 = sand.u32 %s217, 1
        %s3499 = scalar_lea.sflag [#allocation4], %s3498
        %s3500 = sand.u32 %s217, 1
        %s3501 = smul.addr %s3500, 8
        %s3502 = scalar_lea.vmem [#allocation8], %s3501
        %s3503 = sand.u32 %s243, 1
        %s3504 = scalar_lea.sflag [#allocation10], %s3503
        %s3505 = sand.u32 %s243, 1
        %s3506 = smul.addr %s3505, 8
        %s3507 = scalar_lea.vmem [#allocation9], %s3506
        // Predicated region
        $region65: #{tpu_custom_call.1} parent=51 // pred_check
          %p3508 = pneg %p227
        $region66: #{tpu_custom_call.1} parent=51 // pred_check_branch
          %3510 = sbr.rel (%p3508) target = $region68
        $region67: #{tpu_custom_call.1} parent=51 // pred_region
          %s3512 = ssub.s32 128, 128
          %3513 = vsyncadd %s3499, %s3512
          %s3514 = smul.addr %s31, 128
          %s3515 = scalar_lea.hbm %s8, %s3514
          %s3517 = sshll.u32 %s3502, 4
          %s3518 = int_to_ptr.vmem [resolvable:$true] %s3517
          %3520 = dma.vmem_to_hbm [thread:$0]  %s3518, 128, %s3515, %s3499
        $region68: #{tpu_custom_call.1} parent=51 // pred_fallthru
          _
        // Predicated region
        $region69: #{tpu_custom_call.1} parent=51 // pred_check
          %p3521 = pneg %p253
        $region70: #{tpu_custom_call.1} parent=51 // pred_check_branch
          %3523 = sbr.rel (%p3521) target = $region72
        $region71: #{tpu_custom_call.1} parent=51 // pred_region
          %s3525 = ssub.s32 128, 128
          %3526 = vsyncadd %s3504, %s3525
          %s3527 = smul.addr %s31, 128
          %s3528 = scalar_lea.hbm %s9, %s3527
          %s3530 = sshll.u32 %s3507, 4
          %s3531 = int_to_ptr.vmem [resolvable:$true] %s3530
          %3533 = dma.vmem_to_hbm [thread:$0]  %s3531, 128, %s3528, %s3504
        $region72: #{tpu_custom_call.1} parent=51 // pred_fallthru
          _
      $region52: #{tpu_custom_call.1} parent=5 // pred_fallthru
        _
      %p3534 = scmp.le.s32.totalorder 2, %s26
      // Predicated region
      $region73: #{tpu_custom_call.1} parent=5 // pred_check
        %p3535 = pneg %p3534
      $region74: #{tpu_custom_call.1} parent=5 // pred_check_branch
        %3537 = sbr.rel (%p3535) target = $region76
      $region75: #{tpu_custom_call.1} parent=5 // pred_region
        %s3538 = ssub.s32 %s26, 2
        // Predicated region
        $region77: #{tpu_custom_call.1} parent=75 // pred_check
          %p3539 = pneg %p233
        $region78: #{tpu_custom_call.1} parent=75 // pred_check_branch
          %3541 = sbr.rel (%p3539) target = $region80
        $region79: #{tpu_custom_call.1} parent=75 // pred_region
          %s3542 = sand.u32 %s218, 1
          %s3543 = scalar_lea.sflag [#allocation4], %s3542
          %s3544 = sand.u32 %s218, 1
          %s3545 = smul.addr %s3544, 8
          %s3546 = scalar_lea.vmem [#allocation8], %s3545
          %3547 = dma.done %s3543, 128
        $region80: #{tpu_custom_call.1} parent=75 // pred_fallthru
          _
        // Predicated region
        $region81: #{tpu_custom_call.1} parent=75 // pred_check
          %p3548 = pneg %p259
        $region82: #{tpu_custom_call.1} parent=75 // pred_check_branch
          %3550 = sbr.rel (%p3548) target = $region84
        $region83: #{tpu_custom_call.1} parent=75 // pred_region
          %s3551 = sand.u32 %s244, 1
          %s3552 = scalar_lea.sflag [#allocation10], %s3551
          %s3553 = sand.u32 %s244, 1
          %s3554 = smul.addr %s3553, 8
          %s3555 = scalar_lea.vmem [#allocation9], %s3554
          %3556 = dma.done %s3552, 128
        $region84: #{tpu_custom_call.1} parent=75 // pred_fallthru
          _
      $region76: #{tpu_custom_call.1} parent=5 // pred_fallthru
        _
    $region6: #{tpu_custom_call.1} parent=1 // loop_footer
      %s30 = sadd.s32 1, %s26
    $region7: #{tpu_custom_call.1} parent=1 // loop_footer_branch
      %25 = sbr.rel target = $region3
    $region8: #{tpu_custom_call.1} parent=1 // loop_exit
      _
    %3557 = vsyncpa [#allocation3], 1
    %s3558 = scalar_lea.sflag [#allocation3], 1
    %3559 = vsyncpa %s3558, 1
    %3560 = vsyncpa [#allocation6], 1
    %3561 = vsyncpa [#allocation4], 1
    %s3562 = scalar_lea.sflag [#allocation4], 1
    %3563 = vsyncpa %s3562, 1
    %3564 = vsyncpa [#allocation10], 1
    %s3565 = scalar_lea.sflag [#allocation10], 1
    %3566 = vsyncpa %s3565, 1

</llo_original>
